<compile_context>
chip_gen: v7x
topology: tpu7x:2x2x1
jax: 0.10.0
libtpu: 0.0.40
codegen_flags: <defaults>
</compile_context>

<pallas_src>
import functools

import jax
import jax.numpy as jnp
from jax import lax
from jax.experimental import pallas as pl
from jax.experimental.pallas import tpu as pltpu

EPS = 1e-5


# ----------------------------- Pallas kernels ------------------------------ #

def _im2col_taps(x_ref, *, s, Ho, Wo, cin):
    """The 9 shifted 3x3-conv taps as bf16 (Ho*Wo, cin) slices of the
    space-to-batch-rearranged, zero-padded input tile:

      x_ref[(kh % s) * s + (kw % s), kh//s + ho, kw//s + wo, c]
        == x_padded[ho * s + kh, wo * s + kw, c]

    Every tap is a static contiguous slice: no strided loads, no casts."""
    taps = []
    for kh in range(3):
        for kw in range(3):
            p = (kh % s) * s + (kw % s)
            tap = x_ref[p, kh // s:kh // s + Ho, kw // s:kw // s + Wo, :]
            taps.append(tap.reshape(Ho * Wo, cin))
    return taps


def _store_partial_stats(st_ref, acc):
    """Per-image BN partials: row 0 = sum, row 1 = sum of squares, ONE store."""
    st_ref[0] = jnp.concatenate(
        [jnp.sum(acc, axis=0, keepdims=True),
         jnp.sum(acc * acc, axis=0, keepdims=True)], axis=0)


def conv1_kernel(x_ref, w1_ref, y1_ref, st1_ref, *, s, Ho, Wo, cin):
    patches = jnp.concatenate(
        _im2col_taps(x_ref, s=s, Ho=Ho, Wo=Wo, cin=cin), axis=1)  # (Ho*Wo, 9*cin)
    acc = jnp.dot(patches, w1_ref[...], preferred_element_type=jnp.float32)
    _store_partial_stats(st1_ref, acc)
    y1_ref[0] = acc.astype(y1_ref.dtype)


def conv1_proj_kernel(x_ref, w1_ref, wsc_ref, y1_ref, st1_ref, ysc_ref, stsc_ref,
                      *, s, Ho, Wo, cin):
    taps = _im2col_taps(x_ref, s=s, Ho=Ho, Wo=Wo, cin=cin)
    patches = jnp.concatenate(taps, axis=1)                       # (Ho*Wo, 9*cin)
    acc = jnp.dot(patches, w1_ref[...], preferred_element_type=jnp.float32)
    _store_partial_stats(st1_ref, acc)
    y1_ref[0] = acc.astype(y1_ref.dtype)
    # 1x1 strided shortcut conv == the centre (kh=1, kw=1) tap, reused as-is.
    sc = jnp.dot(taps[4], wsc_ref[...], preferred_element_type=jnp.float32)
    _store_partial_stats(stsc_ref, sc)
    ysc_ref[0] = sc.astype(ysc_ref.dtype)


def conv2_kernel(y1_ref, w2_ref, s1_ref, b1_ref, y2_ref, st2_ref, z_ref,
                 *, Ho, Wo, planes):
    # BN1 affine + ReLU applied on the fly to the unpadded pre-BN conv1 output;
    # the bf16 scratch supplies the 1-pixel zero ring conv2 needs.  Re-zeroed
    # every step (VMEM-only, cheap) so it is safe under "parallel" grid split.
    z_ref[...] = jnp.zeros_like(z_ref)
    z = y1_ref[0].astype(jnp.float32) * s1_ref[...] + b1_ref[...]
    z = jnp.maximum(z, 0.0)
    z_ref[1:Ho + 1, 1:Wo + 1, :] = z.reshape(Ho, Wo, planes).astype(z_ref.dtype)

    taps = [z_ref[kh:kh + Ho, kw:kw + Wo, :].reshape(Ho * Wo, planes)
            for kh in range(3) for kw in range(3)]
    patches = jnp.concatenate(taps, axis=1)                     # (Ho*Wo, 9*planes)
    acc = jnp.dot(patches, w2_ref[...], preferred_element_type=jnp.float32)
    _store_partial_stats(st2_ref, acc)
    y2_ref[0] = acc.astype(y2_ref.dtype)


def tail_proj_kernel(y2_ref, s2_ref, b2_ref, ysc_ref, ssc_ref, bsc_ref, o_ref):
    main = y2_ref[0].astype(jnp.float32) * s2_ref[...] + b2_ref[...]
    sc = ysc_ref[0].astype(jnp.float32) * ssc_ref[...] + bsc_ref[...]
    # Store directly in NCHW layout; the transpose rides the XLU and removes
    # the wrapper-side f32 relayout round trip through HBM.
    o_ref[0] = jnp.maximum(main + sc, 0.0).T.astype(o_ref.dtype)


def tail_identity_kernel(y2_ref, s2_ref, b2_ref, xsc_ref, o_ref):
    main = y2_ref[0].astype(jnp.float32) * s2_ref[...] + b2_ref[...]
    o_ref[0] = jnp.maximum(main.T + xsc_ref[0].astype(jnp.float32),
                           0.0).astype(o_ref.dtype)


# ------------------------------ JAX glue ----------------------------------- #

def _space_to_batch(x_nhwc, s):
    """Zero-pad by 1 (3x3 'same' conv), pad H/W up to multiples of s, and split
    the spatial dims by stride parity:
        out[n*s*s + p*s + q, a, b, c] == x_padded[n, a*s + p, b*s + q, c]"""
    N, H, W, C = x_nhwc.shape
    Hp, Wp = H + 2, W + 2
    Hq, Wq = -(-Hp // s), -(-Wp // s)
    xp = jnp.pad(x_nhwc,
                 ((0, 0), (1, 1 + Hq * s - Hp), (1, 1 + Wq * s - Wp), (0, 0)))
    xr = xp.reshape(N, Hq, s, Wq, s, C).transpose(0, 2, 4, 1, 3, 5)
    return xr.reshape(N * s * s, Hq, Wq, C), Hq, Wq


def _bn_fold(partial_stats, count, gamma, beta):
    """Reduce per-image (sum, sumsq) partials -> BN(batch-stats) scale/shift."""
    tot = jnp.sum(partial_stats.astype(jnp.float32), axis=0)          # (2, C)
    mean = tot[0] / count
    var = jnp.maximum(tot[1] / count - mean * mean, 0.0)
    scale = gamma.astype(jnp.float32) * lax.rsqrt(var + EPS)
    shift = beta.astype(jnp.float32) - mean * scale
    return scale.reshape(1, -1), shift.reshape(1, -1)


def _conv3x3_w_flat(w_oihw):
    """PyTorch (O, I, 3, 3) -> (9*I, O) bf16; row = kh*3*I + kw*I + i matches
    the in-kernel tap concatenation order."""
    o, i = w_oihw.shape[0], w_oihw.shape[1]
    return jnp.transpose(w_oihw, (2, 3, 1, 0)).reshape(9 * i, o).astype(jnp.bfloat16)


def _vmem_limit_bytes():
    """Per-generation scoped VMEM budget (v5e/v6e: 128 MiB, v7x: 64 MiB)."""
    try:
        cap = int(pltpu.get_tpu_info().vmem_capacity_bytes)
    except Exception:
        cap = 64 * 1024 * 1024          # conservative fallback
    return int(min(cap // 2, 64 * 1024 * 1024))


@functools.partial(jax.jit, static_argnames=("stride", "has_proj"))
def _basic_block_fwd(w, x_nchw, *, stride, has_proj):
    N, Cin, H, W = x_nchw.shape
    planes = w["w1"].shape[0]
    s = stride
    Ho = (H - 1) // s + 1
    Wo = (W - 1) // s + 1
    M = N * Ho * Wo

    xr, Hq, Wq = _space_to_batch(
        jnp.transpose(x_nchw, (0, 2, 3, 1)).astype(jnp.bfloat16), s)
    w1m = _conv3x3_w_flat(w["w1"])                    # (9*Cin, planes) bf16
    w2m = _conv3x3_w_flat(w["w2"])                    # (9*planes, planes) bf16

    cparams = pltpu.CompilerParams(
        dimension_semantics=("parallel",),            # batch grid -> both TCs on v7x
        vmem_limit_bytes=_vmem_limit_bytes())

    grid = (N,)
    xr_spec = pl.BlockSpec((s * s, Hq, Wq, Cin), lambda n: (n, 0, 0, 0))
    w1_spec = pl.BlockSpec((9 * Cin, planes), lambda n: (0, 0))
    w2_spec = pl.BlockSpec((9 * planes, planes), lambda n: (0, 0))
    wsc_spec = pl.BlockSpec((Cin, planes), lambda n: (0, 0))
    yf_spec = pl.BlockSpec((1, Ho * Wo, planes), lambda n: (n, 0, 0))
    st_spec = pl.BlockSpec((1, 2, planes), lambda n: (n, 0, 0))
    aff_spec = pl.BlockSpec((1, planes), lambda n: (0, 0))
    ot_spec = pl.BlockSpec((1, planes, Ho * Wo), lambda n: (n, 0, 0))

    y_bf16 = jax.ShapeDtypeStruct((N, Ho * Wo, planes), jnp.bfloat16)
    st_f32 = jax.ShapeDtypeStruct((N, 2, planes), jnp.float32)

    # ------------- pass A: conv1 (+ projection shortcut) + BN partials ------ #
    flops_a = 2 * M * 9 * Cin * planes + (2 * M * Cin * planes if has_proj else 0)
    bytes_a = (xr.size * 2 + w1m.size * 2
               + (2 if has_proj else 1) * (M * planes * 2 + N * 2 * planes * 4))
    if has_proj:
        wscm = w["wsc"][:, :, 0, 0].T.astype(jnp.bfloat16)           # (Cin, planes)
        y1, st1, ysc, stsc = pl.pallas_call(
            functools.partial(conv1_proj_kernel, s=s, Ho=Ho, Wo=Wo, cin=Cin),
            grid=grid,
            in_specs=[xr_spec, w1_spec, wsc_spec],
            out_specs=(yf_spec, st_spec, yf_spec, st_spec),
            out_shape=(y_bf16, st_f32, y_bf16, st_f32),
            compiler_params=cparams,
            cost_estimate=pl.CostEstimate(flops=flops_a, transcendentals=0,
                                          bytes_accessed=bytes_a),
        )(xr, w1m, wscm)
    else:
        y1, st1 = pl.pallas_call(
            functools.partial(conv1_kernel, s=s, Ho=Ho, Wo=Wo, cin=Cin),
            grid=grid,
            in_specs=[xr_spec, w1_spec],
            out_specs=(yf_spec, st_spec),
            out_shape=(y_bf16, st_f32),
            compiler_params=cparams,
            cost_estimate=pl.CostEstimate(flops=flops_a, transcendentals=0,
                                          bytes_accessed=bytes_a),
        )(xr, w1m)

    scale1, shift1 = _bn_fold(st1, M, w["g1"], w["b1"])

    # ------------- pass B: BN1 + ReLU on the fly, conv2, BN2 partials ------- #
    flops_b = 2 * M * 9 * planes * planes
    bytes_b = y1.size * 2 + w2m.size * 2 + M * planes * 2 + N * 2 * planes * 4
    y2, st2 = pl.pallas_call(
        functools.partial(conv2_kernel, Ho=Ho, Wo=Wo, planes=planes),
        grid=grid,
        in_specs=[yf_spec, w2_spec, aff_spec, aff_spec],
        out_specs=(yf_spec, st_spec),
        out_shape=(y_bf16, st_f32),
        scratch_shapes=[pltpu.VMEM((Ho + 2, Wo + 2, planes), jnp.bfloat16)],
        compiler_params=cparams,
        cost_estimate=pl.CostEstimate(flops=flops_b, transcendentals=0,
                                      bytes_accessed=bytes_b),
    )(y1, w2m, scale1, shift1)

    scale2, shift2 = _bn_fold(st2, M, w["g2"], w["b2"])
    out_sds = jax.ShapeDtypeStruct((N, planes, Ho * Wo), jnp.float32)

    # ------------- pass C: BN2 + shortcut + residual add + ReLU (NCHW out) -- #
    if has_proj:
        scalesc, shiftsc = _bn_fold(stsc, M, w["gsc"], w["bsc"])
        out = pl.pallas_call(
            tail_proj_kernel,
            grid=grid,
            in_specs=[yf_spec, aff_spec, aff_spec, yf_spec, aff_spec, aff_spec],
            out_specs=ot_spec,
            out_shape=out_sds,
            compiler_params=cparams,
        )(y2, scale2, shift2, ysc, scalesc, shiftsc)
    else:
        # Identity shortcut: x in NCHW-flat layout is already (planes, Ho*Wo).
        xsc = x_nchw.reshape(N, Cin, H * W)
        xsc_spec = pl.BlockSpec((1, Cin, H * W), lambda n: (n, 0, 0))
        out = pl.pallas_call(
            tail_identity_kernel,
            grid=grid,
            in_specs=[yf_spec, aff_spec, aff_spec, xsc_spec],
            out_specs=ot_spec,
            out_shape=out_sds,
            compiler_params=cparams,
        )(y2, scale2, shift2, xsc)

    return out.reshape(N, planes, Ho, Wo)                        # NCHW, free reshape


def basic_block_forward(params, x_nchw):
    weights = {k: v for k, v in params.items() if k not in ("stride", "has_proj")}
    return _basic_block_fwd(weights, x_nchw,
                            stride=int(params["stride"]),
                            has_proj=bool(params["has_proj"]))


def init_basic_block(key, in_planes, planes, stride=1):
    ks = jax.random.split(key, 10)
    params = {
        "w1": 0.1 * jax.random.normal(ks[0], (planes, in_planes, 3, 3), jnp.float32),
        "g1": 1.0 + 0.1 * jax.random.normal(ks[1], (planes,), jnp.float32),
        "b1": 0.1 * jax.random.normal(ks[2], (planes,), jnp.float32),
        "w2": 0.1 * jax.random.normal(ks[3], (planes, planes, 3, 3), jnp.float32),
        "g2": 1.0 + 0.1 * jax.random.normal(ks[4], (planes,), jnp.float32),
        "b2": 0.1 * jax.random.normal(ks[5], (planes,), jnp.float32),
        "stride": stride,
        "has_proj": (stride != 1 or in_planes != planes),
    }
    if params["has_proj"]:
        params["wsc"] = 0.1 * jax.random.normal(ks[6], (planes, in_planes, 1, 1), jnp.float32)
        params["gsc"] = 1.0 + 0.1 * jax.random.normal(ks[7], (planes,), jnp.float32)
        params["bsc"] = 0.1 * jax.random.normal(ks[8], (planes,), jnp.float32)
    return params


# ------------------------- pure-JAX reference ------------------------------- #

def _conv2d_ref(x_nchw, w, stride, padding):
    return lax.conv_general_dilated(
        x_nchw, w, window_strides=(stride, stride),
        padding=((padding, padding), (padding, padding)),
        dimension_numbers=("NCHW", "OIHW", "NCHW"))


def _bn_ref(y, gamma, beta):
    mean = jnp.mean(y, axis=(0, 2, 3), keepdims=True)
    var = jnp.mean((y - mean) ** 2, axis=(0, 2, 3), keepdims=True)
    return (y - mean) * lax.rsqrt(var + EPS) * gamma.reshape(1, -1, 1, 1) \
        + beta.reshape(1, -1, 1, 1)


def basic_block_ref(params, x):
    out = jax.nn.relu(_bn_ref(_conv2d_ref(x, params["w1"], params["stride"], 1),
                              params["g1"], params["b1"]))
    out = _bn_ref(_conv2d_ref(out, params["w2"], 1, 1), params["g2"], params["b2"])
    if params["has_proj"]:
        sc = _bn_ref(_conv2d_ref(x, params["wsc"], params["stride"], 0),
                     params["gsc"], params["bsc"])
    else:
        sc = x
    return jax.nn.relu(out + sc)


# ----------------------------------- main ----------------------------------- #

if __name__ == "__main__":
    key = jax.random.PRNGKey(0)
    k_x1, k_p1, k_x2, k_p2 = jax.random.split(key, 4)

    # Projection-shortcut block: in_planes=4 -> planes=8, stride=2
    x1 = jax.random.normal(k_x1, (2, 4, 16, 16), jnp.float32)
    params1 = init_basic_block(k_p1, 4, 8, stride=2)
    y1 = jax.block_until_ready(basic_block_forward(params1, x1))
    r1 = jax.block_until_ready(basic_block_ref(params1, x1))
    assert y1.shape == (2, 8, 8, 8), y1.shape
    assert jnp.allclose(y1, r1, atol=5e-2, rtol=5e-2), float(jnp.max(jnp.abs(y1 - r1)))

    # Identity-shortcut block: in_planes=planes=8, stride=1
    x2 = jax.random.normal(k_x2, (2, 8, 16, 16), jnp.float32)
    params2 = init_basic_block(k_p2, 8, 8, stride=1)
    y2 = jax.block_until_ready(basic_block_forward(params2, x2))
    r2 = jax.block_until_ready(basic_block_ref(params2, x2))
    assert y2.shape == (2, 8, 16, 16), y2.shape
    assert jnp.allclose(y2, r2, atol=5e-2, rtol=5e-2), float(jnp.max(jnp.abs(y2 - r2)))

    print("KERNEL_OK")
</pallas_src>

<mosaic_0001>
module attributes {stable_mosaic.version = 11 : i64} {
  func.func @conv1_proj_kernel(%arg0: i32, %arg1: memref<4x9x9x4xbf16, #tpu.memory_space<vmem>>, %arg2: memref<36x8xbf16, #tpu.memory_space<vmem>>, %arg3: memref<4x8xbf16, #tpu.memory_space<vmem>>, %arg4: memref<1x64x8xbf16, #tpu.memory_space<vmem>>, %arg5: memref<1x2x8xf32, #tpu.memory_space<vmem>>, %arg6: memref<1x64x8xbf16, #tpu.memory_space<vmem>>, %arg7: memref<1x2x8xf32, #tpu.memory_space<vmem>>) attributes {dimension_semantics = [#tpu.dimension_semantics<parallel>], iteration_bounds = array<i64: 2>, scalar_prefetch = 0 : i64, scratch_operands = 0 : i64, tpu.core_type = #tpu.core_type<tc>, window_params = [{transform_indices = @transform_0, window_bounds = array<i64: 4, 9, 9, 4>}, {pipeline_mode = #tpu.pipeline_mode<synchronous>, transform_indices = @transform_1, window_bounds = array<i64: 36, 8>}, {pipeline_mode = #tpu.pipeline_mode<synchronous>, transform_indices = @transform_2, window_bounds = array<i64: 4, 8>}, {transform_indices = @transform_3, window_bounds = array<i64: 1, 64, 8>}, {transform_indices = @transform_4, window_bounds = array<i64: 1, 2, 8>}, {transform_indices = @transform_5, window_bounds = array<i64: 1, 64, 8>}, {transform_indices = @transform_6, window_bounds = array<i64: 1, 2, 8>}]} {
    %c0 = arith.constant 0 : index
    %c0_0 = arith.constant 0 : index
    %c0_1 = arith.constant 0 : index
    %c0_2 = arith.constant 0 : index
    %0 = vector.load %arg1[%c0, %c0_0, %c0_1, %c0_2] : memref<4x9x9x4xbf16, #tpu.memory_space<vmem>>, vector<1x8x8x4xbf16>
    %1 = vector.shape_cast %0 : vector<1x8x8x4xbf16> to vector<8x8x4xbf16>
    %2 = vector.shape_cast %1 : vector<8x8x4xbf16> to vector<64x4xbf16>
    %c1 = arith.constant 1 : index
    %c0_3 = arith.constant 0 : index
    %c0_4 = arith.constant 0 : index
    %c0_5 = arith.constant 0 : index
    %3 = vector.load %arg1[%c1, %c0_3, %c0_4, %c0_5] : memref<4x9x9x4xbf16, #tpu.memory_space<vmem>>, vector<1x8x8x4xbf16>
    %4 = vector.shape_cast %3 : vector<1x8x8x4xbf16> to vector<8x8x4xbf16>
    %5 = vector.shape_cast %4 : vector<8x8x4xbf16> to vector<64x4xbf16>
    %c0_6 = arith.constant 0 : index
    %c0_7 = arith.constant 0 : index
    %c1_8 = arith.constant 1 : index
    %c0_9 = arith.constant 0 : index
    %6 = vector.load %arg1[%c0_6, %c0_7, %c1_8, %c0_9] : memref<4x9x9x4xbf16, #tpu.memory_space<vmem>>, vector<1x8x8x4xbf16>
    %7 = vector.shape_cast %6 : vector<1x8x8x4xbf16> to vector<8x8x4xbf16>
    %8 = vector.shape_cast %7 : vector<8x8x4xbf16> to vector<64x4xbf16>
    %c2 = arith.constant 2 : index
    %c0_10 = arith.constant 0 : index
    %c0_11 = arith.constant 0 : index
    %c0_12 = arith.constant 0 : index
    %9 = vector.load %arg1[%c2, %c0_10, %c0_11, %c0_12] : memref<4x9x9x4xbf16, #tpu.memory_space<vmem>>, vector<1x8x8x4xbf16>
    %10 = vector.shape_cast %9 : vector<1x8x8x4xbf16> to vector<8x8x4xbf16>
    %11 = vector.shape_cast %10 : vector<8x8x4xbf16> to vector<64x4xbf16>
    %c3 = arith.constant 3 : index
    %c0_13 = arith.constant 0 : index
    %c0_14 = arith.constant 0 : index
    %c0_15 = arith.constant 0 : index
    %12 = vector.load %arg1[%c3, %c0_13, %c0_14, %c0_15] : memref<4x9x9x4xbf16, #tpu.memory_space<vmem>>, vector<1x8x8x4xbf16>
    %13 = vector.shape_cast %12 : vector<1x8x8x4xbf16> to vector<8x8x4xbf16>
    %14 = vector.shape_cast %13 : vector<8x8x4xbf16> to vector<64x4xbf16>
    %c2_16 = arith.constant 2 : index
    %c0_17 = arith.constant 0 : index
    %c1_18 = arith.constant 1 : index
    %c0_19 = arith.constant 0 : index
    %15 = vector.load %arg1[%c2_16, %c0_17, %c1_18, %c0_19] : memref<4x9x9x4xbf16, #tpu.memory_space<vmem>>, vector<1x8x8x4xbf16>
    %16 = vector.shape_cast %15 : vector<1x8x8x4xbf16> to vector<8x8x4xbf16>
    %17 = vector.shape_cast %16 : vector<8x8x4xbf16> to vector<64x4xbf16>
    %c0_20 = arith.constant 0 : index
    %c1_21 = arith.constant 1 : index
    %c0_22 = arith.constant 0 : index
    %c0_23 = arith.constant 0 : index
    %18 = vector.load %arg1[%c0_20, %c1_21, %c0_22, %c0_23] : memref<4x9x9x4xbf16, #tpu.memory_space<vmem>>, vector<1x8x8x4xbf16>
    %19 = vector.shape_cast %18 : vector<1x8x8x4xbf16> to vector<8x8x4xbf16>
    %20 = vector.shape_cast %19 : vector<8x8x4xbf16> to vector<64x4xbf16>
    %c1_24 = arith.constant 1 : index
    %c1_25 = arith.constant 1 : index
    %c0_26 = arith.constant 0 : index
    %c0_27 = arith.constant 0 : index
    %21 = vector.load %arg1[%c1_24, %c1_25, %c0_26, %c0_27] : memref<4x9x9x4xbf16, #tpu.memory_space<vmem>>, vector<1x8x8x4xbf16>
    %22 = vector.shape_cast %21 : vector<1x8x8x4xbf16> to vector<8x8x4xbf16>
    %23 = vector.shape_cast %22 : vector<8x8x4xbf16> to vector<64x4xbf16>
    %c0_28 = arith.constant 0 : index
    %c1_29 = arith.constant 1 : index
    %c1_30 = arith.constant 1 : index
    %c0_31 = arith.constant 0 : index
    %24 = vector.load %arg1[%c0_28, %c1_29, %c1_30, %c0_31] : memref<4x9x9x4xbf16, #tpu.memory_space<vmem>>, vector<1x8x8x4xbf16>
    %25 = vector.shape_cast %24 : vector<1x8x8x4xbf16> to vector<8x8x4xbf16>
    %26 = vector.shape_cast %25 : vector<8x8x4xbf16> to vector<64x4xbf16>
    %27 = tpu.concatenate %2, %5, %8, %11, %14, %17, %20, %23, %26 in 1 : vector<64x4xbf16>, vector<64x4xbf16>, vector<64x4xbf16>, vector<64x4xbf16>, vector<64x4xbf16>, vector<64x4xbf16>, vector<64x4xbf16>, vector<64x4xbf16>, vector<64x4xbf16> -> vector<64x36xbf16>
    %c0_32 = arith.constant 0 : index
    %c0_33 = arith.constant 0 : index
    %28 = vector.load %arg2[%c0_32, %c0_33] : memref<36x8xbf16, #tpu.memory_space<vmem>>, vector<36x8xbf16>
    %cst = arith.constant dense<0.000000e+00> : vector<64x8xf32>
    %29 = tpu.matmul %27, %28, %cst {dimension_numbers = #tpu.dot_dimension_numbers<[1], [0], [0], [1], [0, 0, 1, 1], [], []>} : vector<64x36xbf16>, vector<36x8xbf16>, vector<64x8xf32> -> vector<64x8xf32>
    %cst_34 = arith.constant dense<0.000000e+00> : vector<8xf32>
    %30 = vector.multi_reduction <add>, %29, %cst_34 [0] : vector<64x8xf32> to vector<8xf32>
    %31 = vector.shape_cast %30 : vector<8xf32> to vector<1x8xf32>
    %32 = arith.mulf %29, %29 : vector<64x8xf32>
    %cst_35 = arith.constant dense<0.000000e+00> : vector<8xf32>
    %33 = vector.multi_reduction <add>, %32, %cst_35 [0] : vector<64x8xf32> to vector<8xf32>
    %34 = vector.shape_cast %33 : vector<8xf32> to vector<1x8xf32>
    %35 = tpu.concatenate %31, %34 in 0 : vector<1x8xf32>, vector<1x8xf32> -> vector<2x8xf32>
    %c0_36 = arith.constant 0 : index
    %c0_37 = arith.constant 0 : index
    %c0_38 = arith.constant 0 : index
    %36 = vector.load %arg5[%c0_36, %c0_37, %c0_38] : memref<1x2x8xf32, #tpu.memory_space<vmem>>, vector<1x2x8xf32>
    %37 = vector.shape_cast %36 : vector<1x2x8xf32> to vector<2x8xf32>
    %38 = vector.shape_cast %35 : vector<2x8xf32> to vector<1x2x8xf32>
    tpu.vector_store %arg5[%c0_36, %c0_37, %c0_38], %38 {strides = array<i32>} : memref<1x2x8xf32, #tpu.memory_space<vmem>>, vector<1x2x8xf32>,
    %39 = arith.truncf %29 : vector<64x8xf32> to vector<64x8xbf16>
    %c0_39 = arith.constant 0 : index
    %c0_40 = arith.constant 0 : index
    %c0_41 = arith.constant 0 : index
    %40 = vector.load %arg4[%c0_39, %c0_40, %c0_41] : memref<1x64x8xbf16, #tpu.memory_space<vmem>>, vector<1x64x8xbf16>
    %41 = vector.shape_cast %40 : vector<1x64x8xbf16> to vector<64x8xbf16>
    %42 = vector.shape_cast %39 : vector<64x8xbf16> to vector<1x64x8xbf16>
    tpu.vector_store %arg4[%c0_39, %c0_40, %c0_41], %42 {strides = array<i32>} : memref<1x64x8xbf16, #tpu.memory_space<vmem>>, vector<1x64x8xbf16>,
    %c0_42 = arith.constant 0 : index
    %c0_43 = arith.constant 0 : index
    %43 = vector.load %arg3[%c0_42, %c0_43] : memref<4x8xbf16, #tpu.memory_space<vmem>>, vector<4x8xbf16>
    %cst_44 = arith.constant dense<0.000000e+00> : vector<64x8xf32>
    %44 = tpu.matmul %14, %43, %cst_44 {dimension_numbers = #tpu.dot_dimension_numbers<[1], [0], [0], [1], [0, 0, 1, 1], [], []>} : vector<64x4xbf16>, vector<4x8xbf16>, vector<64x8xf32> -> vector<64x8xf32>
    %cst_45 = arith.constant dense<0.000000e+00> : vector<8xf32>
    %45 = vector.multi_reduction <add>, %44, %cst_45 [0] : vector<64x8xf32> to vector<8xf32>
    %46 = vector.shape_cast %45 : vector<8xf32> to vector<1x8xf32>
    %47 = arith.mulf %44, %44 : vector<64x8xf32>
    %cst_46 = arith.constant dense<0.000000e+00> : vector<8xf32>
    %48 = vector.multi_reduction <add>, %47, %cst_46 [0] : vector<64x8xf32> to vector<8xf32>
    %49 = vector.shape_cast %48 : vector<8xf32> to vector<1x8xf32>
    %50 = tpu.concatenate %46, %49 in 0 : vector<1x8xf32>, vector<1x8xf32> -> vector<2x8xf32>
    %c0_47 = arith.constant 0 : index
    %c0_48 = arith.constant 0 : index
    %c0_49 = arith.constant 0 : index
    %51 = vector.load %arg7[%c0_47, %c0_48, %c0_49] : memref<1x2x8xf32, #tpu.memory_space<vmem>>, vector<1x2x8xf32>
    %52 = vector.shape_cast %51 : vector<1x2x8xf32> to vector<2x8xf32>
    %53 = vector.shape_cast %50 : vector<2x8xf32> to vector<1x2x8xf32>
    tpu.vector_store %arg7[%c0_47, %c0_48, %c0_49], %53 {strides = array<i32>} : memref<1x2x8xf32, #tpu.memory_space<vmem>>, vector<1x2x8xf32>,
    %54 = arith.truncf %44 : vector<64x8xf32> to vector<64x8xbf16>
    %c0_50 = arith.constant 0 : index
    %c0_51 = arith.constant 0 : index
    %c0_52 = arith.constant 0 : index
    %55 = vector.load %arg6[%c0_50, %c0_51, %c0_52] : memref<1x64x8xbf16, #tpu.memory_space<vmem>>, vector<1x64x8xbf16>
    %56 = vector.shape_cast %55 : vector<1x64x8xbf16> to vector<64x8xbf16>
    %57 = vector.shape_cast %54 : vector<64x8xbf16> to vector<1x64x8xbf16>
    tpu.vector_store %arg6[%c0_50, %c0_51, %c0_52], %57 {strides = array<i32>} : memref<1x64x8xbf16, #tpu.memory_space<vmem>>, vector<1x64x8xbf16>,
    return
  }
  func.func @transform_0(%arg0: i32) -> (i32, i32, i32, i32) {
    %c0_i32 = arith.constant 0 : i32
    %c0_i32_0 = arith.constant 0 : i32
    %c0_i32_1 = arith.constant 0 : i32
    %c0_i32_2 = arith.constant 0 : i32
    return %arg0, %c0_i32, %c0_i32_0, %c0_i32_1 : i32, i32, i32, i32
  }
  func.func @transform_1(%arg0: i32) -> (i32, i32) {
    %c0_i32 = arith.constant 0 : i32
    %c0_i32_0 = arith.constant 0 : i32
    %c0_i32_1 = arith.constant 0 : i32
    return %c0_i32, %c0_i32_0 : i32, i32
  }
  func.func @transform_2(%arg0: i32) -> (i32, i32) {
    %c0_i32 = arith.constant 0 : i32
    %c0_i32_0 = arith.constant 0 : i32
    %c0_i32_1 = arith.constant 0 : i32
    return %c0_i32, %c0_i32_0 : i32, i32
  }
  func.func @transform_3(%arg0: i32) -> (i32, i32, i32) {
    %c0_i32 = arith.constant 0 : i32
    %c0_i32_0 = arith.constant 0 : i32
    %c0_i32_1 = arith.constant 0 : i32
    return %arg0, %c0_i32, %c0_i32_0 : i32, i32, i32
  }
  func.func @transform_4(%arg0: i32) -> (i32, i32, i32) {
    %c0_i32 = arith.constant 0 : i32
    %c0_i32_0 = arith.constant 0 : i32
    %c0_i32_1 = arith.constant 0 : i32
    return %arg0, %c0_i32, %c0_i32_0 : i32, i32, i32
  }
  func.func @transform_5(%arg0: i32) -> (i32, i32, i32) {
    %c0_i32 = arith.constant 0 : i32
    %c0_i32_0 = arith.constant 0 : i32
    %c0_i32_1 = arith.constant 0 : i32
    return %arg0, %c0_i32, %c0_i32_0 : i32, i32, i32
  }
  func.func @transform_6(%arg0: i32) -> (i32, i32, i32) {
    %c0_i32 = arith.constant 0 : i32
    %c0_i32_0 = arith.constant 0 : i32
    %c0_i32_1 = arith.constant 0 : i32
    return %arg0, %c0_i32, %c0_i32_0 : i32, i32, i32
  }
}

module attributes {stable_mosaic.version = 11 : i64} {
  func.func @conv2_kernel(%arg0: i32, %arg1: memref<1x64x8xbf16, #tpu.memory_space<vmem>>, %arg2: memref<72x8xbf16, #tpu.memory_space<vmem>>, %arg3: memref<1x8xf32, #tpu.memory_space<vmem>>, %arg4: memref<1x8xf32, #tpu.memory_space<vmem>>, %arg5: memref<1x64x8xbf16, #tpu.memory_space<vmem>>, %arg6: memref<1x2x8xf32, #tpu.memory_space<vmem>>, %arg7: memref<10x10x8xbf16, #tpu.memory_space<vmem>>) attributes {dimension_semantics = [#tpu.dimension_semantics<parallel>], iteration_bounds = array<i64: 2>, scalar_prefetch = 0 : i64, scratch_operands = 1 : i64, tpu.core_type = #tpu.core_type<tc>, window_params = [{transform_indices = @transform_0, window_bounds = array<i64: 1, 64, 8>}, {pipeline_mode = #tpu.pipeline_mode<synchronous>, transform_indices = @transform_1, window_bounds = array<i64: 72, 8>}, {pipeline_mode = #tpu.pipeline_mode<synchronous>, transform_indices = @transform_2, window_bounds = array<i64: 1, 8>}, {pipeline_mode = #tpu.pipeline_mode<synchronous>, transform_indices = @transform_3, window_bounds = array<i64: 1, 8>}, {transform_indices = @transform_4, window_bounds = array<i64: 1, 64, 8>}, {transform_indices = @transform_5, window_bounds = array<i64: 1, 2, 8>}]} {
    %cst = arith.constant 0.000000e+00 : bf16
    %0 = vector.broadcast %cst : bf16 to vector<10x10x8xbf16>
    %c0 = arith.constant 0 : index
    %c0_0 = arith.constant 0 : index
    %c0_1 = arith.constant 0 : index
    %1 = vector.load %arg7[%c0, %c0_0, %c0_1] : memref<10x10x8xbf16, #tpu.memory_space<vmem>>, vector<10x10x8xbf16>
    tpu.vector_store %arg7[%c0, %c0_0, %c0_1], %0 {strides = array<i32>} : memref<10x10x8xbf16, #tpu.memory_space<vmem>>, vector<10x10x8xbf16>,
    %c0_2 = arith.constant 0 : index
    %c0_3 = arith.constant 0 : index
    %c0_4 = arith.constant 0 : index
    %2 = vector.load %arg1[%c0_2, %c0_3, %c0_4] : memref<1x64x8xbf16, #tpu.memory_space<vmem>>, vector<1x64x8xbf16>
    %3 = vector.shape_cast %2 : vector<1x64x8xbf16> to vector<64x8xbf16>
    %4 = arith.extf %3 : vector<64x8xbf16> to vector<64x8xf32>
    %c0_5 = arith.constant 0 : index
    %c0_6 = arith.constant 0 : index
    %5 = vector.load %arg3[%c0_5, %c0_6] : memref<1x8xf32, #tpu.memory_space<vmem>>, vector<1x8xf32>
    %6 = vector.broadcast %5 : vector<1x8xf32> to vector<64x8xf32>
    %7 = arith.mulf %4, %6 : vector<64x8xf32>
    %c0_7 = arith.constant 0 : index
    %c0_8 = arith.constant 0 : index
    %8 = vector.load %arg4[%c0_7, %c0_8] : memref<1x8xf32, #tpu.memory_space<vmem>>, vector<1x8xf32>
    %9 = vector.broadcast %8 : vector<1x8xf32> to vector<64x8xf32>
    %10 = arith.addf %7, %9 : vector<64x8xf32>
    %cst_9 = arith.constant 0.000000e+00 : f32
    %11 = vector.broadcast %cst_9 : f32 to vector<64x8xf32>
    %12 = arith.maximumf %10, %11 : vector<64x8xf32>
    %13 = vector.shape_cast %12 : vector<64x8xf32> to vector<8x8x8xf32>
    %14 = arith.truncf %13 : vector<8x8x8xf32> to vector<8x8x8xbf16>
    %c1 = arith.constant 1 : index
    %c1_10 = arith.constant 1 : index
    %c0_11 = arith.constant 0 : index
    %15 = vector.load %arg7[%c1, %c1_10, %c0_11] : memref<10x10x8xbf16, #tpu.memory_space<vmem>>, vector<8x8x8xbf16>
    tpu.vector_store %arg7[%c1, %c1_10, %c0_11], %14 {strides = array<i32>} : memref<10x10x8xbf16, #tpu.memory_space<vmem>>, vector<8x8x8xbf16>,
    %c0_12 = arith.constant 0 : index
    %c0_13 = arith.constant 0 : index
    %c0_14 = arith.constant 0 : index
    %16 = vector.load %arg7[%c0_12, %c0_13, %c0_14] : memref<10x10x8xbf16, #tpu.memory_space<vmem>>, vector<8x8x8xbf16>
    %17 = vector.shape_cast %16 : vector<8x8x8xbf16> to vector<64x8xbf16>
    %c0_15 = arith.constant 0 : index
    %c1_16 = arith.constant 1 : index
    %c0_17 = arith.constant 0 : index
    %18 = vector.load %arg7[%c0_15, %c1_16, %c0_17] : memref<10x10x8xbf16, #tpu.memory_space<vmem>>, vector<8x8x8xbf16>
    %19 = vector.shape_cast %18 : vector<8x8x8xbf16> to vector<64x8xbf16>
    %c0_18 = arith.constant 0 : index
    %c2 = arith.constant 2 : index
    %c0_19 = arith.constant 0 : index
    %20 = vector.load %arg7[%c0_18, %c2, %c0_19] : memref<10x10x8xbf16, #tpu.memory_space<vmem>>, vector<8x8x8xbf16>
    %21 = vector.shape_cast %20 : vector<8x8x8xbf16> to vector<64x8xbf16>
    %c1_20 = arith.constant 1 : index
    %c0_21 = arith.constant 0 : index
    %c0_22 = arith.constant 0 : index
    %22 = vector.load %arg7[%c1_20, %c0_21, %c0_22] : memref<10x10x8xbf16, #tpu.memory_space<vmem>>, vector<8x8x8xbf16>
    %23 = vector.shape_cast %22 : vector<8x8x8xbf16> to vector<64x8xbf16>
    %c1_23 = arith.constant 1 : index
    %c1_24 = arith.constant 1 : index
    %c0_25 = arith.constant 0 : index
    %24 = vector.load %arg7[%c1_23, %c1_24, %c0_25] : memref<10x10x8xbf16, #tpu.memory_space<vmem>>, vector<8x8x8xbf16>
    %25 = vector.shape_cast %24 : vector<8x8x8xbf16> to vector<64x8xbf16>
    %c1_26 = arith.constant 1 : index
    %c2_27 = arith.constant 2 : index
    %c0_28 = arith.constant 0 : index
    %26 = vector.load %arg7[%c1_26, %c2_27, %c0_28] : memref<10x10x8xbf16, #tpu.memory_space<vmem>>, vector<8x8x8xbf16>
    %27 = vector.shape_cast %26 : vector<8x8x8xbf16> to vector<64x8xbf16>
    %c2_29 = arith.constant 2 : index
    %c0_30 = arith.constant 0 : index
    %c0_31 = arith.constant 0 : index
    %28 = vector.load %arg7[%c2_29, %c0_30, %c0_31] : memref<10x10x8xbf16, #tpu.memory_space<vmem>>, vector<8x8x8xbf16>
    %29 = vector.shape_cast %28 : vector<8x8x8xbf16> to vector<64x8xbf16>
    %c2_32 = arith.constant 2 : index
    %c1_33 = arith.constant 1 : index
    %c0_34 = arith.constant 0 : index
    %30 = vector.load %arg7[%c2_32, %c1_33, %c0_34] : memref<10x10x8xbf16, #tpu.memory_space<vmem>>, vector<8x8x8xbf16>
    %31 = vector.shape_cast %30 : vector<8x8x8xbf16> to vector<64x8xbf16>
    %c2_35 = arith.constant 2 : index
    %c2_36 = arith.constant 2 : index
    %c0_37 = arith.constant 0 : index
    %32 = vector.load %arg7[%c2_35, %c2_36, %c0_37] : memref<10x10x8xbf16, #tpu.memory_space<vmem>>, vector<8x8x8xbf16>
    %33 = vector.shape_cast %32 : vector<8x8x8xbf16> to vector<64x8xbf16>
    %34 = tpu.concatenate %17, %19, %21, %23, %25, %27, %29, %31, %33 in 1 : vector<64x8xbf16>, vector<64x8xbf16>, vector<64x8xbf16>, vector<64x8xbf16>, vector<64x8xbf16>, vector<64x8xbf16>, vector<64x8xbf16>, vector<64x8xbf16>, vector<64x8xbf16> -> vector<64x72xbf16>
    %c0_38 = arith.constant 0 : index
    %c0_39 = arith.constant 0 : index
    %35 = vector.load %arg2[%c0_38, %c0_39] : memref<72x8xbf16, #tpu.memory_space<vmem>>, vector<72x8xbf16>
    %cst_40 = arith.constant dense<0.000000e+00> : vector<64x8xf32>
    %36 = tpu.matmul %34, %35, %cst_40 {dimension_numbers = #tpu.dot_dimension_numbers<[1], [0], [0], [1], [0, 0, 1, 1], [], []>} : vector<64x72xbf16>, vector<72x8xbf16>, vector<64x8xf32> -> vector<64x8xf32>
    %cst_41 = arith.constant dense<0.000000e+00> : vector<8xf32>
    %37 = vector.multi_reduction <add>, %36, %cst_41 [0] : vector<64x8xf32> to vector<8xf32>
    %38 = vector.shape_cast %37 : vector<8xf32> to vector<1x8xf32>
    %39 = arith.mulf %36, %36 : vector<64x8xf32>
    %cst_42 = arith.constant dense<0.000000e+00> : vector<8xf32>
    %40 = vector.multi_reduction <add>, %39, %cst_42 [0] : vector<64x8xf32> to vector<8xf32>
    %41 = vector.shape_cast %40 : vector<8xf32> to vector<1x8xf32>
    %42 = tpu.concatenate %38, %41 in 0 : vector<1x8xf32>, vector<1x8xf32> -> vector<2x8xf32>
    %c0_43 = arith.constant 0 : index
    %c0_44 = arith.constant 0 : index
    %c0_45 = arith.constant 0 : index
    %43 = vector.load %arg6[%c0_43, %c0_44, %c0_45] : memref<1x2x8xf32, #tpu.memory_space<vmem>>, vector<1x2x8xf32>
    %44 = vector.shape_cast %43 : vector<1x2x8xf32> to vector<2x8xf32>
    %45 = vector.shape_cast %42 : vector<2x8xf32> to vector<1x2x8xf32>
    tpu.vector_store %arg6[%c0_43, %c0_44, %c0_45], %45 {strides = array<i32>} : memref<1x2x8xf32, #tpu.memory_space<vmem>>, vector<1x2x8xf32>,
    %46 = arith.truncf %36 : vector<64x8xf32> to vector<64x8xbf16>
    %c0_46 = arith.constant 0 : index
    %c0_47 = arith.constant 0 : index
    %c0_48 = arith.constant 0 : index
    %47 = vector.load %arg5[%c0_46, %c0_47, %c0_48] : memref<1x64x8xbf16, #tpu.memory_space<vmem>>, vector<1x64x8xbf16>
    %48 = vector.shape_cast %47 : vector<1x64x8xbf16> to vector<64x8xbf16>
    %49 = vector.shape_cast %46 : vector<64x8xbf16> to vector<1x64x8xbf16>
    tpu.vector_store %arg5[%c0_46, %c0_47, %c0_48], %49 {strides = array<i32>} : memref<1x64x8xbf16, #tpu.memory_space<vmem>>, vector<1x64x8xbf16>,
    return
  }
  func.func @transform_0(%arg0: i32) -> (i32, i32, i32) {
    %c0_i32 = arith.constant 0 : i32
    %c0_i32_0 = arith.constant 0 : i32
    %c0_i32_1 = arith.constant 0 : i32
    return %arg0, %c0_i32, %c0_i32_0 : i32, i32, i32
  }
  func.func @transform_1(%arg0: i32) -> (i32, i32) {
    %c0_i32 = arith.constant 0 : i32
    %c0_i32_0 = arith.constant 0 : i32
    %c0_i32_1 = arith.constant 0 : i32
    return %c0_i32, %c0_i32_0 : i32, i32
  }
  func.func @transform_2(%arg0: i32) -> (i32, i32) {
    %c0_i32 = arith.constant 0 : i32
    %c0_i32_0 = arith.constant 0 : i32
    %c0_i32_1 = arith.constant 0 : i32
    return %c0_i32, %c0_i32_0 : i32, i32
  }
  func.func @transform_3(%arg0: i32) -> (i32, i32) {
    %c0_i32 = arith.constant 0 : i32
    %c0_i32_0 = arith.constant 0 : i32
    %c0_i32_1 = arith.constant 0 : i32
    return %c0_i32, %c0_i32_0 : i32, i32
  }
  func.func @transform_4(%arg0: i32) -> (i32, i32, i32) {
    %c0_i32 = arith.constant 0 : i32
    %c0_i32_0 = arith.constant 0 : i32
    %c0_i32_1 = arith.constant 0 : i32
    return %arg0, %c0_i32, %c0_i32_0 : i32, i32, i32
  }
  func.func @transform_5(%arg0: i32) -> (i32, i32, i32) {
    %c0_i32 = arith.constant 0 : i32
    %c0_i32_0 = arith.constant 0 : i32
    %c0_i32_1 = arith.constant 0 : i32
    return %arg0, %c0_i32, %c0_i32_0 : i32, i32, i32
  }
}

module attributes {stable_mosaic.version = 11 : i64} {
  func.func @tail_proj_kernel(%arg0: i32, %arg1: memref<1x64x8xbf16, #tpu.memory_space<vmem>>, %arg2: memref<1x8xf32, #tpu.memory_space<vmem>>, %arg3: memref<1x8xf32, #tpu.memory_space<vmem>>, %arg4: memref<1x64x8xbf16, #tpu.memory_space<vmem>>, %arg5: memref<1x8xf32, #tpu.memory_space<vmem>>, %arg6: memref<1x8xf32, #tpu.memory_space<vmem>>, %arg7: memref<1x8x64xf32, #tpu.memory_space<vmem>>) attributes {dimension_semantics = [#tpu.dimension_semantics<parallel>], iteration_bounds = array<i64: 2>, scalar_prefetch = 0 : i64, scratch_operands = 0 : i64, tpu.core_type = #tpu.core_type<tc>, window_params = [{transform_indices = @transform_0, window_bounds = array<i64: 1, 64, 8>}, {pipeline_mode = #tpu.pipeline_mode<synchronous>, transform_indices = @transform_1, window_bounds = array<i64: 1, 8>}, {pipeline_mode = #tpu.pipeline_mode<synchronous>, transform_indices = @transform_2, window_bounds = array<i64: 1, 8>}, {transform_indices = @transform_3, window_bounds = array<i64: 1, 64, 8>}, {pipeline_mode = #tpu.pipeline_mode<synchronous>, transform_indices = @transform_4, window_bounds = array<i64: 1, 8>}, {pipeline_mode = #tpu.pipeline_mode<synchronous>, transform_indices = @transform_5, window_bounds = array<i64: 1, 8>}, {transform_indices = @transform_6, window_bounds = array<i64: 1, 8, 64>}]} {
    %c0 = arith.constant 0 : index
    %c0_0 = arith.constant 0 : index
    %c0_1 = arith.constant 0 : index
    %0 = vector.load %arg1[%c0, %c0_0, %c0_1] : memref<1x64x8xbf16, #tpu.memory_space<vmem>>, vector<1x64x8xbf16>
    %1 = vector.shape_cast %0 : vector<1x64x8xbf16> to vector<64x8xbf16>
    %2 = arith.extf %1 : vector<64x8xbf16> to vector<64x8xf32>
    %c0_2 = arith.constant 0 : index
    %c0_3 = arith.constant 0 : index
    %3 = vector.load %arg2[%c0_2, %c0_3] : memref<1x8xf32, #tpu.memory_space<vmem>>, vector<1x8xf32>
    %4 = vector.broadcast %3 : vector<1x8xf32> to vector<64x8xf32>
    %5 = arith.mulf %2, %4 : vector<64x8xf32>
    %c0_4 = arith.constant 0 : index
    %c0_5 = arith.constant 0 : index
    %6 = vector.load %arg3[%c0_4, %c0_5] : memref<1x8xf32, #tpu.memory_space<vmem>>, vector<1x8xf32>
    %7 = vector.broadcast %6 : vector<1x8xf32> to vector<64x8xf32>
    %8 = arith.addf %5, %7 : vector<64x8xf32>
    %c0_6 = arith.constant 0 : index
    %c0_7 = arith.constant 0 : index
    %c0_8 = arith.constant 0 : index
    %9 = vector.load %arg4[%c0_6, %c0_7, %c0_8] : memref<1x64x8xbf16, #tpu.memory_space<vmem>>, vector<1x64x8xbf16>
    %10 = vector.shape_cast %9 : vector<1x64x8xbf16> to vector<64x8xbf16>
    %11 = arith.extf %10 : vector<64x8xbf16> to vector<64x8xf32>
    %c0_9 = arith.constant 0 : index
    %c0_10 = arith.constant 0 : index
    %12 = vector.load %arg5[%c0_9, %c0_10] : memref<1x8xf32, #tpu.memory_space<vmem>>, vector<1x8xf32>
    %13 = vector.broadcast %12 : vector<1x8xf32> to vector<64x8xf32>
    %14 = arith.mulf %11, %13 : vector<64x8xf32>
    %c0_11 = arith.constant 0 : index
    %c0_12 = arith.constant 0 : index
    %15 = vector.load %arg6[%c0_11, %c0_12] : memref<1x8xf32, #tpu.memory_space<vmem>>, vector<1x8xf32>
    %16 = vector.broadcast %15 : vector<1x8xf32> to vector<64x8xf32>
    %17 = arith.addf %14, %16 : vector<64x8xf32>
    %18 = arith.addf %8, %17 : vector<64x8xf32>
    %cst = arith.constant 0.000000e+00 : f32
    %19 = vector.broadcast %cst : f32 to vector<64x8xf32>
    %20 = arith.maximumf %18, %19 : vector<64x8xf32>
    %21 = tpu.transpose %20, [1, 0] : vector<64x8xf32> -> vector<8x64xf32>
    %c0_13 = arith.constant 0 : index
    %c0_14 = arith.constant 0 : index
    %c0_15 = arith.constant 0 : index
    %22 = vector.load %arg7[%c0_13, %c0_14, %c0_15] : memref<1x8x64xf32, #tpu.memory_space<vmem>>, vector<1x8x64xf32>
    %23 = vector.shape_cast %22 : vector<1x8x64xf32> to vector<8x64xf32>
    %24 = vector.shape_cast %21 : vector<8x64xf32> to vector<1x8x64xf32>
    tpu.vector_store %arg7[%c0_13, %c0_14, %c0_15], %24 {strides = array<i32>} : memref<1x8x64xf32, #tpu.memory_space<vmem>>, vector<1x8x64xf32>,
    return
  }
  func.func @transform_0(%arg0: i32) -> (i32, i32, i32) {
    %c0_i32 = arith.constant 0 : i32
    %c0_i32_0 = arith.constant 0 : i32
    %c0_i32_1 = arith.constant 0 : i32
    return %arg0, %c0_i32, %c0_i32_0 : i32, i32, i32
  }
  func.func @transform_1(%arg0: i32) -> (i32, i32) {
    %c0_i32 = arith.constant 0 : i32
    %c0_i32_0 = arith.constant 0 : i32
    %c0_i32_1 = arith.constant 0 : i32
    return %c0_i32, %c0_i32_0 : i32, i32
  }
  func.func @transform_2(%arg0: i32) -> (i32, i32) {
    %c0_i32 = arith.constant 0 : i32
    %c0_i32_0 = arith.constant 0 : i32
    %c0_i32_1 = arith.constant 0 : i32
    return %c0_i32, %c0_i32_0 : i32, i32
  }
  func.func @transform_3(%arg0: i32) -> (i32, i32, i32) {
    %c0_i32 = arith.constant 0 : i32
    %c0_i32_0 = arith.constant 0 : i32
    %c0_i32_1 = arith.constant 0 : i32
    return %arg0, %c0_i32, %c0_i32_0 : i32, i32, i32
  }
  func.func @transform_4(%arg0: i32) -> (i32, i32) {
    %c0_i32 = arith.constant 0 : i32
    %c0_i32_0 = arith.constant 0 : i32
    %c0_i32_1 = arith.constant 0 : i32
    return %c0_i32, %c0_i32_0 : i32, i32
  }
  func.func @transform_5(%arg0: i32) -> (i32, i32) {
    %c0_i32 = arith.constant 0 : i32
    %c0_i32_0 = arith.constant 0 : i32
    %c0_i32_1 = arith.constant 0 : i32
    return %c0_i32, %c0_i32_0 : i32, i32
  }
  func.func @transform_6(%arg0: i32) -> (i32, i32, i32) {
    %c0_i32 = arith.constant 0 : i32
    %c0_i32_0 = arith.constant 0 : i32
    %c0_i32_1 = arith.constant 0 : i32
    return %arg0, %c0_i32, %c0_i32_0 : i32, i32, i32
  }
}

</mosaic_0001>

<llo_original>
// kernel: _basic_block_fwd.5
$region0: #{_basic_block_fwd.5}
  #allocation0 [shape = 'u32[]', space=smem, size = 0x4, offset = 0x4, fixed_abs, tag = 'smem constant byte address 0x4 - core index']
  #allocation1 [shape = 'u32[144,128]{1,0:T(1,128)}', space=vmem, size = 0x12000, scoped, tag = 'internal scratch']
  %s0 = inlined_call_operand.vmem [shape: bf16[2,64,8], index: 0, kind: input, shape index: {}]
  %s1 = inlined_call_operand.vmem [shape: f32[1,8], index: 1, kind: input, shape index: {}]
  %s2 = inlined_call_operand.vmem [shape: f32[1,8], index: 2, kind: input, shape index: {}]
  %s3 = inlined_call_operand.vmem [shape: bf16[2,64,8], index: 3, kind: input, shape index: {}]
  %s4 = inlined_call_operand.vmem [shape: f32[1,8], index: 4, kind: input, shape index: {}]
  %s5 = inlined_call_operand.vmem [shape: f32[1,8], index: 5, kind: input, shape index: {}]
  %s6 = inlined_call_operand.vmem [shape: f32[2,8,64], index: 6, kind: output, shape index: {}]
  %s7 = sld [smem:[#allocation0]]
  $region57: #{_basic_block_fwd.5} parent=0
    _
  %s9 = ssub.s32 1, %s7
  %s10 = scalar_select 0, %s9, %s7
  loop: start=0, step=1, limit=4
  $region2: #{_basic_block_fwd.5} parent=0 // loop_pre_header
    _
  $region3: #{_basic_block_fwd.5} parent=0 // loop_header
    %s12 = sphi 0, %s16
    %p13 = scmp.ge.s32.totalorder %s12, 4
    %s22 = sphi 0, %s24
    %s25 = sphi 0, %s22
    %s26 = sphi 0, %s25
    %s42 = sphi 0, %s26
    %s46 = sphi 0, %s46
    %s48 = sphi 0, %s46
    %s49 = sphi 0, %s48
    %s63 = sphi 0, %s49
    %s67 = sphi 0, %s67
    %s69 = sphi 0, %s67
    %s70 = sphi 0, %s69
    %s84 = sphi 0, %s70
    %s90 = sphi 0, %s92
    %s93 = sphi 0, %s90
    %s94 = sphi 0, %s93
    %s110 = sphi 0, %s94
    %s114 = sphi 0, %s114
    %s116 = sphi 0, %s114
    %s117 = sphi 0, %s116
    %s131 = sphi 0, %s117
    %s135 = sphi 0, %s135
    %s137 = sphi 0, %s135
    %s138 = sphi 0, %s137
    %s152 = sphi 0, %s138
    %s158 = sphi 0, %s160
    %s161 = sphi 0, %s158
    %s162 = sphi 0, %s161
    %s178 = sphi 0, %s162
  $region4: #{_basic_block_fwd.5} parent=0 // loop_header_branch
    %15 = sbr.rel (%p13) target = $region8
  $region5: #{_basic_block_fwd.5} parent=0 // loop_body
    %s17 = ssub.s32 %s12, 1
    %s18 = ssub.s32 %s12, 2
    %s19 = sadd.s32 %s12, 1
    %s20 = ssub.s32 %s12, %s19
    %p21 = scmp.eq.s32.totalorder %s20, 0
    %s23 = sadd.s32 %s22, 1
    %s24 = scalar_select %p21, %s22, %s23
    %p27 = pneg %p21
    %p28 = scmp.eq.s32.totalorder %s12, 1
    %p29 = por %p27, %p28
    %p30 = scmp.ne.s32.totalorder %s22, %s25
    %p31 = scmp.eq.s32.totalorder %s12, 0
    %p32 = por %p30, %p31
    %p33 = scmp.ne.s32.totalorder %s22, %s25
    %p34 = scmp.eq.s32.totalorder %s17, 1
    %p35 = por %p33, %p34
    %p36 = scmp.ne.s32.totalorder %s25, %s26
    %p37 = scmp.eq.s32.totalorder %s17, 0
    %p38 = por %p36, %p37
    %p39 = scmp.ne.s32.totalorder %s25, %s26
    %p40 = scmp.eq.s32.totalorder %s18, 1
    %p41 = por %p39, %p40
    %p43 = scmp.ne.s32.totalorder %s26, %s42
    %p44 = scmp.eq.s32.totalorder %s18, 0
    %p45 = por %p43, %p44
    %s47 = sadd.s32 %s46, 1
    %p50 = scmp.eq.s32.totalorder %s12, 1
    %p51 = scmp.ne.s32.totalorder %s46, %s48
    %p52 = scmp.eq.s32.totalorder %s12, 0
    %p53 = por %p51, %p52
    %p54 = scmp.ne.s32.totalorder %s46, %s48
    %p55 = scmp.eq.s32.totalorder %s17, 1
    %p56 = por %p54, %p55
    %p57 = scmp.ne.s32.totalorder %s48, %s49
    %p58 = scmp.eq.s32.totalorder %s17, 0
    %p59 = por %p57, %p58
    %p60 = scmp.ne.s32.totalorder %s48, %s49
    %p61 = scmp.eq.s32.totalorder %s18, 1
    %p62 = por %p60, %p61
    %p64 = scmp.ne.s32.totalorder %s49, %s63
    %p65 = scmp.eq.s32.totalorder %s18, 0
    %p66 = por %p64, %p65
    %s68 = sadd.s32 %s67, 1
    %p71 = scmp.eq.s32.totalorder %s12, 1
    %p72 = scmp.ne.s32.totalorder %s67, %s69
    %p73 = scmp.eq.s32.totalorder %s12, 0
    %p74 = por %p72, %p73
    %p75 = scmp.ne.s32.totalorder %s67, %s69
    %p76 = scmp.eq.s32.totalorder %s17, 1
    %p77 = por %p75, %p76
    %p78 = scmp.ne.s32.totalorder %s69, %s70
    %p79 = scmp.eq.s32.totalorder %s17, 0
    %p80 = por %p78, %p79
    %p81 = scmp.ne.s32.totalorder %s69, %s70
    %p82 = scmp.eq.s32.totalorder %s18, 1
    %p83 = por %p81, %p82
    %p85 = scmp.ne.s32.totalorder %s70, %s84
    %p86 = scmp.eq.s32.totalorder %s18, 0
    %p87 = por %p85, %p86
    %s88 = ssub.s32 %s12, %s19
    %p89 = scmp.eq.s32.totalorder %s88, 0
    %s91 = sadd.s32 %s90, 1
    %s92 = scalar_select %p89, %s90, %s91
    %p95 = pneg %p89
    %p96 = scmp.eq.s32.totalorder %s12, 1
    %p97 = por %p95, %p96
    %p98 = scmp.ne.s32.totalorder %s90, %s93
    %p99 = scmp.eq.s32.totalorder %s12, 0
    %p100 = por %p98, %p99
    %p101 = scmp.ne.s32.totalorder %s90, %s93
    %p102 = scmp.eq.s32.totalorder %s17, 1
    %p103 = por %p101, %p102
    %p104 = scmp.ne.s32.totalorder %s93, %s94
    %p105 = scmp.eq.s32.totalorder %s17, 0
    %p106 = por %p104, %p105
    %p107 = scmp.ne.s32.totalorder %s93, %s94
    %p108 = scmp.eq.s32.totalorder %s18, 1
    %p109 = por %p107, %p108
    %p111 = scmp.ne.s32.totalorder %s94, %s110
    %p112 = scmp.eq.s32.totalorder %s18, 0
    %p113 = por %p111, %p112
    %s115 = sadd.s32 %s114, 1
    %p118 = scmp.eq.s32.totalorder %s12, 1
    %p119 = scmp.ne.s32.totalorder %s114, %s116
    %p120 = scmp.eq.s32.totalorder %s12, 0
    %p121 = por %p119, %p120
    %p122 = scmp.ne.s32.totalorder %s114, %s116
    %p123 = scmp.eq.s32.totalorder %s17, 1
    %p124 = por %p122, %p123
    %p125 = scmp.ne.s32.totalorder %s116, %s117
    %p126 = scmp.eq.s32.totalorder %s17, 0
    %p127 = por %p125, %p126
    %p128 = scmp.ne.s32.totalorder %s116, %s117
    %p129 = scmp.eq.s32.totalorder %s18, 1
    %p130 = por %p128, %p129
    %p132 = scmp.ne.s32.totalorder %s117, %s131
    %p133 = scmp.eq.s32.totalorder %s18, 0
    %p134 = por %p132, %p133
    %s136 = sadd.s32 %s135, 1
    %p139 = scmp.eq.s32.totalorder %s12, 1
    %p140 = scmp.ne.s32.totalorder %s135, %s137
    %p141 = scmp.eq.s32.totalorder %s12, 0
    %p142 = por %p140, %p141
    %p143 = scmp.ne.s32.totalorder %s135, %s137
    %p144 = scmp.eq.s32.totalorder %s17, 1
    %p145 = por %p143, %p144
    %p146 = scmp.ne.s32.totalorder %s137, %s138
    %p147 = scmp.eq.s32.totalorder %s17, 0
    %p148 = por %p146, %p147
    %p149 = scmp.ne.s32.totalorder %s137, %s138
    %p150 = scmp.eq.s32.totalorder %s18, 1
    %p151 = por %p149, %p150
    %p153 = scmp.ne.s32.totalorder %s138, %s152
    %p154 = scmp.eq.s32.totalorder %s18, 0
    %p155 = por %p153, %p154
    %s156 = ssub.s32 %s12, %s19
    %p157 = scmp.eq.s32.totalorder %s156, 0
    %s159 = sadd.s32 %s158, 1
    %s160 = scalar_select %p157, %s158, %s159
    %p163 = pneg %p157
    %p164 = scmp.eq.s32.totalorder %s12, 1
    %p165 = por %p163, %p164
    %p166 = scmp.ne.s32.totalorder %s158, %s161
    %p167 = scmp.eq.s32.totalorder %s12, 0
    %p168 = por %p166, %p167
    %p169 = scmp.ne.s32.totalorder %s158, %s161
    %p170 = scmp.eq.s32.totalorder %s17, 1
    %p171 = por %p169, %p170
    %p172 = scmp.ne.s32.totalorder %s161, %s162
    %p173 = scmp.eq.s32.totalorder %s17, 0
    %p174 = por %p172, %p173
    %p175 = scmp.ne.s32.totalorder %s161, %s162
    %p176 = scmp.eq.s32.totalorder %s18, 1
    %p177 = por %p175, %p176
    %p179 = scmp.ne.s32.totalorder %s162, %s178
    %p180 = scmp.eq.s32.totalorder %s18, 0
    %p181 = por %p179, %p180
    %p182 = scmp.le.s32.totalorder 1, %s12
    %p183 = scmp.lt.s32.totalorder %s12, 3
    %p184 = pnand %p182, %p183
    %p185 = pneg %p184
    // Predicated region
    $region9: #{_basic_block_fwd.5} parent=5 // pred_check
      _
    $region10: #{_basic_block_fwd.5} parent=5 // pred_check_branch
      %187 = sbr.rel (%p184) target = $region12
    $region11: #{_basic_block_fwd.5} parent=5 // pred_region
      %s188 = ssub.s32 %s12, 1
      // Predicated region
      $region13: #{_basic_block_fwd.5} parent=11 // pred_check
        %p189 = pneg %p59
      $region14: #{_basic_block_fwd.5} parent=11 // pred_check_branch
        %191 = sbr.rel (%p189) target = $region16
      $region15: #{_basic_block_fwd.5} parent=11 // pred_region
        _
      $region16: #{_basic_block_fwd.5} parent=11 // pred_fallthru
        _
      // Predicated region
      $region17: #{_basic_block_fwd.5} parent=11 // pred_check
        %p192 = pneg %p80
      $region18: #{_basic_block_fwd.5} parent=11 // pred_check_branch
        %194 = sbr.rel (%p192) target = $region20
      $region19: #{_basic_block_fwd.5} parent=11 // pred_region
        _
      $region20: #{_basic_block_fwd.5} parent=11 // pred_fallthru
        _
      // Predicated region
      $region21: #{_basic_block_fwd.5} parent=11 // pred_check
        %p195 = pneg %p127
      $region22: #{_basic_block_fwd.5} parent=11 // pred_check_branch
        %197 = sbr.rel (%p195) target = $region24
      $region23: #{_basic_block_fwd.5} parent=11 // pred_region
        _
      $region24: #{_basic_block_fwd.5} parent=11 // pred_fallthru
        _
      // Predicated region
      $region25: #{_basic_block_fwd.5} parent=11 // pred_check
        %p198 = pneg %p148
      $region26: #{_basic_block_fwd.5} parent=11 // pred_check_branch
        %200 = sbr.rel (%p198) target = $region28
      $region27: #{_basic_block_fwd.5} parent=11 // pred_region
        _
      $region28: #{_basic_block_fwd.5} parent=11 // pred_fallthru
        _
    $region12: #{_basic_block_fwd.5} parent=5 // pred_fallthru
      _
    %p201 = scmp.lt.s32.totalorder %s12, 2
    // Predicated region
    $region29: #{_basic_block_fwd.5} parent=5 // pred_check
      %p202 = pneg %p201
    $region30: #{_basic_block_fwd.5} parent=5 // pred_check_branch
      %204 = sbr.rel (%p202) target = $region32
    $region31: #{_basic_block_fwd.5} parent=5 // pred_region
      // Predicated region
      $region33: #{_basic_block_fwd.5} parent=31 // pred_check
        %p205 = pneg %p32
      $region34: #{_basic_block_fwd.5} parent=31 // pred_check_branch
        %207 = sbr.rel (%p205) target = $region36
      $region35: #{_basic_block_fwd.5} parent=31 // pred_region
        %p208 = scmp.lt.s32.totalorder %s12, 1
        %s209 = scalar_select %p208, %s12, 1
        %s210 = smul.addr %s209, 8
        %s211 = smul.addr %s210, 4
        %s212 = scalar_lea.vmem %s0, %s211
      $region36: #{_basic_block_fwd.5} parent=31 // pred_fallthru
        _
      // Predicated region
      $region37: #{_basic_block_fwd.5} parent=31 // pred_check
        %p213 = pneg %p100
      $region38: #{_basic_block_fwd.5} parent=31 // pred_check_branch
        %215 = sbr.rel (%p213) target = $region40
      $region39: #{_basic_block_fwd.5} parent=31 // pred_region
        %p216 = scmp.lt.s32.totalorder %s12, 1
        %s217 = scalar_select %p216, %s12, 1
        %s218 = smul.addr %s217, 8
        %s219 = smul.addr %s218, 4
        %s220 = scalar_lea.vmem %s3, %s219
      $region40: #{_basic_block_fwd.5} parent=31 // pred_fallthru
        _
    $region32: #{_basic_block_fwd.5} parent=5 // pred_fallthru
      _
    %p221 = scmp.le.s32.totalorder 1, %s12
    %p222 = scmp.lt.s32.totalorder %s12, 3
    %p223 = pnand %p221, %p222
    %p224 = pneg %p223
    // Predicated region
    $region41: #{_basic_block_fwd.5} parent=5 // pred_check
      _
    $region42: #{_basic_block_fwd.5} parent=5 // pred_check_branch
      %226 = sbr.rel (%p223) target = $region44
    $region43: #{_basic_block_fwd.5} parent=5 // pred_region
      %s227 = ssub.s32 %s12, 1
      %p228 = scmp.lt.s32.totalorder %s17, 1
      %s229 = scalar_select %p228, %s17, 1
      %s230 = smul.addr %s229, 8
      %s231 = smul.addr %s230, 4
      %s232 = scalar_lea.vmem %s0, %s231
      %p233 = pneg %p38
      %p234 = pneg %p35
      %p235 = pneg %p59
      %p236 = pneg %p56
      %p237 = pneg %p80
      %p238 = pneg %p77
      %p239 = scmp.lt.s32.totalorder %s17, 1
      %s240 = scalar_select %p239, %s17, 1
      %s241 = smul.addr %s240, 8
      %s242 = smul.addr %s241, 4
      %s243 = scalar_lea.vmem %s3, %s242
      %p244 = pneg %p106
      %p245 = pneg %p103
      %p246 = pneg %p127
      %p247 = pneg %p124
      %p248 = pneg %p148
      %p249 = pneg %p145
      %p250 = pneg %p174
      %p251 = pneg %p171
      %p252 = scmp.lt.s32.totalorder %s17, 1
      %s253 = scalar_select %p252, %s17, 1
      %s254 = smul.addr %s253, 8
      %s255 = scalar_lea.vmem %s6, %s254
      %p256 = scmp.lt.s32.totalorder %s17, 1
      %s257 = scalar_select %p256, %s17, 1
      %s258 = smul.addr %s257, 8
      %s259 = smul.addr %s258, 4
      %s260 = scalar_lea.vmem %s0, %s259
      %p261 = scmp.lt.s32.totalorder %s17, 1
      %s262 = scalar_select %p261, %s17, 1
      %s263 = smul.addr %s262, 8
      %s264 = smul.addr %s263, 4
      %s265 = scalar_lea.vmem %s3, %s264
      %p266 = scmp.lt.s32.totalorder %s17, 1
      %s267 = scalar_select %p266, %s17, 1
      %s268 = smul.addr %s267, 8
      %s269 = scalar_lea.vmem %s6, %s268
      %v270 = vld [vmem:[%s260] sm:$0xf]
      %v271 = vld [vmem:[%s260 + $0x4] sm:$0xf]
      %v272 = vld [vmem:[%s260 + $0x8] sm:$0xf]
      %v273 = vld [vmem:[%s260 + $0xc] sm:$0xf]
      %v274 = vld [vmem:[%s260 + $0x10] sm:$0xf]
      %v275 = vld [vmem:[%s260 + $0x14] sm:$0xf]
      %v276 = vld [vmem:[%s260 + $0x18] sm:$0xf]
      %v277 = vld [vmem:[%s260 + $0x1c] sm:$0xf]
      %v278 = vunpack.c.l.bf16 %v270
      %v279 = vunpack.c.l.bf16 %v271
      %v280 = vunpack.c.l.bf16 %v272
      %v281 = vunpack.c.l.bf16 %v273
      %v282 = vunpack.c.l.bf16 %v274
      %v283 = vunpack.c.l.bf16 %v275
      %v284 = vunpack.c.l.bf16 %v276
      %v285 = vunpack.c.l.bf16 %v277
      %v286 = vld [vmem:[%s1] sm:$0x1]
      %v288 = vlaneseq
      %v289 = vshrl.u32 %v288, 7
      %v290 = vsub.s32 0, %v289
      %v291 = vrot.slane %v286, %v290
      %v293 = vmul.f32 %v278, %v291
      %v294 = vmul.f32 %v279, %v291
      %v295 = vmul.f32 %v280, %v291
      %v296 = vmul.f32 %v281, %v291
      %v297 = vmul.f32 %v282, %v291
      %v298 = vmul.f32 %v283, %v291
      %v299 = vmul.f32 %v284, %v291
      %v300 = vmul.f32 %v285, %v291
      %v301 = vld [vmem:[%s2] sm:$0x1]
      %v303 = vlaneseq
      %v304 = vshrl.u32 %v303, 7
      %v305 = vsub.s32 0, %v304
      %v306 = vrot.slane %v301, %v305
      %v308 = vadd.f32 %v293, %v306
      %v309 = vadd.f32 %v294, %v306
      %v310 = vadd.f32 %v295, %v306
      %v311 = vadd.f32 %v296, %v306
      %v312 = vadd.f32 %v297, %v306
      %v313 = vadd.f32 %v298, %v306
      %v314 = vadd.f32 %v299, %v306
      %v315 = vadd.f32 %v300, %v306
      %v316 = vld [vmem:[%s265] sm:$0xf]
      %v317 = vld [vmem:[%s265 + $0x4] sm:$0xf]
      %v318 = vld [vmem:[%s265 + $0x8] sm:$0xf]
      %v319 = vld [vmem:[%s265 + $0xc] sm:$0xf]
      %v320 = vld [vmem:[%s265 + $0x10] sm:$0xf]
      %v321 = vld [vmem:[%s265 + $0x14] sm:$0xf]
      %v322 = vld [vmem:[%s265 + $0x18] sm:$0xf]
      %v323 = vld [vmem:[%s265 + $0x1c] sm:$0xf]
      %v324 = vunpack.c.l.bf16 %v316
      %v325 = vunpack.c.l.bf16 %v317
      %v326 = vunpack.c.l.bf16 %v318
      %v327 = vunpack.c.l.bf16 %v319
      %v328 = vunpack.c.l.bf16 %v320
      %v329 = vunpack.c.l.bf16 %v321
      %v330 = vunpack.c.l.bf16 %v322
      %v331 = vunpack.c.l.bf16 %v323
      %v332 = vld [vmem:[%s4] sm:$0x1]
      %v334 = vlaneseq
      %v335 = vshrl.u32 %v334, 7
      %v336 = vsub.s32 0, %v335
      %v337 = vrot.slane %v332, %v336
      %v339 = vmul.f32 %v324, %v337
      %v340 = vmul.f32 %v325, %v337
      %v341 = vmul.f32 %v326, %v337
      %v342 = vmul.f32 %v327, %v337
      %v343 = vmul.f32 %v328, %v337
      %v344 = vmul.f32 %v329, %v337
      %v345 = vmul.f32 %v330, %v337
      %v346 = vmul.f32 %v331, %v337
      %v347 = vld [vmem:[%s5] sm:$0x1]
      %v349 = vlaneseq
      %v350 = vshrl.u32 %v349, 7
      %v351 = vsub.s32 0, %v350
      %v352 = vrot.slane %v347, %v351
      %v354 = vadd.f32 %v339, %v352
      %v355 = vadd.f32 %v340, %v352
      %v356 = vadd.f32 %v341, %v352
      %v357 = vadd.f32 %v342, %v352
      %v358 = vadd.f32 %v343, %v352
      %v359 = vadd.f32 %v344, %v352
      %v360 = vadd.f32 %v345, %v352
      %v361 = vadd.f32 %v346, %v352
      %v362 = vadd.f32 %v308, %v354
      %v363 = vadd.f32 %v309, %v355
      %v364 = vadd.f32 %v310, %v356
      %v365 = vadd.f32 %v311, %v357
      %v366 = vadd.f32 %v312, %v358
      %v367 = vadd.f32 %v313, %v359
      %v368 = vadd.f32 %v314, %v360
      %v369 = vadd.f32 %v315, %v361
      %v370 = vmax.f32 %v362, 0.0
      %v371 = vmax.f32 %v363, 0.0
      %v372 = vmax.f32 %v364, 0.0
      %v373 = vmax.f32 %v365, 0.0
      %v374 = vmax.f32 %v366, 0.0
      %v375 = vmax.f32 %v367, 0.0
      %v376 = vmax.f32 %v368, 0.0
      %v377 = vmax.f32 %v369, 0.0
      %378 = vxpose.xlu0.b32.start [1/16] %v370, 128
      %379 = vxpose.xlu0.b32.cont [2/16] %v371, 128
      %380 = vxpose.xlu0.b32.cont [3/16] %v372, 128
      %381 = vxpose.xlu0.b32.cont [4/16] %v373, 128
      %382 = vxpose.xlu0.b32.cont [5/16] %v374, 128
      %383 = vxpose.xlu0.b32.cont [6/16] %v375, 128
      %384 = vxpose.xlu0.b32.cont [7/16] %v376, 128
      %385 = vxpose.xlu0.b32.cont [8/16] %v377, 128
      %386 = vxpose.xlu0.b32.cont [9/16] 0.0, 128
      %387 = vxpose.xlu0.b32.cont [10/16] 0.0, 128
      %388 = vxpose.xlu0.b32.cont [11/16] 0.0, 128
      %389 = vxpose.xlu0.b32.cont [12/16] 0.0, 128
      %390 = vxpose.xlu0.b32.cont [13/16] 0.0, 128
      %391 = vxpose.xlu0.b32.cont [14/16] 0.0, 128
      %392 = vxpose.xlu0.b32.cont [15/16] 0.0, 128
      %393 = vxpose.xlu0.b32.end [16/16] 0.0, 128
      %v394 = vpop.trf.xlu0
      %v395 = vpop.trf.xlu0
      %v396 = vpop.trf.xlu0
      %v397 = vpop.trf.xlu0
      %v398 = vpop.trf.xlu0
      %v399 = vpop.trf.xlu0
      %v400 = vpop.trf.xlu0
      %v401 = vpop.trf.xlu0
      %v402 = vpop.trf.xlu0
      %v403 = vpop.trf.xlu0
      %v404 = vpop.trf.xlu0
      %v405 = vpop.trf.xlu0
      %v406 = vpop.trf.xlu0
      %v407 = vpop.trf.xlu0
      %v408 = vpop.trf.xlu0
      %v409 = vpop.trf.xlu0
      %vm410 = vcmask 523264
      %411 = vst.msk [vmem:[%s269] sm:$0xff] %vm410, %v394
      %p412 = scmp.lt.s32.totalorder %s17, 1
      %s413 = scalar_select %p412, %s17, 1
      %s414 = smul.addr %s413, 8
      %s415 = scalar_lea.vmem %s6, %s414
      // Predicated region
      $region45: #{_basic_block_fwd.5} parent=43 // pred_check
        %p416 = pneg %p171
      $region46: #{_basic_block_fwd.5} parent=43 // pred_check_branch
        %418 = sbr.rel (%p416) target = $region48
      $region47: #{_basic_block_fwd.5} parent=43 // pred_region
        _
      $region48: #{_basic_block_fwd.5} parent=43 // pred_fallthru
        _
    $region44: #{_basic_block_fwd.5} parent=5 // pred_fallthru
      _
    %p419 = scmp.le.s32.totalorder 2, %s12
    // Predicated region
    $region49: #{_basic_block_fwd.5} parent=5 // pred_check
      %p420 = pneg %p419
    $region50: #{_basic_block_fwd.5} parent=5 // pred_check_branch
      %422 = sbr.rel (%p420) target = $region52
    $region51: #{_basic_block_fwd.5} parent=5 // pred_region
      %s423 = ssub.s32 %s12, 2
      // Predicated region
      $region53: #{_basic_block_fwd.5} parent=51 // pred_check
        %p424 = pneg %p177
      $region54: #{_basic_block_fwd.5} parent=51 // pred_check_branch
        %426 = sbr.rel (%p424) target = $region56
      $region55: #{_basic_block_fwd.5} parent=51 // pred_region
        %p427 = scmp.lt.s32.totalorder %s18, 1
        %s428 = scalar_select %p427, %s18, 1
        %s429 = smul.addr %s428, 8
        %s430 = scalar_lea.vmem %s6, %s429
      $region56: #{_basic_block_fwd.5} parent=51 // pred_fallthru
        _
    $region52: #{_basic_block_fwd.5} parent=5 // pred_fallthru
      _
  $region6: #{_basic_block_fwd.5} parent=0 // loop_footer
    %s16 = sadd.s32 1, %s12
  $region7: #{_basic_block_fwd.5} parent=0 // loop_footer_branch
    %11 = sbr.rel target = $region3
  $region8: #{_basic_block_fwd.5} parent=0 // loop_exit
    _

// kernel: _basic_block_fwd.4
$region0: #{_basic_block_fwd.4}
  #allocation0 [shape = 'u32[]', space=smem, size = 0x4, offset = 0x4, fixed_abs, tag = 'smem constant byte address 0x4 - core index']
  #allocation1 [shape = 'u32[144,128]{1,0:T(1,128)}', space=vmem, size = 0x12000, scoped, tag = 'internal scratch']
  #allocation2 [shape = 'bf16[10,10,8]{2,1,0:T(8,128)(2,1)}', space=vmem, size = 0xa000, scoped, tag = 'scratch operand']
  %s0 = inlined_call_operand.vmem [shape: bf16[2,64,8], index: 0, kind: input, shape index: {}]
  %s1 = inlined_call_operand.vmem [shape: bf16[72,8], index: 1, kind: input, shape index: {}]
  %s2 = inlined_call_operand.vmem [shape: f32[1,8], index: 2, kind: input, shape index: {}]
  %s3 = inlined_call_operand.vmem [shape: f32[1,8], index: 3, kind: input, shape index: {}]
  %s4 = inlined_call_operand.vmem [shape: bf16[2,64,8], index: 4, kind: output, shape index: {0}]
  %s5 = inlined_call_operand.vmem [shape: f32[2,2,8], index: 5, kind: output, shape index: {1}]
  %6 = xla_tuple %s4, %s5
  %s7 = sld [smem:[#allocation0]]
  $region57: #{_basic_block_fwd.4} parent=0
    _
  %s9 = ssub.s32 1, %s7
  %s10 = scalar_select 0, %s9, %s7
  loop: start=0, step=1, limit=4
  $region2: #{_basic_block_fwd.4} parent=0 // loop_pre_header
    _
  $region3: #{_basic_block_fwd.4} parent=0 // loop_header
    %s12 = sphi 0, %s16
    %p13 = scmp.ge.s32.totalorder %s12, 4
    %s22 = sphi 0, %s24
    %s25 = sphi 0, %s22
    %s26 = sphi 0, %s25
    %s42 = sphi 0, %s26
    %s46 = sphi 0, %s46
    %s48 = sphi 0, %s46
    %s49 = sphi 0, %s48
    %s63 = sphi 0, %s49
    %s67 = sphi 0, %s67
    %s69 = sphi 0, %s67
    %s70 = sphi 0, %s69
    %s84 = sphi 0, %s70
    %s88 = sphi 0, %s88
    %s90 = sphi 0, %s88
    %s91 = sphi 0, %s90
    %s105 = sphi 0, %s91
    %s111 = sphi 0, %s113
    %s114 = sphi 0, %s111
    %s115 = sphi 0, %s114
    %s131 = sphi 0, %s115
    %s137 = sphi 0, %s139
    %s140 = sphi 0, %s137
    %s141 = sphi 0, %s140
    %s157 = sphi 0, %s141
  $region4: #{_basic_block_fwd.4} parent=0 // loop_header_branch
    %15 = sbr.rel (%p13) target = $region8
  $region5: #{_basic_block_fwd.4} parent=0 // loop_body
    %s17 = ssub.s32 %s12, 1
    %s18 = ssub.s32 %s12, 2
    %s19 = sadd.s32 %s12, 1
    %s20 = ssub.s32 %s12, %s19
    %p21 = scmp.eq.s32.totalorder %s20, 0
    %s23 = sadd.s32 %s22, 1
    %s24 = scalar_select %p21, %s22, %s23
    %p27 = pneg %p21
    %p28 = scmp.eq.s32.totalorder %s12, 1
    %p29 = por %p27, %p28
    %p30 = scmp.ne.s32.totalorder %s22, %s25
    %p31 = scmp.eq.s32.totalorder %s12, 0
    %p32 = por %p30, %p31
    %p33 = scmp.ne.s32.totalorder %s22, %s25
    %p34 = scmp.eq.s32.totalorder %s17, 1
    %p35 = por %p33, %p34
    %p36 = scmp.ne.s32.totalorder %s25, %s26
    %p37 = scmp.eq.s32.totalorder %s17, 0
    %p38 = por %p36, %p37
    %p39 = scmp.ne.s32.totalorder %s25, %s26
    %p40 = scmp.eq.s32.totalorder %s18, 1
    %p41 = por %p39, %p40
    %p43 = scmp.ne.s32.totalorder %s26, %s42
    %p44 = scmp.eq.s32.totalorder %s18, 0
    %p45 = por %p43, %p44
    %s47 = sadd.s32 %s46, 1
    %p50 = scmp.eq.s32.totalorder %s12, 1
    %p51 = scmp.ne.s32.totalorder %s46, %s48
    %p52 = scmp.eq.s32.totalorder %s12, 0
    %p53 = por %p51, %p52
    %p54 = scmp.ne.s32.totalorder %s46, %s48
    %p55 = scmp.eq.s32.totalorder %s17, 1
    %p56 = por %p54, %p55
    %p57 = scmp.ne.s32.totalorder %s48, %s49
    %p58 = scmp.eq.s32.totalorder %s17, 0
    %p59 = por %p57, %p58
    %p60 = scmp.ne.s32.totalorder %s48, %s49
    %p61 = scmp.eq.s32.totalorder %s18, 1
    %p62 = por %p60, %p61
    %p64 = scmp.ne.s32.totalorder %s49, %s63
    %p65 = scmp.eq.s32.totalorder %s18, 0
    %p66 = por %p64, %p65
    %s68 = sadd.s32 %s67, 1
    %p71 = scmp.eq.s32.totalorder %s12, 1
    %p72 = scmp.ne.s32.totalorder %s67, %s69
    %p73 = scmp.eq.s32.totalorder %s12, 0
    %p74 = por %p72, %p73
    %p75 = scmp.ne.s32.totalorder %s67, %s69
    %p76 = scmp.eq.s32.totalorder %s17, 1
    %p77 = por %p75, %p76
    %p78 = scmp.ne.s32.totalorder %s69, %s70
    %p79 = scmp.eq.s32.totalorder %s17, 0
    %p80 = por %p78, %p79
    %p81 = scmp.ne.s32.totalorder %s69, %s70
    %p82 = scmp.eq.s32.totalorder %s18, 1
    %p83 = por %p81, %p82
    %p85 = scmp.ne.s32.totalorder %s70, %s84
    %p86 = scmp.eq.s32.totalorder %s18, 0
    %p87 = por %p85, %p86
    %s89 = sadd.s32 %s88, 1
    %p92 = scmp.eq.s32.totalorder %s12, 1
    %p93 = scmp.ne.s32.totalorder %s88, %s90
    %p94 = scmp.eq.s32.totalorder %s12, 0
    %p95 = por %p93, %p94
    %p96 = scmp.ne.s32.totalorder %s88, %s90
    %p97 = scmp.eq.s32.totalorder %s17, 1
    %p98 = por %p96, %p97
    %p99 = scmp.ne.s32.totalorder %s90, %s91
    %p100 = scmp.eq.s32.totalorder %s17, 0
    %p101 = por %p99, %p100
    %p102 = scmp.ne.s32.totalorder %s90, %s91
    %p103 = scmp.eq.s32.totalorder %s18, 1
    %p104 = por %p102, %p103
    %p106 = scmp.ne.s32.totalorder %s91, %s105
    %p107 = scmp.eq.s32.totalorder %s18, 0
    %p108 = por %p106, %p107
    %s109 = ssub.s32 %s12, %s19
    %p110 = scmp.eq.s32.totalorder %s109, 0
    %s112 = sadd.s32 %s111, 1
    %s113 = scalar_select %p110, %s111, %s112
    %p116 = pneg %p110
    %p117 = scmp.eq.s32.totalorder %s12, 1
    %p118 = por %p116, %p117
    %p119 = scmp.ne.s32.totalorder %s111, %s114
    %p120 = scmp.eq.s32.totalorder %s12, 0
    %p121 = por %p119, %p120
    %p122 = scmp.ne.s32.totalorder %s111, %s114
    %p123 = scmp.eq.s32.totalorder %s17, 1
    %p124 = por %p122, %p123
    %p125 = scmp.ne.s32.totalorder %s114, %s115
    %p126 = scmp.eq.s32.totalorder %s17, 0
    %p127 = por %p125, %p126
    %p128 = scmp.ne.s32.totalorder %s114, %s115
    %p129 = scmp.eq.s32.totalorder %s18, 1
    %p130 = por %p128, %p129
    %p132 = scmp.ne.s32.totalorder %s115, %s131
    %p133 = scmp.eq.s32.totalorder %s18, 0
    %p134 = por %p132, %p133
    %s135 = ssub.s32 %s12, %s19
    %p136 = scmp.eq.s32.totalorder %s135, 0
    %s138 = sadd.s32 %s137, 1
    %s139 = scalar_select %p136, %s137, %s138
    %p142 = pneg %p136
    %p143 = scmp.eq.s32.totalorder %s12, 1
    %p144 = por %p142, %p143
    %p145 = scmp.ne.s32.totalorder %s137, %s140
    %p146 = scmp.eq.s32.totalorder %s12, 0
    %p147 = por %p145, %p146
    %p148 = scmp.ne.s32.totalorder %s137, %s140
    %p149 = scmp.eq.s32.totalorder %s17, 1
    %p150 = por %p148, %p149
    %p151 = scmp.ne.s32.totalorder %s140, %s141
    %p152 = scmp.eq.s32.totalorder %s17, 0
    %p153 = por %p151, %p152
    %p154 = scmp.ne.s32.totalorder %s140, %s141
    %p155 = scmp.eq.s32.totalorder %s18, 1
    %p156 = por %p154, %p155
    %p158 = scmp.ne.s32.totalorder %s141, %s157
    %p159 = scmp.eq.s32.totalorder %s18, 0
    %p160 = por %p158, %p159
    %p161 = scmp.le.s32.totalorder 1, %s12
    %p162 = scmp.lt.s32.totalorder %s12, 3
    %p163 = pnand %p161, %p162
    %p164 = pneg %p163
    // Predicated region
    $region9: #{_basic_block_fwd.4} parent=5 // pred_check
      _
    $region10: #{_basic_block_fwd.4} parent=5 // pred_check_branch
      %166 = sbr.rel (%p163) target = $region12
    $region11: #{_basic_block_fwd.4} parent=5 // pred_region
      %s167 = ssub.s32 %s12, 1
      // Predicated region
      $region13: #{_basic_block_fwd.4} parent=11 // pred_check
        %p168 = pneg %p59
      $region14: #{_basic_block_fwd.4} parent=11 // pred_check_branch
        %170 = sbr.rel (%p168) target = $region16
      $region15: #{_basic_block_fwd.4} parent=11 // pred_region
        _
      $region16: #{_basic_block_fwd.4} parent=11 // pred_fallthru
        _
      // Predicated region
      $region17: #{_basic_block_fwd.4} parent=11 // pred_check
        %p171 = pneg %p80
      $region18: #{_basic_block_fwd.4} parent=11 // pred_check_branch
        %173 = sbr.rel (%p171) target = $region20
      $region19: #{_basic_block_fwd.4} parent=11 // pred_region
        _
      $region20: #{_basic_block_fwd.4} parent=11 // pred_fallthru
        _
      // Predicated region
      $region21: #{_basic_block_fwd.4} parent=11 // pred_check
        %p174 = pneg %p101
      $region22: #{_basic_block_fwd.4} parent=11 // pred_check_branch
        %176 = sbr.rel (%p174) target = $region24
      $region23: #{_basic_block_fwd.4} parent=11 // pred_region
        _
      $region24: #{_basic_block_fwd.4} parent=11 // pred_fallthru
        _
    $region12: #{_basic_block_fwd.4} parent=5 // pred_fallthru
      _
    %p177 = scmp.lt.s32.totalorder %s12, 2
    // Predicated region
    $region25: #{_basic_block_fwd.4} parent=5 // pred_check
      %p178 = pneg %p177
    $region26: #{_basic_block_fwd.4} parent=5 // pred_check_branch
      %180 = sbr.rel (%p178) target = $region28
    $region27: #{_basic_block_fwd.4} parent=5 // pred_region
      // Predicated region
      $region29: #{_basic_block_fwd.4} parent=27 // pred_check
        %p181 = pneg %p32
      $region30: #{_basic_block_fwd.4} parent=27 // pred_check_branch
        %183 = sbr.rel (%p181) target = $region32
      $region31: #{_basic_block_fwd.4} parent=27 // pred_region
        %p184 = scmp.lt.s32.totalorder %s12, 1
        %s185 = scalar_select %p184, %s12, 1
        %s186 = smul.addr %s185, 8
        %s187 = smul.addr %s186, 4
        %s188 = scalar_lea.vmem %s0, %s187
      $region32: #{_basic_block_fwd.4} parent=27 // pred_fallthru
        _
    $region28: #{_basic_block_fwd.4} parent=5 // pred_fallthru
      _
    %p189 = scmp.le.s32.totalorder 1, %s12
    %p190 = scmp.lt.s32.totalorder %s12, 3
    %p191 = pnand %p189, %p190
    %p192 = pneg %p191
    // Predicated region
    $region33: #{_basic_block_fwd.4} parent=5 // pred_check
      _
    $region34: #{_basic_block_fwd.4} parent=5 // pred_check_branch
      %194 = sbr.rel (%p191) target = $region36
    $region35: #{_basic_block_fwd.4} parent=5 // pred_region
      %s195 = ssub.s32 %s12, 1
      %p196 = scmp.lt.s32.totalorder %s17, 1
      %s197 = scalar_select %p196, %s17, 1
      %s198 = smul.addr %s197, 8
      %s199 = smul.addr %s198, 4
      %s200 = scalar_lea.vmem %s0, %s199
      %p201 = pneg %p38
      %p202 = pneg %p35
      %p203 = pneg %p59
      %p204 = pneg %p56
      %p205 = pneg %p80
      %p206 = pneg %p77
      %p207 = pneg %p101
      %p208 = pneg %p98
      %p209 = pneg %p127
      %p210 = pneg %p124
      %p211 = scmp.lt.s32.totalorder %s17, 1
      %s212 = scalar_select %p211, %s17, 1
      %s213 = smul.addr %s212, 8
      %s214 = smul.addr %s213, 4
      %s215 = scalar_lea.vmem %s4, %s214
      %p216 = pneg %p153
      %p217 = pneg %p150
      %p218 = scmp.lt.s32.totalorder %s17, 1
      %s219 = scalar_select %p218, %s17, 1
      %s220 = smul.addr %s219, 2
      %s221 = scalar_lea.vmem %s5, %s220
      %p222 = scmp.lt.s32.totalorder %s17, 1
      %s223 = scalar_select %p222, %s17, 1
      %s224 = smul.addr %s223, 8
      %s225 = smul.addr %s224, 4
      %s226 = scalar_lea.vmem %s0, %s225
      %p227 = scmp.lt.s32.totalorder %s17, 1
      %s228 = scalar_select %p227, %s17, 1
      %s229 = smul.addr %s228, 8
      %s230 = smul.addr %s229, 4
      %s231 = scalar_lea.vmem %s4, %s230
      %p232 = scmp.lt.s32.totalorder %s17, 1
      %s233 = scalar_select %p232, %s17, 1
      %s234 = smul.addr %s233, 2
      %s235 = scalar_lea.vmem %s5, %s234
      %vm237 = vcmask 60416
      %238 = vst.msk [vmem:[#allocation2] sm:$0xf] %vm237, 0
      %vm239 = vcmask 57344
      %240 = vst.msk [vmem:[#allocation2 + $0x4] sm:$0x1] %vm239, 0
      %241 = vst.msk [vmem:[#allocation2 + $0x8] sm:$0xf] %vm237, 0
      %242 = vst.msk [vmem:[#allocation2 + $0xc] sm:$0x1] %vm239, 0
      %243 = vst.msk [vmem:[#allocation2 + $0x10] sm:$0xf] %vm237, 0
      %244 = vst.msk [vmem:[#allocation2 + $0x14] sm:$0x1] %vm239, 0
      %245 = vst.msk [vmem:[#allocation2 + $0x18] sm:$0xf] %vm237, 0
      %246 = vst.msk [vmem:[#allocation2 + $0x1c] sm:$0x1] %vm239, 0
      %247 = vst.msk [vmem:[#allocation2 + $0x20] sm:$0xf] %vm237, 0
      %248 = vst.msk [vmem:[#allocation2 + $0x24] sm:$0x1] %vm239, 0
      %249 = vst.msk [vmem:[#allocation2 + $0x28] sm:$0xf] %vm237, 0
      %250 = vst.msk [vmem:[#allocation2 + $0x2c] sm:$0x1] %vm239, 0
      %251 = vst.msk [vmem:[#allocation2 + $0x30] sm:$0xf] %vm237, 0
      %252 = vst.msk [vmem:[#allocation2 + $0x34] sm:$0x1] %vm239, 0
      %253 = vst.msk [vmem:[#allocation2 + $0x38] sm:$0xf] %vm237, 0
      %254 = vst.msk [vmem:[#allocation2 + $0x3c] sm:$0x1] %vm239, 0
      %255 = vst.msk [vmem:[#allocation2 + $0x40] sm:$0xf] %vm237, 0
      %256 = vst.msk [vmem:[#allocation2 + $0x44] sm:$0x1] %vm239, 0
      %257 = vst.msk [vmem:[#allocation2 + $0x48] sm:$0xf] %vm237, 0
      %258 = vst.msk [vmem:[#allocation2 + $0x4c] sm:$0x1] %vm239, 0
      %v259 = vld [vmem:[%s226] sm:$0xf]
      %v260 = vld [vmem:[%s226 + $0x4] sm:$0xf]
      %v261 = vld [vmem:[%s226 + $0x8] sm:$0xf]
      %v262 = vld [vmem:[%s226 + $0xc] sm:$0xf]
      %v263 = vld [vmem:[%s226 + $0x10] sm:$0xf]
      %v264 = vld [vmem:[%s226 + $0x14] sm:$0xf]
      %v265 = vld [vmem:[%s226 + $0x18] sm:$0xf]
      %v266 = vld [vmem:[%s226 + $0x1c] sm:$0xf]
      %v267 = vunpack.c.l.bf16 %v259
      %v268 = vunpack.c.l.bf16 %v260
      %v269 = vunpack.c.l.bf16 %v261
      %v270 = vunpack.c.l.bf16 %v262
      %v271 = vunpack.c.l.bf16 %v263
      %v272 = vunpack.c.l.bf16 %v264
      %v273 = vunpack.c.l.bf16 %v265
      %v274 = vunpack.c.l.bf16 %v266
      %v275 = vld [vmem:[%s2] sm:$0x1]
      %v277 = vlaneseq
      %v278 = vshrl.u32 %v277, 7
      %v279 = vsub.s32 0, %v278
      %v280 = vrot.slane %v275, %v279
      %v282 = vmul.f32 %v267, %v280
      %v283 = vmul.f32 %v268, %v280
      %v284 = vmul.f32 %v269, %v280
      %v285 = vmul.f32 %v270, %v280
      %v286 = vmul.f32 %v271, %v280
      %v287 = vmul.f32 %v272, %v280
      %v288 = vmul.f32 %v273, %v280
      %v289 = vmul.f32 %v274, %v280
      %v290 = vld [vmem:[%s3] sm:$0x1]
      %v292 = vlaneseq
      %v293 = vshrl.u32 %v292, 7
      %v294 = vsub.s32 0, %v293
      %v295 = vrot.slane %v290, %v294
      %v297 = vadd.f32 %v282, %v295
      %v298 = vadd.f32 %v283, %v295
      %v299 = vadd.f32 %v284, %v295
      %v300 = vadd.f32 %v285, %v295
      %v301 = vadd.f32 %v286, %v295
      %v302 = vadd.f32 %v287, %v295
      %v303 = vadd.f32 %v288, %v295
      %v304 = vadd.f32 %v289, %v295
      %v305 = vmax.f32 %v297, 0.0
      %v306 = vmax.f32 %v298, 0.0
      %v307 = vmax.f32 %v299, 0.0
      %v308 = vmax.f32 %v300, 0.0
      %v309 = vmax.f32 %v301, 0.0
      %v310 = vmax.f32 %v302, 0.0
      %v311 = vmax.f32 %v303, 0.0
      %v312 = vmax.f32 %v304, 0.0
      %v313 = vpack.c.bf16 %v305, %v305
      %v314 = vpack.c.bf16 %v306, %v306
      %v315 = vpack.c.bf16 %v307, %v307
      %v316 = vpack.c.bf16 %v308, %v308
      %v317 = vpack.c.bf16 %v309, %v309
      %v318 = vpack.c.bf16 %v310, %v310
      %v319 = vpack.c.bf16 %v311, %v311
      %v320 = vpack.c.bf16 %v312, %v312
      %v329 = vunpack.c.l.b16 %v313
      %v330 = vunpack.c.l.b16 %v314
      %v331 = vunpack.c.l.b16 %v315
      %v332 = vunpack.c.l.b16 %v316
      %v333 = vunpack.c.l.b16 %v317
      %v334 = vunpack.c.l.b16 %v318
      %v335 = vunpack.c.l.b16 %v319
      %v336 = vunpack.c.l.b16 %v320
      %v337 = vpack.c.b16 %v329, %v329
      %v338 = vpack.c.b16 %v330, %v330
      %v339 = vpack.c.b16 %v331, %v331
      %v340 = vpack.c.b16 %v332, %v332
      %v341 = vpack.c.b16 %v333, %v333
      %v342 = vpack.c.b16 %v334, %v334
      %v343 = vpack.c.b16 %v335, %v335
      %v344 = vpack.c.b16 %v336, %v336
      %v346 = vshrl.u32 %v337, 16
      %v348 = vrot.slane %v346, 7
      %v349 = vshll.u32 %v337, 16
      %v351 = vor.u32 %v348, %v349
      %v352 = vrot.slane %v348, 4
      %v354 = vshrl.u32 %v338, 16
      %v356 = vrot.slane %v354, 7
      %v357 = vshll.u32 %v338, 16
      %v359 = vor.u32 %v356, %v357
      %v360 = vrot.slane %v356, 4
      %v362 = vshrl.u32 %v339, 16
      %v364 = vrot.slane %v362, 7
      %v365 = vshll.u32 %v339, 16
      %v367 = vor.u32 %v364, %v365
      %v368 = vrot.slane %v364, 4
      %v370 = vshrl.u32 %v340, 16
      %v372 = vrot.slane %v370, 7
      %v373 = vshll.u32 %v340, 16
      %v375 = vor.u32 %v372, %v373
      %v376 = vrot.slane %v372, 4
      %v378 = vshrl.u32 %v341, 16
      %v380 = vrot.slane %v378, 7
      %v381 = vshll.u32 %v341, 16
      %v383 = vor.u32 %v380, %v381
      %v384 = vrot.slane %v380, 4
      %v386 = vshrl.u32 %v342, 16
      %v388 = vrot.slane %v386, 7
      %v389 = vshll.u32 %v342, 16
      %v391 = vor.u32 %v388, %v389
      %v392 = vrot.slane %v388, 4
      %v394 = vshrl.u32 %v343, 16
      %v396 = vrot.slane %v394, 7
      %v397 = vshll.u32 %v343, 16
      %v399 = vor.u32 %v396, %v397
      %v400 = vrot.slane %v396, 4
      %v402 = vshrl.u32 %v344, 16
      %v404 = vrot.slane %v402, 7
      %v405 = vshll.u32 %v344, 16
      %v407 = vor.u32 %v404, %v405
      %v408 = vrot.slane %v404, 4
      %s425 = scalar_lea.vmem [#allocation2], 8
      %vm426 = vcmask 60416
      %vm427 = vsmask.f32 7938
      %vm428 = vmand %vm426, %vm427
      %v429 = vld [vmem:[%s425] sm:$0xf]
      %v430 = vsel %vm428, %v351, %v429
      %431 = vst [vmem:[%s425] sm:$0xf] %v430
      %vm432 = vcmask 57344
      %vm433 = vsmask.f32 256
      %vm434 = vmand %vm432, %vm433
      %v435 = vld [vmem:[%s425 + $0x4] sm:$0x1]
      %v436 = vsel %vm434, %v352, %v435
      %437 = vst [vmem:[%s425 + $0x4] sm:$0x1] %v436
      %v438 = vld [vmem:[%s425 + $0x8] sm:$0xf]
      %v439 = vsel %vm428, %v359, %v438
      %440 = vst [vmem:[%s425 + $0x8] sm:$0xf] %v439
      %v441 = vld [vmem:[%s425 + $0xc] sm:$0x1]
      %v442 = vsel %vm434, %v360, %v441
      %443 = vst [vmem:[%s425 + $0xc] sm:$0x1] %v442
      %v444 = vld [vmem:[%s425 + $0x10] sm:$0xf]
      %v445 = vsel %vm428, %v367, %v444
      %446 = vst [vmem:[%s425 + $0x10] sm:$0xf] %v445
      %v447 = vld [vmem:[%s425 + $0x14] sm:$0x1]
      %v448 = vsel %vm434, %v368, %v447
      %449 = vst [vmem:[%s425 + $0x14] sm:$0x1] %v448
      %v450 = vld [vmem:[%s425 + $0x18] sm:$0xf]
      %v451 = vsel %vm428, %v375, %v450
      %452 = vst [vmem:[%s425 + $0x18] sm:$0xf] %v451
      %v453 = vld [vmem:[%s425 + $0x1c] sm:$0x1]
      %v454 = vsel %vm434, %v376, %v453
      %455 = vst [vmem:[%s425 + $0x1c] sm:$0x1] %v454
      %v456 = vld [vmem:[%s425 + $0x20] sm:$0xf]
      %v457 = vsel %vm428, %v383, %v456
      %458 = vst [vmem:[%s425 + $0x20] sm:$0xf] %v457
      %v459 = vld [vmem:[%s425 + $0x24] sm:$0x1]
      %v460 = vsel %vm434, %v384, %v459
      %461 = vst [vmem:[%s425 + $0x24] sm:$0x1] %v460
      %v462 = vld [vmem:[%s425 + $0x28] sm:$0xf]
      %v463 = vsel %vm428, %v391, %v462
      %464 = vst [vmem:[%s425 + $0x28] sm:$0xf] %v463
      %v465 = vld [vmem:[%s425 + $0x2c] sm:$0x1]
      %v466 = vsel %vm434, %v392, %v465
      %467 = vst [vmem:[%s425 + $0x2c] sm:$0x1] %v466
      %v468 = vld [vmem:[%s425 + $0x30] sm:$0xf]
      %v469 = vsel %vm428, %v399, %v468
      %470 = vst [vmem:[%s425 + $0x30] sm:$0xf] %v469
      %v471 = vld [vmem:[%s425 + $0x34] sm:$0x1]
      %v472 = vsel %vm434, %v400, %v471
      %473 = vst [vmem:[%s425 + $0x34] sm:$0x1] %v472
      %v474 = vld [vmem:[%s425 + $0x38] sm:$0xf]
      %v475 = vsel %vm428, %v407, %v474
      %476 = vst [vmem:[%s425 + $0x38] sm:$0xf] %v475
      %v477 = vld [vmem:[%s425 + $0x3c] sm:$0x1]
      %v478 = vsel %vm434, %v408, %v477
      %479 = vst [vmem:[%s425 + $0x3c] sm:$0x1] %v478
      %v480 = vld [vmem:[#allocation2] sm:$0xf]
      %v481 = vld [vmem:[#allocation2 + $0x8] sm:$0xf]
      %v482 = vld [vmem:[#allocation2 + $0x10] sm:$0xf]
      %v483 = vld [vmem:[#allocation2 + $0x18] sm:$0xf]
      %v484 = vld [vmem:[#allocation2 + $0x20] sm:$0xf]
      %v485 = vld [vmem:[#allocation2 + $0x28] sm:$0xf]
      %v486 = vld [vmem:[#allocation2 + $0x30] sm:$0xf]
      %v487 = vld [vmem:[#allocation2 + $0x38] sm:$0xf]
      %v488 = vld [vmem:[#allocation2 + $0x4] sm:$0x1]
      %v489 = vld [vmem:[#allocation2 + $0xc] sm:$0x1]
      %v490 = vld [vmem:[#allocation2 + $0x14] sm:$0x1]
      %v491 = vld [vmem:[#allocation2 + $0x1c] sm:$0x1]
      %v492 = vld [vmem:[#allocation2 + $0x24] sm:$0x1]
      %v493 = vld [vmem:[#allocation2 + $0x2c] sm:$0x1]
      %v494 = vld [vmem:[#allocation2 + $0x34] sm:$0x1]
      %v495 = vld [vmem:[#allocation2 + $0x3c] sm:$0x1]
      %vm496 = vsmask.f32 3328
      %vm497 = vsmask.f32 7440
      %vm498 = vmor %vm496, %vm497
      %v500 = vshrl.u32 %v480, 16
      %v502 = vrot.slane %v500, 4
      %v503 = vshll.u32 %v480, 16
      %v505 = vrot.slane %v503, 5
      %v506 = vor.u32 %v502, %v505
      %v507 = vrot.slane %v506, 4
      %v509 = vshll.u32 %v488, 16
      %v511 = vrot.slane %v509, 5
      %v512 = vsel %vm498, %v507, %v511
      %v514 = vshrl.u32 %v481, 16
      %v516 = vrot.slane %v514, 4
      %v517 = vshll.u32 %v481, 16
      %v519 = vrot.slane %v517, 5
      %v520 = vor.u32 %v516, %v519
      %v521 = vrot.slane %v520, 4
      %v523 = vshll.u32 %v489, 16
      %v525 = vrot.slane %v523, 5
      %v526 = vsel %vm498, %v521, %v525
      %v528 = vshrl.u32 %v482, 16
      %v530 = vrot.slane %v528, 4
      %v531 = vshll.u32 %v482, 16
      %v533 = vrot.slane %v531, 5
      %v534 = vor.u32 %v530, %v533
      %v535 = vrot.slane %v534, 4
      %v537 = vshll.u32 %v490, 16
      %v539 = vrot.slane %v537, 5
      %v540 = vsel %vm498, %v535, %v539
      %v542 = vshrl.u32 %v483, 16
      %v544 = vrot.slane %v542, 4
      %v545 = vshll.u32 %v483, 16
      %v547 = vrot.slane %v545, 5
      %v548 = vor.u32 %v544, %v547
      %v549 = vrot.slane %v548, 4
      %v551 = vshll.u32 %v491, 16
      %v553 = vrot.slane %v551, 5
      %v554 = vsel %vm498, %v549, %v553
      %v556 = vshrl.u32 %v484, 16
      %v558 = vrot.slane %v556, 4
      %v559 = vshll.u32 %v484, 16
      %v561 = vrot.slane %v559, 5
      %v562 = vor.u32 %v558, %v561
      %v563 = vrot.slane %v562, 4
      %v565 = vshll.u32 %v492, 16
      %v567 = vrot.slane %v565, 5
      %v568 = vsel %vm498, %v563, %v567
      %v570 = vshrl.u32 %v485, 16
      %v572 = vrot.slane %v570, 4
      %v573 = vshll.u32 %v485, 16
      %v575 = vrot.slane %v573, 5
      %v576 = vor.u32 %v572, %v575
      %v577 = vrot.slane %v576, 4
      %v579 = vshll.u32 %v493, 16
      %v581 = vrot.slane %v579, 5
      %v582 = vsel %vm498, %v577, %v581
      %v584 = vshrl.u32 %v486, 16
      %v586 = vrot.slane %v584, 4
      %v587 = vshll.u32 %v486, 16
      %v589 = vrot.slane %v587, 5
      %v590 = vor.u32 %v586, %v589
      %v591 = vrot.slane %v590, 4
      %v593 = vshll.u32 %v494, 16
      %v595 = vrot.slane %v593, 5
      %v596 = vsel %vm498, %v591, %v595
      %v598 = vshrl.u32 %v487, 16
      %v600 = vrot.slane %v598, 4
      %v601 = vshll.u32 %v487, 16
      %v603 = vrot.slane %v601, 5
      %v604 = vor.u32 %v600, %v603
      %v605 = vrot.slane %v604, 4
      %v607 = vshll.u32 %v495, 16
      %v609 = vrot.slane %v607, 5
      %v610 = vsel %vm498, %v605, %v609
      %v611 = vld [vmem:[#allocation2] sm:$0xe]
      %v612 = vld [vmem:[#allocation2 + $0x8] sm:$0xe]
      %v613 = vld [vmem:[#allocation2 + $0x10] sm:$0xe]
      %v614 = vld [vmem:[#allocation2 + $0x18] sm:$0xe]
      %v615 = vld [vmem:[#allocation2 + $0x20] sm:$0xe]
      %v616 = vld [vmem:[#allocation2 + $0x28] sm:$0xe]
      %v617 = vld [vmem:[#allocation2 + $0x30] sm:$0xe]
      %v618 = vld [vmem:[#allocation2 + $0x38] sm:$0xe]
      %vm635 = vcmask 1042432
      %vm636 = vcmask 1046532
      %vm637 = vmor %vm635, %vm636
      %v638 = vrot.slane %v611, 5
      %v639 = vrot.slane %v638, 4
      %v640 = vrot.slane %v488, 5
      %v641 = vsel %vm637, %v639, %v640
      %v642 = vrot.slane %v612, 5
      %v643 = vrot.slane %v642, 4
      %v644 = vrot.slane %v489, 5
      %v645 = vsel %vm637, %v643, %v644
      %v646 = vrot.slane %v613, 5
      %v647 = vrot.slane %v646, 4
      %v648 = vrot.slane %v490, 5
      %v649 = vsel %vm637, %v647, %v648
      %v650 = vrot.slane %v614, 5
      %v651 = vrot.slane %v650, 4
      %v652 = vrot.slane %v491, 5
      %v653 = vsel %vm637, %v651, %v652
      %v654 = vrot.slane %v615, 5
      %v655 = vrot.slane %v654, 4
      %v656 = vrot.slane %v492, 5
      %v657 = vsel %vm637, %v655, %v656
      %v658 = vrot.slane %v616, 5
      %v659 = vrot.slane %v658, 4
      %v660 = vrot.slane %v493, 5
      %v661 = vsel %vm637, %v659, %v660
      %v662 = vrot.slane %v617, 5
      %v663 = vrot.slane %v662, 4
      %v664 = vrot.slane %v494, 5
      %v665 = vsel %vm637, %v663, %v664
      %v666 = vrot.slane %v618, 5
      %v667 = vrot.slane %v666, 4
      %v668 = vrot.slane %v495, 5
      %v669 = vsel %vm637, %v667, %v668
      %v670 = vld [vmem:[%s425] sm:$0xf]
      %v671 = vld [vmem:[%s425 + $0x8] sm:$0xf]
      %v672 = vld [vmem:[%s425 + $0x10] sm:$0xf]
      %v673 = vld [vmem:[%s425 + $0x18] sm:$0xf]
      %v674 = vld [vmem:[%s425 + $0x20] sm:$0xf]
      %v675 = vld [vmem:[%s425 + $0x28] sm:$0xf]
      %v676 = vld [vmem:[%s425 + $0x30] sm:$0xf]
      %v677 = vld [vmem:[%s425 + $0x38] sm:$0xf]
      %v678 = vld [vmem:[%s425 + $0x4] sm:$0x1]
      %v679 = vld [vmem:[%s425 + $0xc] sm:$0x1]
      %v680 = vld [vmem:[%s425 + $0x14] sm:$0x1]
      %v681 = vld [vmem:[%s425 + $0x1c] sm:$0x1]
      %v682 = vld [vmem:[%s425 + $0x24] sm:$0x1]
      %v683 = vld [vmem:[%s425 + $0x2c] sm:$0x1]
      %v684 = vld [vmem:[%s425 + $0x34] sm:$0x1]
      %v685 = vld [vmem:[%s425 + $0x3c] sm:$0x1]
      %v687 = vshrl.u32 %v670, 16
      %v689 = vrot.slane %v687, 4
      %v690 = vshll.u32 %v670, 16
      %v692 = vrot.slane %v690, 5
      %v693 = vor.u32 %v689, %v692
      %v694 = vrot.slane %v693, 4
      %v696 = vshll.u32 %v678, 16
      %v698 = vrot.slane %v696, 5
      %v699 = vsel %vm498, %v694, %v698
      %v701 = vshrl.u32 %v671, 16
      %v703 = vrot.slane %v701, 4
      %v704 = vshll.u32 %v671, 16
      %v706 = vrot.slane %v704, 5
      %v707 = vor.u32 %v703, %v706
      %v708 = vrot.slane %v707, 4
      %v710 = vshll.u32 %v679, 16
      %v712 = vrot.slane %v710, 5
      %v713 = vsel %vm498, %v708, %v712
      %v715 = vshrl.u32 %v672, 16
      %v717 = vrot.slane %v715, 4
      %v718 = vshll.u32 %v672, 16
      %v720 = vrot.slane %v718, 5
      %v721 = vor.u32 %v717, %v720
      %v722 = vrot.slane %v721, 4
      %v724 = vshll.u32 %v680, 16
      %v726 = vrot.slane %v724, 5
      %v727 = vsel %vm498, %v722, %v726
      %v729 = vshrl.u32 %v673, 16
      %v731 = vrot.slane %v729, 4
      %v732 = vshll.u32 %v673, 16
      %v734 = vrot.slane %v732, 5
      %v735 = vor.u32 %v731, %v734
      %v736 = vrot.slane %v735, 4
      %v738 = vshll.u32 %v681, 16
      %v740 = vrot.slane %v738, 5
      %v741 = vsel %vm498, %v736, %v740
      %v743 = vshrl.u32 %v674, 16
      %v745 = vrot.slane %v743, 4
      %v746 = vshll.u32 %v674, 16
      %v748 = vrot.slane %v746, 5
      %v749 = vor.u32 %v745, %v748
      %v750 = vrot.slane %v749, 4
      %v752 = vshll.u32 %v682, 16
      %v754 = vrot.slane %v752, 5
      %v755 = vsel %vm498, %v750, %v754
      %v757 = vshrl.u32 %v675, 16
      %v759 = vrot.slane %v757, 4
      %v760 = vshll.u32 %v675, 16
      %v762 = vrot.slane %v760, 5
      %v763 = vor.u32 %v759, %v762
      %v764 = vrot.slane %v763, 4
      %v766 = vshll.u32 %v683, 16
      %v768 = vrot.slane %v766, 5
      %v769 = vsel %vm498, %v764, %v768
      %v771 = vshrl.u32 %v676, 16
      %v773 = vrot.slane %v771, 4
      %v774 = vshll.u32 %v676, 16
      %v776 = vrot.slane %v774, 5
      %v777 = vor.u32 %v773, %v776
      %v778 = vrot.slane %v777, 4
      %v780 = vshll.u32 %v684, 16
      %v782 = vrot.slane %v780, 5
      %v783 = vsel %vm498, %v778, %v782
      %v785 = vshrl.u32 %v677, 16
      %v787 = vrot.slane %v785, 4
      %v788 = vshll.u32 %v677, 16
      %v790 = vrot.slane %v788, 5
      %v791 = vor.u32 %v787, %v790
      %v792 = vrot.slane %v791, 4
      %v794 = vshll.u32 %v685, 16
      %v796 = vrot.slane %v794, 5
      %v797 = vsel %vm498, %v792, %v796
      %v798 = vld [vmem:[%s425] sm:$0xe]
      %v799 = vld [vmem:[%s425 + $0x8] sm:$0xe]
      %v800 = vld [vmem:[%s425 + $0x10] sm:$0xe]
      %v801 = vld [vmem:[%s425 + $0x18] sm:$0xe]
      %v802 = vld [vmem:[%s425 + $0x20] sm:$0xe]
      %v803 = vld [vmem:[%s425 + $0x28] sm:$0xe]
      %v804 = vld [vmem:[%s425 + $0x30] sm:$0xe]
      %v805 = vld [vmem:[%s425 + $0x38] sm:$0xe]
      %v822 = vrot.slane %v798, 5
      %v823 = vrot.slane %v822, 4
      %v824 = vrot.slane %v678, 5
      %v825 = vsel %vm637, %v823, %v824
      %v826 = vrot.slane %v799, 5
      %v827 = vrot.slane %v826, 4
      %v828 = vrot.slane %v679, 5
      %v829 = vsel %vm637, %v827, %v828
      %v830 = vrot.slane %v800, 5
      %v831 = vrot.slane %v830, 4
      %v832 = vrot.slane %v680, 5
      %v833 = vsel %vm637, %v831, %v832
      %v834 = vrot.slane %v801, 5
      %v835 = vrot.slane %v834, 4
      %v836 = vrot.slane %v681, 5
      %v837 = vsel %vm637, %v835, %v836
      %v838 = vrot.slane %v802, 5
      %v839 = vrot.slane %v838, 4
      %v840 = vrot.slane %v682, 5
      %v841 = vsel %vm637, %v839, %v840
      %v842 = vrot.slane %v803, 5
      %v843 = vrot.slane %v842, 4
      %v844 = vrot.slane %v683, 5
      %v845 = vsel %vm637, %v843, %v844
      %v846 = vrot.slane %v804, 5
      %v847 = vrot.slane %v846, 4
      %v848 = vrot.slane %v684, 5
      %v849 = vsel %vm637, %v847, %v848
      %v850 = vrot.slane %v805, 5
      %v851 = vrot.slane %v850, 4
      %v852 = vrot.slane %v685, 5
      %v853 = vsel %vm637, %v851, %v852
      %s854 = scalar_lea.vmem [#allocation2], 16
      %v855 = vld [vmem:[%s854] sm:$0xf]
      %v856 = vld [vmem:[%s854 + $0x8] sm:$0xf]
      %v857 = vld [vmem:[%s854 + $0x10] sm:$0xf]
      %v858 = vld [vmem:[%s854 + $0x18] sm:$0xf]
      %v859 = vld [vmem:[%s854 + $0x20] sm:$0xf]
      %v860 = vld [vmem:[%s854 + $0x28] sm:$0xf]
      %v861 = vld [vmem:[%s854 + $0x30] sm:$0xf]
      %v862 = vld [vmem:[%s854 + $0x38] sm:$0xf]
      %v863 = vld [vmem:[%s854 + $0x4] sm:$0x1]
      %v864 = vld [vmem:[%s854 + $0xc] sm:$0x1]
      %v865 = vld [vmem:[%s854 + $0x14] sm:$0x1]
      %v866 = vld [vmem:[%s854 + $0x1c] sm:$0x1]
      %v867 = vld [vmem:[%s854 + $0x24] sm:$0x1]
      %v868 = vld [vmem:[%s854 + $0x2c] sm:$0x1]
      %v869 = vld [vmem:[%s854 + $0x34] sm:$0x1]
      %v870 = vld [vmem:[%s854 + $0x3c] sm:$0x1]
      %v872 = vshrl.u32 %v855, 16
      %v874 = vrot.slane %v872, 4
      %v875 = vshll.u32 %v855, 16
      %v877 = vrot.slane %v875, 5
      %v878 = vor.u32 %v874, %v877
      %v879 = vrot.slane %v878, 4
      %v881 = vshll.u32 %v863, 16
      %v883 = vrot.slane %v881, 5
      %v884 = vsel %vm498, %v879, %v883
      %v886 = vshrl.u32 %v856, 16
      %v888 = vrot.slane %v886, 4
      %v889 = vshll.u32 %v856, 16
      %v891 = vrot.slane %v889, 5
      %v892 = vor.u32 %v888, %v891
      %v893 = vrot.slane %v892, 4
      %v895 = vshll.u32 %v864, 16
      %v897 = vrot.slane %v895, 5
      %v898 = vsel %vm498, %v893, %v897
      %v900 = vshrl.u32 %v857, 16
      %v902 = vrot.slane %v900, 4
      %v903 = vshll.u32 %v857, 16
      %v905 = vrot.slane %v903, 5
      %v906 = vor.u32 %v902, %v905
      %v907 = vrot.slane %v906, 4
      %v909 = vshll.u32 %v865, 16
      %v911 = vrot.slane %v909, 5
      %v912 = vsel %vm498, %v907, %v911
      %v914 = vshrl.u32 %v858, 16
      %v916 = vrot.slane %v914, 4
      %v917 = vshll.u32 %v858, 16
      %v919 = vrot.slane %v917, 5
      %v920 = vor.u32 %v916, %v919
      %v921 = vrot.slane %v920, 4
      %v923 = vshll.u32 %v866, 16
      %v925 = vrot.slane %v923, 5
      %v926 = vsel %vm498, %v921, %v925
      %v928 = vshrl.u32 %v859, 16
      %v930 = vrot.slane %v928, 4
      %v931 = vshll.u32 %v859, 16
      %v933 = vrot.slane %v931, 5
      %v934 = vor.u32 %v930, %v933
      %v935 = vrot.slane %v934, 4
      %v937 = vshll.u32 %v867, 16
      %v939 = vrot.slane %v937, 5
      %v940 = vsel %vm498, %v935, %v939
      %v942 = vshrl.u32 %v860, 16
      %v944 = vrot.slane %v942, 4
      %v945 = vshll.u32 %v860, 16
      %v947 = vrot.slane %v945, 5
      %v948 = vor.u32 %v944, %v947
      %v949 = vrot.slane %v948, 4
      %v951 = vshll.u32 %v868, 16
      %v953 = vrot.slane %v951, 5
      %v954 = vsel %vm498, %v949, %v953
      %v956 = vshrl.u32 %v861, 16
      %v958 = vrot.slane %v956, 4
      %v959 = vshll.u32 %v861, 16
      %v961 = vrot.slane %v959, 5
      %v962 = vor.u32 %v958, %v961
      %v963 = vrot.slane %v962, 4
      %v965 = vshll.u32 %v869, 16
      %v967 = vrot.slane %v965, 5
      %v968 = vsel %vm498, %v963, %v967
      %v970 = vshrl.u32 %v862, 16
      %v972 = vrot.slane %v970, 4
      %v973 = vshll.u32 %v862, 16
      %v975 = vrot.slane %v973, 5
      %v976 = vor.u32 %v972, %v975
      %v977 = vrot.slane %v976, 4
      %v979 = vshll.u32 %v870, 16
      %v981 = vrot.slane %v979, 5
      %v982 = vsel %vm498, %v977, %v981
      %v983 = vld [vmem:[%s854] sm:$0xe]
      %v984 = vld [vmem:[%s854 + $0x8] sm:$0xe]
      %v985 = vld [vmem:[%s854 + $0x10] sm:$0xe]
      %v986 = vld [vmem:[%s854 + $0x18] sm:$0xe]
      %v987 = vld [vmem:[%s854 + $0x20] sm:$0xe]
      %v988 = vld [vmem:[%s854 + $0x28] sm:$0xe]
      %v989 = vld [vmem:[%s854 + $0x30] sm:$0xe]
      %v990 = vld [vmem:[%s854 + $0x38] sm:$0xe]
      %v1007 = vrot.slane %v983, 5
      %v1008 = vrot.slane %v1007, 4
      %v1009 = vrot.slane %v863, 5
      %v1010 = vsel %vm637, %v1008, %v1009
      %v1011 = vrot.slane %v984, 5
      %v1012 = vrot.slane %v1011, 4
      %v1013 = vrot.slane %v864, 5
      %v1014 = vsel %vm637, %v1012, %v1013
      %v1015 = vrot.slane %v985, 5
      %v1016 = vrot.slane %v1015, 4
      %v1017 = vrot.slane %v865, 5
      %v1018 = vsel %vm637, %v1016, %v1017
      %v1019 = vrot.slane %v986, 5
      %v1020 = vrot.slane %v1019, 4
      %v1021 = vrot.slane %v866, 5
      %v1022 = vsel %vm637, %v1020, %v1021
      %v1023 = vrot.slane %v987, 5
      %v1024 = vrot.slane %v1023, 4
      %v1025 = vrot.slane %v867, 5
      %v1026 = vsel %vm637, %v1024, %v1025
      %v1027 = vrot.slane %v988, 5
      %v1028 = vrot.slane %v1027, 4
      %v1029 = vrot.slane %v868, 5
      %v1030 = vsel %vm637, %v1028, %v1029
      %v1031 = vrot.slane %v989, 5
      %v1032 = vrot.slane %v1031, 4
      %v1033 = vrot.slane %v869, 5
      %v1034 = vsel %vm637, %v1032, %v1033
      %v1035 = vrot.slane %v990, 5
      %v1036 = vrot.slane %v1035, 4
      %v1037 = vrot.slane %v870, 5
      %v1038 = vsel %vm637, %v1036, %v1037
      %v1047 = vunpack.c.l.b16 %v480
      %v1048 = vunpack.c.l.b16 %v481
      %v1049 = vunpack.c.l.b16 %v482
      %v1050 = vunpack.c.l.b16 %v483
      %v1051 = vunpack.c.l.b16 %v484
      %v1052 = vunpack.c.l.b16 %v485
      %v1053 = vunpack.c.l.b16 %v486
      %v1054 = vunpack.c.l.b16 %v487
      %v1055 = vpack.c.b16 %v1048, %v1047
      %v1056 = vpack.c.b16 %v1050, %v1049
      %v1057 = vpack.c.b16 %v1052, %v1051
      %v1058 = vpack.c.b16 %v1054, %v1053
      %v1059 = vunpack.c.l.b16 %v512
      %v1060 = vunpack.c.l.b16 %v526
      %v1061 = vunpack.c.l.b16 %v540
      %v1062 = vunpack.c.l.b16 %v554
      %v1063 = vunpack.c.l.b16 %v568
      %v1064 = vunpack.c.l.b16 %v582
      %v1065 = vunpack.c.l.b16 %v596
      %v1066 = vunpack.c.l.b16 %v610
      %v1067 = vpack.c.b16 %v1060, %v1059
      %v1068 = vpack.c.b16 %v1062, %v1061
      %v1069 = vpack.c.b16 %v1064, %v1063
      %v1070 = vpack.c.b16 %v1066, %v1065
      %1071 = vrot.lane.b32.xlu0 %v1067, 8
      %v1072 = vpop.permute.xlu0 %1071
      %1073 = vrot.lane.b32.xlu0 %v1068, 8
      %v1074 = vpop.permute.xlu0 %1073
      %1075 = vrot.lane.b32.xlu0 %v1069, 8
      %v1076 = vpop.permute.xlu0 %1075
      %1077 = vrot.lane.b32.xlu0 %v1070, 8
      %v1078 = vpop.permute.xlu0 %1077
      %v1079 = vunpack.c.l.b16 %v641
      %v1080 = vunpack.c.l.b16 %v645
      %v1081 = vunpack.c.l.b16 %v649
      %v1082 = vunpack.c.l.b16 %v653
      %v1083 = vunpack.c.l.b16 %v657
      %v1084 = vunpack.c.l.b16 %v661
      %v1085 = vunpack.c.l.b16 %v665
      %v1086 = vunpack.c.l.b16 %v669
      %v1087 = vpack.c.b16 %v1080, %v1079
      %v1088 = vpack.c.b16 %v1082, %v1081
      %v1089 = vpack.c.b16 %v1084, %v1083
      %v1090 = vpack.c.b16 %v1086, %v1085
      %1091 = vrot.lane.b32.xlu0 %v1087, 16
      %v1092 = vpop.permute.xlu0 %1091
      %1093 = vrot.lane.b32.xlu0 %v1088, 16
      %v1094 = vpop.permute.xlu0 %1093
      %1095 = vrot.lane.b32.xlu0 %v1089, 16
      %v1096 = vpop.permute.xlu0 %1095
      %1097 = vrot.lane.b32.xlu0 %v1090, 16
      %v1098 = vpop.permute.xlu0 %1097
      %v1107 = vunpack.c.l.b16 %v670
      %v1108 = vunpack.c.l.b16 %v671
      %v1109 = vunpack.c.l.b16 %v672
      %v1110 = vunpack.c.l.b16 %v673
      %v1111 = vunpack.c.l.b16 %v674
      %v1112 = vunpack.c.l.b16 %v675
      %v1113 = vunpack.c.l.b16 %v676
      %v1114 = vunpack.c.l.b16 %v677
      %v1115 = vpack.c.b16 %v1108, %v1107
      %v1116 = vpack.c.b16 %v1110, %v1109
      %v1117 = vpack.c.b16 %v1112, %v1111
      %v1118 = vpack.c.b16 %v1114, %v1113
      %1119 = vrot.lane.b32.xlu0 %v1115, 24
      %v1120 = vpop.permute.xlu0 %1119
      %1121 = vrot.lane.b32.xlu0 %v1116, 24
      %v1122 = vpop.permute.xlu0 %1121
      %1123 = vrot.lane.b32.xlu0 %v1117, 24
      %v1124 = vpop.permute.xlu0 %1123
      %1125 = vrot.lane.b32.xlu0 %v1118, 24
      %v1126 = vpop.permute.xlu0 %1125
      %v1127 = vunpack.c.l.b16 %v699
      %v1128 = vunpack.c.l.b16 %v713
      %v1129 = vunpack.c.l.b16 %v727
      %v1130 = vunpack.c.l.b16 %v741
      %v1131 = vunpack.c.l.b16 %v755
      %v1132 = vunpack.c.l.b16 %v769
      %v1133 = vunpack.c.l.b16 %v783
      %v1134 = vunpack.c.l.b16 %v797
      %v1135 = vpack.c.b16 %v1128, %v1127
      %v1136 = vpack.c.b16 %v1130, %v1129
      %v1137 = vpack.c.b16 %v1132, %v1131
      %v1138 = vpack.c.b16 %v1134, %v1133
      %1139 = vrot.lane.b32.xlu0 %v1135, 32
      %v1140 = vpop.permute.xlu0 %1139
      %1141 = vrot.lane.b32.xlu0 %v1136, 32
      %v1142 = vpop.permute.xlu0 %1141
      %1143 = vrot.lane.b32.xlu0 %v1137, 32
      %v1144 = vpop.permute.xlu0 %1143
      %1145 = vrot.lane.b32.xlu0 %v1138, 32
      %v1146 = vpop.permute.xlu0 %1145
      %v1147 = vunpack.c.l.b16 %v825
      %v1148 = vunpack.c.l.b16 %v829
      %v1149 = vunpack.c.l.b16 %v833
      %v1150 = vunpack.c.l.b16 %v837
      %v1151 = vunpack.c.l.b16 %v841
      %v1152 = vunpack.c.l.b16 %v845
      %v1153 = vunpack.c.l.b16 %v849
      %v1154 = vunpack.c.l.b16 %v853
      %v1155 = vpack.c.b16 %v1148, %v1147
      %v1156 = vpack.c.b16 %v1150, %v1149
      %v1157 = vpack.c.b16 %v1152, %v1151
      %v1158 = vpack.c.b16 %v1154, %v1153
      %1159 = vrot.lane.b32.xlu0 %v1155, 40
      %v1160 = vpop.permute.xlu0 %1159
      %1161 = vrot.lane.b32.xlu0 %v1156, 40
      %v1162 = vpop.permute.xlu0 %1161
      %1163 = vrot.lane.b32.xlu0 %v1157, 40
      %v1164 = vpop.permute.xlu0 %1163
      %1165 = vrot.lane.b32.xlu0 %v1158, 40
      %v1166 = vpop.permute.xlu0 %1165
      %v1175 = vunpack.c.l.b16 %v855
      %v1176 = vunpack.c.l.b16 %v856
      %v1177 = vunpack.c.l.b16 %v857
      %v1178 = vunpack.c.l.b16 %v858
      %v1179 = vunpack.c.l.b16 %v859
      %v1180 = vunpack.c.l.b16 %v860
      %v1181 = vunpack.c.l.b16 %v861
      %v1182 = vunpack.c.l.b16 %v862
      %v1183 = vpack.c.b16 %v1176, %v1175
      %v1184 = vpack.c.b16 %v1178, %v1177
      %v1185 = vpack.c.b16 %v1180, %v1179
      %v1186 = vpack.c.b16 %v1182, %v1181
      %1187 = vrot.lane.b32.xlu0 %v1183, 48
      %v1188 = vpop.permute.xlu0 %1187
      %1189 = vrot.lane.b32.xlu0 %v1184, 48
      %v1190 = vpop.permute.xlu0 %1189
      %1191 = vrot.lane.b32.xlu0 %v1185, 48
      %v1192 = vpop.permute.xlu0 %1191
      %1193 = vrot.lane.b32.xlu0 %v1186, 48
      %v1194 = vpop.permute.xlu0 %1193
      %v1195 = vunpack.c.l.b16 %v884
      %v1196 = vunpack.c.l.b16 %v898
      %v1197 = vunpack.c.l.b16 %v912
      %v1198 = vunpack.c.l.b16 %v926
      %v1199 = vunpack.c.l.b16 %v940
      %v1200 = vunpack.c.l.b16 %v954
      %v1201 = vunpack.c.l.b16 %v968
      %v1202 = vunpack.c.l.b16 %v982
      %v1203 = vpack.c.b16 %v1196, %v1195
      %v1204 = vpack.c.b16 %v1198, %v1197
      %v1205 = vpack.c.b16 %v1200, %v1199
      %v1206 = vpack.c.b16 %v1202, %v1201
      %1207 = vrot.lane.b32.xlu0 %v1203, 56
      %v1208 = vpop.permute.xlu0 %1207
      %1209 = vrot.lane.b32.xlu0 %v1204, 56
      %v1210 = vpop.permute.xlu0 %1209
      %1211 = vrot.lane.b32.xlu0 %v1205, 56
      %v1212 = vpop.permute.xlu0 %1211
      %1213 = vrot.lane.b32.xlu0 %v1206, 56
      %v1214 = vpop.permute.xlu0 %1213
      %v1215 = vunpack.c.l.b16 %v1010
      %v1216 = vunpack.c.l.b16 %v1014
      %v1217 = vunpack.c.l.b16 %v1018
      %v1218 = vunpack.c.l.b16 %v1022
      %v1219 = vunpack.c.l.b16 %v1026
      %v1220 = vunpack.c.l.b16 %v1030
      %v1221 = vunpack.c.l.b16 %v1034
      %v1222 = vunpack.c.l.b16 %v1038
      %v1223 = vpack.c.b16 %v1216, %v1215
      %v1224 = vpack.c.b16 %v1218, %v1217
      %v1225 = vpack.c.b16 %v1220, %v1219
      %v1226 = vpack.c.b16 %v1222, %v1221
      %1227 = vrot.lane.b32.xlu0 %v1223, 64
      %v1228 = vpop.permute.xlu0 %1227
      %1229 = vrot.lane.b32.xlu0 %v1224, 64
      %v1230 = vpop.permute.xlu0 %1229
      %1231 = vrot.lane.b32.xlu0 %v1225, 64
      %v1232 = vpop.permute.xlu0 %1231
      %1233 = vrot.lane.b32.xlu0 %v1226, 64
      %v1234 = vpop.permute.xlu0 %1233
      %vm1235 = vcmask 64512
      %v1238 = vsel %vm1235, %v1055, %v1072
      %v1241 = vsel %vm1235, %v1056, %v1074
      %v1244 = vsel %vm1235, %v1057, %v1076
      %v1247 = vsel %vm1235, %v1058, %v1078
      %vm1248 = vcmask 130048
      %v1250 = vsel %vm1248, %v1238, %v1092
      %v1252 = vsel %vm1248, %v1241, %v1094
      %v1254 = vsel %vm1248, %v1244, %v1096
      %v1256 = vsel %vm1248, %v1247, %v1098
      %vm1257 = vcmask 195584
      %v1259 = vsel %vm1257, %v1250, %v1120
      %v1261 = vsel %vm1257, %v1252, %v1122
      %v1263 = vsel %vm1257, %v1254, %v1124
      %v1265 = vsel %vm1257, %v1256, %v1126
      %vm1266 = vcmask 261120
      %v1268 = vsel %vm1266, %v1259, %v1140
      %v1270 = vsel %vm1266, %v1261, %v1142
      %v1272 = vsel %vm1266, %v1263, %v1144
      %v1274 = vsel %vm1266, %v1265, %v1146
      %vm1275 = vcmask 326656
      %v1277 = vsel %vm1275, %v1268, %v1160
      %v1279 = vsel %vm1275, %v1270, %v1162
      %v1281 = vsel %vm1275, %v1272, %v1164
      %v1283 = vsel %vm1275, %v1274, %v1166
      %vm1284 = vcmask 392192
      %v1286 = vsel %vm1284, %v1277, %v1188
      %v1288 = vsel %vm1284, %v1279, %v1190
      %v1290 = vsel %vm1284, %v1281, %v1192
      %v1292 = vsel %vm1284, %v1283, %v1194
      %vm1293 = vcmask 457728
      %v1295 = vsel %vm1293, %v1286, %v1208
      %v1297 = vsel %vm1293, %v1288, %v1210
      %v1299 = vsel %vm1293, %v1290, %v1212
      %v1301 = vsel %vm1293, %v1292, %v1214
      %vm1302 = vcmask 523264
      %v1304 = vsel %vm1302, %v1295, %v1228
      %v1306 = vsel %vm1302, %v1297, %v1230
      %v1308 = vsel %vm1302, %v1299, %v1232
      %v1310 = vsel %vm1302, %v1301, %v1234
      %v1311 = vld [vmem:[%s1] sm:$0xf]
      %v1312 = vld [vmem:[%s1 + $0x4] sm:$0xf]
      %v1313 = vld [vmem:[%s1 + $0x8] sm:$0xf]
      %v1314 = vld [vmem:[%s1 + $0xc] sm:$0xf]
      %v1315 = vld [vmem:[%s1 + $0x10] sm:$0xf]
      %v1316 = vld [vmem:[%s1 + $0x14] sm:$0xf]
      %v1317 = vld [vmem:[%s1 + $0x18] sm:$0xf]
      %v1318 = vld [vmem:[%s1 + $0x1c] sm:$0xf]
      %v1319 = vld [vmem:[%s1 + $0x20] sm:$0xf]
      %v1329 = vunpack.c.l.b16 %v1311
      %v1330 = vunpack.c.l.b16 %v1312
      %v1331 = vunpack.c.l.b16 %v1313
      %v1332 = vunpack.c.l.b16 %v1314
      %v1333 = vunpack.c.l.b16 %v1315
      %v1334 = vunpack.c.l.b16 %v1316
      %v1335 = vunpack.c.l.b16 %v1317
      %v1336 = vunpack.c.l.b16 %v1318
      %v1337 = vunpack.c.l.b16 %v1319
      %v1338 = vpack.c.b16 %v1330, %v1329
      %v1339 = vpack.c.b16 %v1332, %v1331
      %v1340 = vpack.c.b16 %v1334, %v1333
      %v1341 = vpack.c.b16 %v1336, %v1335
      %v1342 = vpack.c.b16 %v1337, %v1337
      %vm1347 = vcmask 588800
      %v1348 = vsel %vm1347, %v1304, 0
      %v1350 = vsel %vm1347, %v1306, 0
      %v1352 = vsel %vm1347, %v1308, 0
      %v1354 = vsel %vm1347, %v1310, 0
      %vm1356 = vcmask 1043456
      %v1358 = vsel %vm1356, %v1342, 0
      %1360 = vmatprep.subr.bf16.mxu0 0
      %1361 = vmatpush1.bf16.msra.mxu0 %v1338
      %1362 = vmatprep.subr.bf16.mxu0 0
      %1363 = vmatpush1.bf16.msra.mxu0 %v1339
      %1364 = vmatprep.subr.bf16.mxu0 0
      %1365 = vmatpush1.bf16.msra.mxu0 %v1340
      %1366 = vmatprep.subr.bf16.mxu0 0
      %1367 = vmatpush1.bf16.msra.mxu0 %v1341
      %1368 = vmatprep.subr.bf16.mxu0 0
      %1369 = vmatpush1.bf16.msra.mxu0 %v1358
      %1370 = vmatprep.subr.bf16.mxu0 0
      %1371 = vmatpush1.bf16.msra.mxu0 0
      %1372 = vmatprep.subr.bf16.mxu0 0
      %1373 = vmatpush1.bf16.msra.mxu0 0
      %1374 = vmatprep.subr.bf16.mxu0 0
      %1375 = vmatpush1.bf16.msra.mxu0 0
      %1376 = vmatprep.subr.bf16.mxu0 0
      %1377 = vmatpush1.bf16.msra.mxu0 0
      %1378 = vmatprep.subr.bf16.mxu0 0
      %1379 = vmatpush1.bf16.msra.mxu0 0
      %1380 = vmatprep.subr.bf16.mxu0 0
      %1381 = vmatpush1.bf16.msra.mxu0 0
      %1382 = vmatprep.subr.bf16.mxu0 0
      %1383 = vmatpush1.bf16.msra.mxu0 0
      %1384 = vmatprep.subr.bf16.mxu0 0
      %1385 = vmatpush1.bf16.msra.mxu0 0
      %1386 = vmatprep.subr.bf16.mxu0 0
      %1387 = vmatpush1.bf16.msra.mxu0 0
      %1388 = vmatprep.subr.bf16.mxu0 0
      %1389 = vmatpush1.bf16.msra.mxu0 0
      %1390 = vmatprep.subr.bf16.mxu0 0
      %1391 = vmatpush1.bf16.msra.mxu0 0
      %1392 = vmatprep.mubr.bf16.mxu0 0
      %1393 = vmatmul.mubr.bf16.gmra.mrb[0].mxu0 %v1348
      %v1394 = vpop.f32.mrb[0].mxu0
      %v1395 = vadd.f32 0.0, %v1394
      %v1396 = vpop.f32.mrb[0].mxu0
      %v1397 = vpop.f32.mrb[0].mxu0
      %v1398 = vadd.f32 0.0, %v1397
      %v1399 = vpop.f32.mrb[0].mxu0
      %1400 = vmatprep.mubr.bf16.mxu0 0
      %1401 = vmatmul.mubr.bf16.gmra.mrb[0].mxu0 %v1350
      %v1402 = vpop.f32.mrb[0].mxu0
      %v1403 = vadd.f32 0.0, %v1402
      %v1404 = vpop.f32.mrb[0].mxu0
      %v1405 = vpop.f32.mrb[0].mxu0
      %v1406 = vadd.f32 0.0, %v1405
      %v1407 = vpop.f32.mrb[0].mxu0
      %1408 = vmatprep.mubr.bf16.mxu0 0
      %1409 = vmatmul.mubr.bf16.gmra.mrb[0].mxu0 %v1352
      %v1410 = vpop.f32.mrb[0].mxu0
      %v1411 = vadd.f32 0.0, %v1410
      %v1412 = vpop.f32.mrb[0].mxu0
      %v1413 = vpop.f32.mrb[0].mxu0
      %v1414 = vadd.f32 0.0, %v1413
      %v1415 = vpop.f32.mrb[0].mxu0
      %1416 = vmatprep.mubr.bf16.mxu0 0
      %1417 = vmatmul.mubr.bf16.gmra.mrb[0].mxu0 %v1354
      %v1418 = vpop.f32.mrb[0].mxu0
      %v1419 = vadd.f32 0.0, %v1418
      %v1420 = vpop.f32.mrb[0].mxu0
      %v1421 = vpop.f32.mrb[0].mxu0
      %v1422 = vadd.f32 0.0, %v1421
      %v1423 = vpop.f32.mrb[0].mxu0
      %1424 = vdwg.mxu0
      %v1425 = vsel %vm1235, %v1395, 0.0
      %v1426 = vsel %vm1235, %v1398, 0.0
      %v1427 = vadd.f32 %v1425, %v1426
      %v1428 = vsel %vm1235, %v1403, 0.0
      %v1429 = vadd.f32 %v1427, %v1428
      %v1430 = vsel %vm1235, %v1406, 0.0
      %v1431 = vadd.f32 %v1429, %v1430
      %v1432 = vsel %vm1235, %v1411, 0.0
      %v1433 = vadd.f32 %v1431, %v1432
      %v1434 = vsel %vm1235, %v1414, 0.0
      %v1435 = vadd.f32 %v1433, %v1434
      %v1436 = vsel %vm1235, %v1419, 0.0
      %v1437 = vadd.f32 %v1435, %v1436
      %v1438 = vsel %vm1235, %v1422, 0.0
      %v1439 = vadd.f32 %v1437, %v1438
      %v1440 = vrot.slane %v1439, 4
      %v1441 = vadd.f32 %v1439, %v1440
      %v1442 = vrot.slane %v1441, 2
      %v1443 = vadd.f32 %v1441, %v1442
      %v1444 = vrot.slane %v1443, 1
      %v1445 = vadd.f32 %v1443, %v1444
      %v1446 = vmul.f32 %v1395, %v1395
      %v1447 = vmul.f32 %v1398, %v1398
      %v1448 = vmul.f32 %v1403, %v1403
      %v1449 = vmul.f32 %v1406, %v1406
      %v1450 = vmul.f32 %v1411, %v1411
      %v1451 = vmul.f32 %v1414, %v1414
      %v1452 = vmul.f32 %v1419, %v1419
      %v1453 = vmul.f32 %v1422, %v1422
      %v1454 = vsel %vm1235, %v1446, 0.0
      %v1455 = vsel %vm1235, %v1447, 0.0
      %v1456 = vadd.f32 %v1454, %v1455
      %v1457 = vsel %vm1235, %v1448, 0.0
      %v1458 = vadd.f32 %v1456, %v1457
      %v1459 = vsel %vm1235, %v1449, 0.0
      %v1460 = vadd.f32 %v1458, %v1459
      %v1461 = vsel %vm1235, %v1450, 0.0
      %v1462 = vadd.f32 %v1460, %v1461
      %v1463 = vsel %vm1235, %v1451, 0.0
      %v1464 = vadd.f32 %v1462, %v1463
      %v1465 = vsel %vm1235, %v1452, 0.0
      %v1466 = vadd.f32 %v1464, %v1465
      %v1467 = vsel %vm1235, %v1453, 0.0
      %v1468 = vadd.f32 %v1466, %v1467
      %v1469 = vrot.slane %v1468, 4
      %v1470 = vadd.f32 %v1468, %v1469
      %v1471 = vrot.slane %v1470, 2
      %v1472 = vadd.f32 %v1470, %v1471
      %v1473 = vrot.slane %v1472, 1
      %v1474 = vadd.f32 %v1472, %v1473
      %vm1475 = vcmask 1040384
      %v1476 = vsel %vm1475, %v1445, %v1474
      %vm1477 = vcmask 58368
      %1478 = vst.msk [vmem:[%s235] sm:$0x3] %vm1477, %v1476
      %v1479 = vpack.c.bf16 %v1398, %v1395
      %v1480 = vpack.c.bf16 %v1406, %v1403
      %v1481 = vpack.c.bf16 %v1414, %v1411
      %v1482 = vpack.c.bf16 %v1422, %v1419
      %v1487 = vunpack.c.l.b16 %v1479
      %v1488 = vunpack.c.h.b16 %v1479
      %v1489 = vunpack.c.l.b16 %v1480
      %v1490 = vunpack.c.h.b16 %v1480
      %v1491 = vunpack.c.l.b16 %v1481
      %v1492 = vunpack.c.h.b16 %v1481
      %v1493 = vunpack.c.l.b16 %v1482
      %v1494 = vunpack.c.h.b16 %v1482
      %v1495 = vpack.c.b16 %v1487, %v1487
      %v1496 = vpack.c.b16 %v1488, %v1488
      %v1497 = vpack.c.b16 %v1489, %v1489
      %v1498 = vpack.c.b16 %v1490, %v1490
      %v1499 = vpack.c.b16 %v1491, %v1491
      %v1500 = vpack.c.b16 %v1492, %v1492
      %v1501 = vpack.c.b16 %v1493, %v1493
      %v1502 = vpack.c.b16 %v1494, %v1494
      %1511 = vst.msk [vmem:[%s231] sm:$0xf] %vm237, %v1495
      %1512 = vst.msk [vmem:[%s231 + $0x4] sm:$0xf] %vm237, %v1496
      %1513 = vst.msk [vmem:[%s231 + $0x8] sm:$0xf] %vm237, %v1497
      %1514 = vst.msk [vmem:[%s231 + $0xc] sm:$0xf] %vm237, %v1498
      %1515 = vst.msk [vmem:[%s231 + $0x10] sm:$0xf] %vm237, %v1499
      %1516 = vst.msk [vmem:[%s231 + $0x14] sm:$0xf] %vm237, %v1500
      %1517 = vst.msk [vmem:[%s231 + $0x18] sm:$0xf] %vm237, %v1501
      %1518 = vst.msk [vmem:[%s231 + $0x1c] sm:$0xf] %vm237, %v1502
      %p1519 = scmp.lt.s32.totalorder %s17, 1
      %s1520 = scalar_select %p1519, %s17, 1
      %s1521 = smul.addr %s1520, 8
      %s1522 = smul.addr %s1521, 4
      %s1523 = scalar_lea.vmem %s4, %s1522
      %p1524 = scmp.lt.s32.totalorder %s17, 1
      %s1525 = scalar_select %p1524, %s17, 1
      %s1526 = smul.addr %s1525, 2
      %s1527 = scalar_lea.vmem %s5, %s1526
      // Predicated region
      $region37: #{_basic_block_fwd.4} parent=35 // pred_check
        %p1528 = pneg %p124
      $region38: #{_basic_block_fwd.4} parent=35 // pred_check_branch
        %1530 = sbr.rel (%p1528) target = $region40
      $region39: #{_basic_block_fwd.4} parent=35 // pred_region
        _
      $region40: #{_basic_block_fwd.4} parent=35 // pred_fallthru
        _
      // Predicated region
      $region41: #{_basic_block_fwd.4} parent=35 // pred_check
        %p1531 = pneg %p150
      $region42: #{_basic_block_fwd.4} parent=35 // pred_check_branch
        %1533 = sbr.rel (%p1531) target = $region44
      $region43: #{_basic_block_fwd.4} parent=35 // pred_region
        _
      $region44: #{_basic_block_fwd.4} parent=35 // pred_fallthru
        _
    $region36: #{_basic_block_fwd.4} parent=5 // pred_fallthru
      _
    %p1534 = scmp.le.s32.totalorder 2, %s12
    // Predicated region
    $region45: #{_basic_block_fwd.4} parent=5 // pred_check
      %p1535 = pneg %p1534
    $region46: #{_basic_block_fwd.4} parent=5 // pred_check_branch
      %1537 = sbr.rel (%p1535) target = $region48
    $region47: #{_basic_block_fwd.4} parent=5 // pred_region
      %s1538 = ssub.s32 %s12, 2
      // Predicated region
      $region49: #{_basic_block_fwd.4} parent=47 // pred_check
        %p1539 = pneg %p130
      $region50: #{_basic_block_fwd.4} parent=47 // pred_check_branch
        %1541 = sbr.rel (%p1539) target = $region52
      $region51: #{_basic_block_fwd.4} parent=47 // pred_region
        %p1542 = scmp.lt.s32.totalorder %s18, 1
        %s1543 = scalar_select %p1542, %s18, 1
        %s1544 = smul.addr %s1543, 8
        %s1545 = smul.addr %s1544, 4
        %s1546 = scalar_lea.vmem %s4, %s1545
      $region52: #{_basic_block_fwd.4} parent=47 // pred_fallthru
        _
      // Predicated region
      $region53: #{_basic_block_fwd.4} parent=47 // pred_check
        %p1547 = pneg %p156
      $region54: #{_basic_block_fwd.4} parent=47 // pred_check_branch
        %1549 = sbr.rel (%p1547) target = $region56
      $region55: #{_basic_block_fwd.4} parent=47 // pred_region
        %p1550 = scmp.lt.s32.totalorder %s18, 1
        %s1551 = scalar_select %p1550, %s18, 1
        %s1552 = smul.addr %s1551, 2
        %s1553 = scalar_lea.vmem %s5, %s1552
      $region56: #{_basic_block_fwd.4} parent=47 // pred_fallthru
        _
    $region48: #{_basic_block_fwd.4} parent=5 // pred_fallthru
      _
  $region6: #{_basic_block_fwd.4} parent=0 // loop_footer
    %s16 = sadd.s32 1, %s12
  $region7: #{_basic_block_fwd.4} parent=0 // loop_footer_branch
    %11 = sbr.rel target = $region3
  $region8: #{_basic_block_fwd.4} parent=0 // loop_exit
    _

// kernel: _basic_block_fwd.3
$region0: #{_basic_block_fwd.3}
  #allocation0 [shape = 'u32[]', space=smem, size = 0x4, offset = 0x4, fixed_abs, tag = 'smem constant byte address 0x4 - core index']
  #allocation1 [shape = 'u32[144,128]{1,0:T(1,128)}', space=vmem, size = 0x12000, scoped, tag = 'internal scratch']
  %s0 = inlined_call_operand.vmem [shape: bf16[8,9,9,4], index: 0, kind: input, shape index: {}]
  %s1 = inlined_call_operand.vmem [shape: bf16[36,8], index: 1, kind: input, shape index: {}]
  %s2 = inlined_call_operand.vmem [shape: bf16[4,8], index: 2, kind: input, shape index: {}]
  %s3 = inlined_call_operand.vmem [shape: bf16[2,64,8], index: 3, kind: output, shape index: {0}]
  %s4 = inlined_call_operand.vmem [shape: f32[2,2,8], index: 4, kind: output, shape index: {1}]
  %s5 = inlined_call_operand.vmem [shape: bf16[2,64,8], index: 5, kind: output, shape index: {2}]
  %s6 = inlined_call_operand.vmem [shape: f32[2,2,8], index: 6, kind: output, shape index: {3}]
  %7 = xla_tuple %s3, %s4, %s5, %s6
  %s8 = sld [smem:[#allocation0]]
  $region69: #{_basic_block_fwd.3} parent=0
    _
  %s10 = ssub.s32 1, %s8
  %s11 = scalar_select 0, %s10, %s8
  loop: start=0, step=1, limit=4
  $region2: #{_basic_block_fwd.3} parent=0 // loop_pre_header
    _
  $region3: #{_basic_block_fwd.3} parent=0 // loop_header
    %s13 = sphi 0, %s17
    %p14 = scmp.ge.s32.totalorder %s13, 4
    %s23 = sphi 0, %s25
    %s26 = sphi 0, %s23
    %s27 = sphi 0, %s26
    %s43 = sphi 0, %s27
    %s47 = sphi 0, %s47
    %s49 = sphi 0, %s47
    %s50 = sphi 0, %s49
    %s64 = sphi 0, %s50
    %s68 = sphi 0, %s68
    %s70 = sphi 0, %s68
    %s71 = sphi 0, %s70
    %s85 = sphi 0, %s71
    %s91 = sphi 0, %s93
    %s94 = sphi 0, %s91
    %s95 = sphi 0, %s94
    %s111 = sphi 0, %s95
    %s117 = sphi 0, %s119
    %s120 = sphi 0, %s117
    %s121 = sphi 0, %s120
    %s137 = sphi 0, %s121
    %s143 = sphi 0, %s145
    %s146 = sphi 0, %s143
    %s147 = sphi 0, %s146
    %s163 = sphi 0, %s147
    %s169 = sphi 0, %s171
    %s172 = sphi 0, %s169
    %s173 = sphi 0, %s172
    %s189 = sphi 0, %s173
  $region4: #{_basic_block_fwd.3} parent=0 // loop_header_branch
    %16 = sbr.rel (%p14) target = $region8
  $region5: #{_basic_block_fwd.3} parent=0 // loop_body
    %s18 = ssub.s32 %s13, 1
    %s19 = ssub.s32 %s13, 2
    %s20 = sadd.s32 %s13, 1
    %s21 = ssub.s32 %s13, %s20
    %p22 = scmp.eq.s32.totalorder %s21, 0
    %s24 = sadd.s32 %s23, 1
    %s25 = scalar_select %p22, %s23, %s24
    %p28 = pneg %p22
    %p29 = scmp.eq.s32.totalorder %s13, 1
    %p30 = por %p28, %p29
    %p31 = scmp.ne.s32.totalorder %s23, %s26
    %p32 = scmp.eq.s32.totalorder %s13, 0
    %p33 = por %p31, %p32
    %p34 = scmp.ne.s32.totalorder %s23, %s26
    %p35 = scmp.eq.s32.totalorder %s18, 1
    %p36 = por %p34, %p35
    %p37 = scmp.ne.s32.totalorder %s26, %s27
    %p38 = scmp.eq.s32.totalorder %s18, 0
    %p39 = por %p37, %p38
    %p40 = scmp.ne.s32.totalorder %s26, %s27
    %p41 = scmp.eq.s32.totalorder %s19, 1
    %p42 = por %p40, %p41
    %p44 = scmp.ne.s32.totalorder %s27, %s43
    %p45 = scmp.eq.s32.totalorder %s19, 0
    %p46 = por %p44, %p45
    %s48 = sadd.s32 %s47, 1
    %p51 = scmp.eq.s32.totalorder %s13, 1
    %p52 = scmp.ne.s32.totalorder %s47, %s49
    %p53 = scmp.eq.s32.totalorder %s13, 0
    %p54 = por %p52, %p53
    %p55 = scmp.ne.s32.totalorder %s47, %s49
    %p56 = scmp.eq.s32.totalorder %s18, 1
    %p57 = por %p55, %p56
    %p58 = scmp.ne.s32.totalorder %s49, %s50
    %p59 = scmp.eq.s32.totalorder %s18, 0
    %p60 = por %p58, %p59
    %p61 = scmp.ne.s32.totalorder %s49, %s50
    %p62 = scmp.eq.s32.totalorder %s19, 1
    %p63 = por %p61, %p62
    %p65 = scmp.ne.s32.totalorder %s50, %s64
    %p66 = scmp.eq.s32.totalorder %s19, 0
    %p67 = por %p65, %p66
    %s69 = sadd.s32 %s68, 1
    %p72 = scmp.eq.s32.totalorder %s13, 1
    %p73 = scmp.ne.s32.totalorder %s68, %s70
    %p74 = scmp.eq.s32.totalorder %s13, 0
    %p75 = por %p73, %p74
    %p76 = scmp.ne.s32.totalorder %s68, %s70
    %p77 = scmp.eq.s32.totalorder %s18, 1
    %p78 = por %p76, %p77
    %p79 = scmp.ne.s32.totalorder %s70, %s71
    %p80 = scmp.eq.s32.totalorder %s18, 0
    %p81 = por %p79, %p80
    %p82 = scmp.ne.s32.totalorder %s70, %s71
    %p83 = scmp.eq.s32.totalorder %s19, 1
    %p84 = por %p82, %p83
    %p86 = scmp.ne.s32.totalorder %s71, %s85
    %p87 = scmp.eq.s32.totalorder %s19, 0
    %p88 = por %p86, %p87
    %s89 = ssub.s32 %s13, %s20
    %p90 = scmp.eq.s32.totalorder %s89, 0
    %s92 = sadd.s32 %s91, 1
    %s93 = scalar_select %p90, %s91, %s92
    %p96 = pneg %p90
    %p97 = scmp.eq.s32.totalorder %s13, 1
    %p98 = por %p96, %p97
    %p99 = scmp.ne.s32.totalorder %s91, %s94
    %p100 = scmp.eq.s32.totalorder %s13, 0
    %p101 = por %p99, %p100
    %p102 = scmp.ne.s32.totalorder %s91, %s94
    %p103 = scmp.eq.s32.totalorder %s18, 1
    %p104 = por %p102, %p103
    %p105 = scmp.ne.s32.totalorder %s94, %s95
    %p106 = scmp.eq.s32.totalorder %s18, 0
    %p107 = por %p105, %p106
    %p108 = scmp.ne.s32.totalorder %s94, %s95
    %p109 = scmp.eq.s32.totalorder %s19, 1
    %p110 = por %p108, %p109
    %p112 = scmp.ne.s32.totalorder %s95, %s111
    %p113 = scmp.eq.s32.totalorder %s19, 0
    %p114 = por %p112, %p113
    %s115 = ssub.s32 %s13, %s20
    %p116 = scmp.eq.s32.totalorder %s115, 0
    %s118 = sadd.s32 %s117, 1
    %s119 = scalar_select %p116, %s117, %s118
    %p122 = pneg %p116
    %p123 = scmp.eq.s32.totalorder %s13, 1
    %p124 = por %p122, %p123
    %p125 = scmp.ne.s32.totalorder %s117, %s120
    %p126 = scmp.eq.s32.totalorder %s13, 0
    %p127 = por %p125, %p126
    %p128 = scmp.ne.s32.totalorder %s117, %s120
    %p129 = scmp.eq.s32.totalorder %s18, 1
    %p130 = por %p128, %p129
    %p131 = scmp.ne.s32.totalorder %s120, %s121
    %p132 = scmp.eq.s32.totalorder %s18, 0
    %p133 = por %p131, %p132
    %p134 = scmp.ne.s32.totalorder %s120, %s121
    %p135 = scmp.eq.s32.totalorder %s19, 1
    %p136 = por %p134, %p135
    %p138 = scmp.ne.s32.totalorder %s121, %s137
    %p139 = scmp.eq.s32.totalorder %s19, 0
    %p140 = por %p138, %p139
    %s141 = ssub.s32 %s13, %s20
    %p142 = scmp.eq.s32.totalorder %s141, 0
    %s144 = sadd.s32 %s143, 1
    %s145 = scalar_select %p142, %s143, %s144
    %p148 = pneg %p142
    %p149 = scmp.eq.s32.totalorder %s13, 1
    %p150 = por %p148, %p149
    %p151 = scmp.ne.s32.totalorder %s143, %s146
    %p152 = scmp.eq.s32.totalorder %s13, 0
    %p153 = por %p151, %p152
    %p154 = scmp.ne.s32.totalorder %s143, %s146
    %p155 = scmp.eq.s32.totalorder %s18, 1
    %p156 = por %p154, %p155
    %p157 = scmp.ne.s32.totalorder %s146, %s147
    %p158 = scmp.eq.s32.totalorder %s18, 0
    %p159 = por %p157, %p158
    %p160 = scmp.ne.s32.totalorder %s146, %s147
    %p161 = scmp.eq.s32.totalorder %s19, 1
    %p162 = por %p160, %p161
    %p164 = scmp.ne.s32.totalorder %s147, %s163
    %p165 = scmp.eq.s32.totalorder %s19, 0
    %p166 = por %p164, %p165
    %s167 = ssub.s32 %s13, %s20
    %p168 = scmp.eq.s32.totalorder %s167, 0
    %s170 = sadd.s32 %s169, 1
    %s171 = scalar_select %p168, %s169, %s170
    %p174 = pneg %p168
    %p175 = scmp.eq.s32.totalorder %s13, 1
    %p176 = por %p174, %p175
    %p177 = scmp.ne.s32.totalorder %s169, %s172
    %p178 = scmp.eq.s32.totalorder %s13, 0
    %p179 = por %p177, %p178
    %p180 = scmp.ne.s32.totalorder %s169, %s172
    %p181 = scmp.eq.s32.totalorder %s18, 1
    %p182 = por %p180, %p181
    %p183 = scmp.ne.s32.totalorder %s172, %s173
    %p184 = scmp.eq.s32.totalorder %s18, 0
    %p185 = por %p183, %p184
    %p186 = scmp.ne.s32.totalorder %s172, %s173
    %p187 = scmp.eq.s32.totalorder %s19, 1
    %p188 = por %p186, %p187
    %p190 = scmp.ne.s32.totalorder %s173, %s189
    %p191 = scmp.eq.s32.totalorder %s19, 0
    %p192 = por %p190, %p191
    %p193 = scmp.le.s32.totalorder 1, %s13
    %p194 = scmp.lt.s32.totalorder %s13, 3
    %p195 = pnand %p193, %p194
    %p196 = pneg %p195
    // Predicated region
    $region9: #{_basic_block_fwd.3} parent=5 // pred_check
      _
    $region10: #{_basic_block_fwd.3} parent=5 // pred_check_branch
      %198 = sbr.rel (%p195) target = $region12
    $region11: #{_basic_block_fwd.3} parent=5 // pred_region
      %s199 = ssub.s32 %s13, 1
      // Predicated region
      $region13: #{_basic_block_fwd.3} parent=11 // pred_check
        %p200 = pneg %p60
      $region14: #{_basic_block_fwd.3} parent=11 // pred_check_branch
        %202 = sbr.rel (%p200) target = $region16
      $region15: #{_basic_block_fwd.3} parent=11 // pred_region
        _
      $region16: #{_basic_block_fwd.3} parent=11 // pred_fallthru
        _
      // Predicated region
      $region17: #{_basic_block_fwd.3} parent=11 // pred_check
        %p203 = pneg %p81
      $region18: #{_basic_block_fwd.3} parent=11 // pred_check_branch
        %205 = sbr.rel (%p203) target = $region20
      $region19: #{_basic_block_fwd.3} parent=11 // pred_region
        _
      $region20: #{_basic_block_fwd.3} parent=11 // pred_fallthru
        _
    $region12: #{_basic_block_fwd.3} parent=5 // pred_fallthru
      _
    %p206 = scmp.lt.s32.totalorder %s13, 2
    // Predicated region
    $region21: #{_basic_block_fwd.3} parent=5 // pred_check
      %p207 = pneg %p206
    $region22: #{_basic_block_fwd.3} parent=5 // pred_check_branch
      %209 = sbr.rel (%p207) target = $region24
    $region23: #{_basic_block_fwd.3} parent=5 // pred_region
      // Predicated region
      $region25: #{_basic_block_fwd.3} parent=23 // pred_check
        %p210 = pneg %p33
      $region26: #{_basic_block_fwd.3} parent=23 // pred_check_branch
        %212 = sbr.rel (%p210) target = $region28
      $region27: #{_basic_block_fwd.3} parent=23 // pred_region
        %s213 = smul.u32 4, %s13
        %p214 = scmp.lt.s32.totalorder %s213, 7
        %s215 = scalar_select %p214, %s213, 7
        %s216 = smul.addr %s215, 18
        %s217 = smul.addr %s216, 4
        %s218 = scalar_lea.vmem %s0, %s217
        %s219 = smul.u32 4, %s13
      $region28: #{_basic_block_fwd.3} parent=23 // pred_fallthru
        _
    $region24: #{_basic_block_fwd.3} parent=5 // pred_fallthru
      _
    %p220 = scmp.le.s32.totalorder 1, %s13
    %p221 = scmp.lt.s32.totalorder %s13, 3
    %p222 = pnand %p220, %p221
    %p223 = pneg %p222
    // Predicated region
    $region29: #{_basic_block_fwd.3} parent=5 // pred_check
      _
    $region30: #{_basic_block_fwd.3} parent=5 // pred_check_branch
      %225 = sbr.rel (%p222) target = $region32
    $region31: #{_basic_block_fwd.3} parent=5 // pred_region
      %s226 = ssub.s32 %s13, 1
      %s227 = smul.u32 4, %s18
      %p228 = scmp.lt.s32.totalorder %s227, 7
      %s229 = scalar_select %p228, %s227, 7
      %s230 = smul.addr %s229, 18
      %s231 = smul.addr %s230, 4
      %s232 = scalar_lea.vmem %s0, %s231
      %p233 = pneg %p39
      %p234 = pneg %p36
      %p235 = pneg %p60
      %p236 = pneg %p57
      %p237 = pneg %p81
      %p238 = pneg %p78
      %p239 = pneg %p107
      %p240 = pneg %p104
      %p241 = scmp.lt.s32.totalorder %s18, 1
      %s242 = scalar_select %p241, %s18, 1
      %s243 = smul.addr %s242, 8
      %s244 = smul.addr %s243, 4
      %s245 = scalar_lea.vmem %s3, %s244
      %p246 = pneg %p133
      %p247 = pneg %p130
      %p248 = scmp.lt.s32.totalorder %s18, 1
      %s249 = scalar_select %p248, %s18, 1
      %s250 = smul.addr %s249, 2
      %s251 = scalar_lea.vmem %s4, %s250
      %p252 = pneg %p159
      %p253 = pneg %p156
      %p254 = scmp.lt.s32.totalorder %s18, 1
      %s255 = scalar_select %p254, %s18, 1
      %s256 = smul.addr %s255, 8
      %s257 = smul.addr %s256, 4
      %s258 = scalar_lea.vmem %s5, %s257
      %p259 = pneg %p185
      %p260 = pneg %p182
      %p261 = scmp.lt.s32.totalorder %s18, 1
      %s262 = scalar_select %p261, %s18, 1
      %s263 = smul.addr %s262, 2
      %s264 = scalar_lea.vmem %s6, %s263
      %s265 = smul.u32 4, %s18
      %p266 = scmp.lt.s32.totalorder %s265, 7
      %s267 = scalar_select %p266, %s265, 7
      %s268 = smul.addr %s267, 18
      %s269 = smul.addr %s268, 4
      %s270 = scalar_lea.vmem %s0, %s269
      %s271 = smul.u32 4, %s18
      %p272 = scmp.lt.s32.totalorder %s18, 1
      %s273 = scalar_select %p272, %s18, 1
      %s274 = smul.addr %s273, 8
      %s275 = smul.addr %s274, 4
      %s276 = scalar_lea.vmem %s3, %s275
      %p277 = scmp.lt.s32.totalorder %s18, 1
      %s278 = scalar_select %p277, %s18, 1
      %s279 = smul.addr %s278, 2
      %s280 = scalar_lea.vmem %s4, %s279
      %p281 = scmp.lt.s32.totalorder %s18, 1
      %s282 = scalar_select %p281, %s18, 1
      %s283 = smul.addr %s282, 8
      %s284 = smul.addr %s283, 4
      %s285 = scalar_lea.vmem %s5, %s284
      %p286 = scmp.lt.s32.totalorder %s18, 1
      %s287 = scalar_select %p286, %s18, 1
      %s288 = smul.addr %s287, 2
      %s289 = scalar_lea.vmem %s6, %s288
      %v291 = vld [vmem:[%s270] sm:$0xf]
      %v292 = vld [vmem:[%s270 + $0x8] sm:$0xf]
      %v293 = vld [vmem:[%s270 + $0x10] sm:$0xf]
      %v294 = vld [vmem:[%s270 + $0x18] sm:$0xf]
      %v295 = vld [vmem:[%s270 + $0x20] sm:$0xf]
      %v296 = vld [vmem:[%s270 + $0x28] sm:$0xf]
      %v297 = vld [vmem:[%s270 + $0x30] sm:$0xf]
      %v298 = vld [vmem:[%s270 + $0x38] sm:$0xf]
      %s299 = scalar_lea.vmem %s270, 72
      %v300 = vld [vmem:[%s299] sm:$0xf]
      %v301 = vld [vmem:[%s299 + $0x8] sm:$0xf]
      %v302 = vld [vmem:[%s299 + $0x10] sm:$0xf]
      %v303 = vld [vmem:[%s299 + $0x18] sm:$0xf]
      %v304 = vld [vmem:[%s299 + $0x20] sm:$0xf]
      %v305 = vld [vmem:[%s299 + $0x28] sm:$0xf]
      %v306 = vld [vmem:[%s299 + $0x30] sm:$0xf]
      %v307 = vld [vmem:[%s299 + $0x38] sm:$0xf]
      %v308 = vld [vmem:[%s270 + $0x4] sm:$0x1]
      %v309 = vld [vmem:[%s270 + $0xc] sm:$0x1]
      %v310 = vld [vmem:[%s270 + $0x14] sm:$0x1]
      %v311 = vld [vmem:[%s270 + $0x1c] sm:$0x1]
      %v312 = vld [vmem:[%s270 + $0x24] sm:$0x1]
      %v313 = vld [vmem:[%s270 + $0x2c] sm:$0x1]
      %v314 = vld [vmem:[%s270 + $0x34] sm:$0x1]
      %v315 = vld [vmem:[%s270 + $0x3c] sm:$0x1]
      %vm316 = vsmask.f32 3328
      %vm317 = vsmask.f32 7440
      %vm318 = vmor %vm316, %vm317
      %v320 = vshrl.u32 %v291, 16
      %v322 = vrot.slane %v320, 4
      %v323 = vshll.u32 %v291, 16
      %v325 = vrot.slane %v323, 5
      %v326 = vor.u32 %v322, %v325
      %v327 = vrot.slane %v326, 4
      %v329 = vshll.u32 %v308, 16
      %v331 = vrot.slane %v329, 5
      %v332 = vsel %vm318, %v327, %v331
      %v334 = vshrl.u32 %v292, 16
      %v336 = vrot.slane %v334, 4
      %v337 = vshll.u32 %v292, 16
      %v339 = vrot.slane %v337, 5
      %v340 = vor.u32 %v336, %v339
      %v341 = vrot.slane %v340, 4
      %v343 = vshll.u32 %v309, 16
      %v345 = vrot.slane %v343, 5
      %v346 = vsel %vm318, %v341, %v345
      %v348 = vshrl.u32 %v293, 16
      %v350 = vrot.slane %v348, 4
      %v351 = vshll.u32 %v293, 16
      %v353 = vrot.slane %v351, 5
      %v354 = vor.u32 %v350, %v353
      %v355 = vrot.slane %v354, 4
      %v357 = vshll.u32 %v310, 16
      %v359 = vrot.slane %v357, 5
      %v360 = vsel %vm318, %v355, %v359
      %v362 = vshrl.u32 %v294, 16
      %v364 = vrot.slane %v362, 4
      %v365 = vshll.u32 %v294, 16
      %v367 = vrot.slane %v365, 5
      %v368 = vor.u32 %v364, %v367
      %v369 = vrot.slane %v368, 4
      %v371 = vshll.u32 %v311, 16
      %v373 = vrot.slane %v371, 5
      %v374 = vsel %vm318, %v369, %v373
      %v376 = vshrl.u32 %v295, 16
      %v378 = vrot.slane %v376, 4
      %v379 = vshll.u32 %v295, 16
      %v381 = vrot.slane %v379, 5
      %v382 = vor.u32 %v378, %v381
      %v383 = vrot.slane %v382, 4
      %v385 = vshll.u32 %v312, 16
      %v387 = vrot.slane %v385, 5
      %v388 = vsel %vm318, %v383, %v387
      %v390 = vshrl.u32 %v296, 16
      %v392 = vrot.slane %v390, 4
      %v393 = vshll.u32 %v296, 16
      %v395 = vrot.slane %v393, 5
      %v396 = vor.u32 %v392, %v395
      %v397 = vrot.slane %v396, 4
      %v399 = vshll.u32 %v313, 16
      %v401 = vrot.slane %v399, 5
      %v402 = vsel %vm318, %v397, %v401
      %v404 = vshrl.u32 %v297, 16
      %v406 = vrot.slane %v404, 4
      %v407 = vshll.u32 %v297, 16
      %v409 = vrot.slane %v407, 5
      %v410 = vor.u32 %v406, %v409
      %v411 = vrot.slane %v410, 4
      %v413 = vshll.u32 %v314, 16
      %v415 = vrot.slane %v413, 5
      %v416 = vsel %vm318, %v411, %v415
      %v418 = vshrl.u32 %v298, 16
      %v420 = vrot.slane %v418, 4
      %v421 = vshll.u32 %v298, 16
      %v423 = vrot.slane %v421, 5
      %v424 = vor.u32 %v420, %v423
      %v425 = vrot.slane %v424, 4
      %v427 = vshll.u32 %v315, 16
      %v429 = vrot.slane %v427, 5
      %v430 = vsel %vm318, %v425, %v429
      %s431 = scalar_lea.vmem %s270, 144
      %v432 = vld [vmem:[%s431] sm:$0xf]
      %v433 = vld [vmem:[%s431 + $0x8] sm:$0xf]
      %v434 = vld [vmem:[%s431 + $0x10] sm:$0xf]
      %v435 = vld [vmem:[%s431 + $0x18] sm:$0xf]
      %v436 = vld [vmem:[%s431 + $0x20] sm:$0xf]
      %v437 = vld [vmem:[%s431 + $0x28] sm:$0xf]
      %v438 = vld [vmem:[%s431 + $0x30] sm:$0xf]
      %v439 = vld [vmem:[%s431 + $0x38] sm:$0xf]
      %s440 = scalar_lea.vmem %s270, 216
      %v441 = vld [vmem:[%s440] sm:$0xf]
      %v442 = vld [vmem:[%s440 + $0x8] sm:$0xf]
      %v443 = vld [vmem:[%s440 + $0x10] sm:$0xf]
      %v444 = vld [vmem:[%s440 + $0x18] sm:$0xf]
      %v445 = vld [vmem:[%s440 + $0x20] sm:$0xf]
      %v446 = vld [vmem:[%s440 + $0x28] sm:$0xf]
      %v447 = vld [vmem:[%s440 + $0x30] sm:$0xf]
      %v448 = vld [vmem:[%s440 + $0x38] sm:$0xf]
      %v449 = vld [vmem:[%s431 + $0x4] sm:$0x1]
      %v450 = vld [vmem:[%s431 + $0xc] sm:$0x1]
      %v451 = vld [vmem:[%s431 + $0x14] sm:$0x1]
      %v452 = vld [vmem:[%s431 + $0x1c] sm:$0x1]
      %v453 = vld [vmem:[%s431 + $0x24] sm:$0x1]
      %v454 = vld [vmem:[%s431 + $0x2c] sm:$0x1]
      %v455 = vld [vmem:[%s431 + $0x34] sm:$0x1]
      %v456 = vld [vmem:[%s431 + $0x3c] sm:$0x1]
      %v458 = vshrl.u32 %v432, 16
      %v460 = vrot.slane %v458, 4
      %v461 = vshll.u32 %v432, 16
      %v463 = vrot.slane %v461, 5
      %v464 = vor.u32 %v460, %v463
      %v465 = vrot.slane %v464, 4
      %v467 = vshll.u32 %v449, 16
      %v469 = vrot.slane %v467, 5
      %v470 = vsel %vm318, %v465, %v469
      %v472 = vshrl.u32 %v433, 16
      %v474 = vrot.slane %v472, 4
      %v475 = vshll.u32 %v433, 16
      %v477 = vrot.slane %v475, 5
      %v478 = vor.u32 %v474, %v477
      %v479 = vrot.slane %v478, 4
      %v481 = vshll.u32 %v450, 16
      %v483 = vrot.slane %v481, 5
      %v484 = vsel %vm318, %v479, %v483
      %v486 = vshrl.u32 %v434, 16
      %v488 = vrot.slane %v486, 4
      %v489 = vshll.u32 %v434, 16
      %v491 = vrot.slane %v489, 5
      %v492 = vor.u32 %v488, %v491
      %v493 = vrot.slane %v492, 4
      %v495 = vshll.u32 %v451, 16
      %v497 = vrot.slane %v495, 5
      %v498 = vsel %vm318, %v493, %v497
      %v500 = vshrl.u32 %v435, 16
      %v502 = vrot.slane %v500, 4
      %v503 = vshll.u32 %v435, 16
      %v505 = vrot.slane %v503, 5
      %v506 = vor.u32 %v502, %v505
      %v507 = vrot.slane %v506, 4
      %v509 = vshll.u32 %v452, 16
      %v511 = vrot.slane %v509, 5
      %v512 = vsel %vm318, %v507, %v511
      %v514 = vshrl.u32 %v436, 16
      %v516 = vrot.slane %v514, 4
      %v517 = vshll.u32 %v436, 16
      %v519 = vrot.slane %v517, 5
      %v520 = vor.u32 %v516, %v519
      %v521 = vrot.slane %v520, 4
      %v523 = vshll.u32 %v453, 16
      %v525 = vrot.slane %v523, 5
      %v526 = vsel %vm318, %v521, %v525
      %v528 = vshrl.u32 %v437, 16
      %v530 = vrot.slane %v528, 4
      %v531 = vshll.u32 %v437, 16
      %v533 = vrot.slane %v531, 5
      %v534 = vor.u32 %v530, %v533
      %v535 = vrot.slane %v534, 4
      %v537 = vshll.u32 %v454, 16
      %v539 = vrot.slane %v537, 5
      %v540 = vsel %vm318, %v535, %v539
      %v542 = vshrl.u32 %v438, 16
      %v544 = vrot.slane %v542, 4
      %v545 = vshll.u32 %v438, 16
      %v547 = vrot.slane %v545, 5
      %v548 = vor.u32 %v544, %v547
      %v549 = vrot.slane %v548, 4
      %v551 = vshll.u32 %v455, 16
      %v553 = vrot.slane %v551, 5
      %v554 = vsel %vm318, %v549, %v553
      %v556 = vshrl.u32 %v439, 16
      %v558 = vrot.slane %v556, 4
      %v559 = vshll.u32 %v439, 16
      %v561 = vrot.slane %v559, 5
      %v562 = vor.u32 %v558, %v561
      %v563 = vrot.slane %v562, 4
      %v565 = vshll.u32 %v456, 16
      %v567 = vrot.slane %v565, 5
      %v568 = vsel %vm318, %v563, %v567
      %s569 = scalar_lea.vmem %s270, 8
      %v570 = vld [vmem:[%s569] sm:$0xf]
      %v571 = vld [vmem:[%s569 + $0x8] sm:$0xf]
      %v572 = vld [vmem:[%s569 + $0x10] sm:$0xf]
      %v573 = vld [vmem:[%s569 + $0x18] sm:$0xf]
      %v574 = vld [vmem:[%s569 + $0x20] sm:$0xf]
      %v575 = vld [vmem:[%s569 + $0x28] sm:$0xf]
      %v576 = vld [vmem:[%s569 + $0x30] sm:$0xf]
      %v577 = vld [vmem:[%s569 + $0x38] sm:$0xf]
      %s578 = scalar_lea.vmem %s270, 80
      %v579 = vld [vmem:[%s578] sm:$0xf]
      %v580 = vld [vmem:[%s578 + $0x8] sm:$0xf]
      %v581 = vld [vmem:[%s578 + $0x10] sm:$0xf]
      %v582 = vld [vmem:[%s578 + $0x18] sm:$0xf]
      %v583 = vld [vmem:[%s578 + $0x20] sm:$0xf]
      %v584 = vld [vmem:[%s578 + $0x28] sm:$0xf]
      %v585 = vld [vmem:[%s578 + $0x30] sm:$0xf]
      %v586 = vld [vmem:[%s578 + $0x38] sm:$0xf]
      %v587 = vld [vmem:[%s569 + $0x4] sm:$0x1]
      %v588 = vld [vmem:[%s569 + $0xc] sm:$0x1]
      %v589 = vld [vmem:[%s569 + $0x14] sm:$0x1]
      %v590 = vld [vmem:[%s569 + $0x1c] sm:$0x1]
      %v591 = vld [vmem:[%s569 + $0x24] sm:$0x1]
      %v592 = vld [vmem:[%s569 + $0x2c] sm:$0x1]
      %v593 = vld [vmem:[%s569 + $0x34] sm:$0x1]
      %v594 = vld [vmem:[%s569 + $0x3c] sm:$0x1]
      %v596 = vshrl.u32 %v570, 16
      %v598 = vrot.slane %v596, 4
      %v599 = vshll.u32 %v570, 16
      %v601 = vrot.slane %v599, 5
      %v602 = vor.u32 %v598, %v601
      %v603 = vrot.slane %v602, 4
      %v605 = vshll.u32 %v587, 16
      %v607 = vrot.slane %v605, 5
      %v608 = vsel %vm318, %v603, %v607
      %v610 = vshrl.u32 %v571, 16
      %v612 = vrot.slane %v610, 4
      %v613 = vshll.u32 %v571, 16
      %v615 = vrot.slane %v613, 5
      %v616 = vor.u32 %v612, %v615
      %v617 = vrot.slane %v616, 4
      %v619 = vshll.u32 %v588, 16
      %v621 = vrot.slane %v619, 5
      %v622 = vsel %vm318, %v617, %v621
      %v624 = vshrl.u32 %v572, 16
      %v626 = vrot.slane %v624, 4
      %v627 = vshll.u32 %v572, 16
      %v629 = vrot.slane %v627, 5
      %v630 = vor.u32 %v626, %v629
      %v631 = vrot.slane %v630, 4
      %v633 = vshll.u32 %v589, 16
      %v635 = vrot.slane %v633, 5
      %v636 = vsel %vm318, %v631, %v635
      %v638 = vshrl.u32 %v573, 16
      %v640 = vrot.slane %v638, 4
      %v641 = vshll.u32 %v573, 16
      %v643 = vrot.slane %v641, 5
      %v644 = vor.u32 %v640, %v643
      %v645 = vrot.slane %v644, 4
      %v647 = vshll.u32 %v590, 16
      %v649 = vrot.slane %v647, 5
      %v650 = vsel %vm318, %v645, %v649
      %v652 = vshrl.u32 %v574, 16
      %v654 = vrot.slane %v652, 4
      %v655 = vshll.u32 %v574, 16
      %v657 = vrot.slane %v655, 5
      %v658 = vor.u32 %v654, %v657
      %v659 = vrot.slane %v658, 4
      %v661 = vshll.u32 %v591, 16
      %v663 = vrot.slane %v661, 5
      %v664 = vsel %vm318, %v659, %v663
      %v666 = vshrl.u32 %v575, 16
      %v668 = vrot.slane %v666, 4
      %v669 = vshll.u32 %v575, 16
      %v671 = vrot.slane %v669, 5
      %v672 = vor.u32 %v668, %v671
      %v673 = vrot.slane %v672, 4
      %v675 = vshll.u32 %v592, 16
      %v677 = vrot.slane %v675, 5
      %v678 = vsel %vm318, %v673, %v677
      %v680 = vshrl.u32 %v576, 16
      %v682 = vrot.slane %v680, 4
      %v683 = vshll.u32 %v576, 16
      %v685 = vrot.slane %v683, 5
      %v686 = vor.u32 %v682, %v685
      %v687 = vrot.slane %v686, 4
      %v689 = vshll.u32 %v593, 16
      %v691 = vrot.slane %v689, 5
      %v692 = vsel %vm318, %v687, %v691
      %v694 = vshrl.u32 %v577, 16
      %v696 = vrot.slane %v694, 4
      %v697 = vshll.u32 %v577, 16
      %v699 = vrot.slane %v697, 5
      %v700 = vor.u32 %v696, %v699
      %v701 = vrot.slane %v700, 4
      %v703 = vshll.u32 %v594, 16
      %v705 = vrot.slane %v703, 5
      %v706 = vsel %vm318, %v701, %v705
      %v715 = vunpack.c.l.b16 %v291
      %v716 = vunpack.c.l.b16 %v292
      %v717 = vunpack.c.l.b16 %v293
      %v718 = vunpack.c.l.b16 %v294
      %v719 = vunpack.c.l.b16 %v295
      %v720 = vunpack.c.l.b16 %v296
      %v721 = vunpack.c.l.b16 %v297
      %v722 = vunpack.c.l.b16 %v298
      %v723 = vpack.c.b16 %v716, %v715
      %v724 = vpack.c.b16 %v718, %v717
      %v725 = vpack.c.b16 %v720, %v719
      %v726 = vpack.c.b16 %v722, %v721
      %v735 = vunpack.c.l.b16 %v300
      %v736 = vunpack.c.l.b16 %v301
      %v737 = vunpack.c.l.b16 %v302
      %v738 = vunpack.c.l.b16 %v303
      %v739 = vunpack.c.l.b16 %v304
      %v740 = vunpack.c.l.b16 %v305
      %v741 = vunpack.c.l.b16 %v306
      %v742 = vunpack.c.l.b16 %v307
      %v743 = vpack.c.b16 %v736, %v735
      %v744 = vpack.c.b16 %v738, %v737
      %v745 = vpack.c.b16 %v740, %v739
      %v746 = vpack.c.b16 %v742, %v741
      %747 = vrot.lane.b32.xlu0 %v743, 4
      %v748 = vpop.permute.xlu0 %747
      %749 = vrot.lane.b32.xlu0 %v744, 4
      %v750 = vpop.permute.xlu0 %749
      %751 = vrot.lane.b32.xlu0 %v745, 4
      %v752 = vpop.permute.xlu0 %751
      %753 = vrot.lane.b32.xlu0 %v746, 4
      %v754 = vpop.permute.xlu0 %753
      %v755 = vunpack.c.l.b16 %v332
      %v756 = vunpack.c.l.b16 %v346
      %v757 = vunpack.c.l.b16 %v360
      %v758 = vunpack.c.l.b16 %v374
      %v759 = vunpack.c.l.b16 %v388
      %v760 = vunpack.c.l.b16 %v402
      %v761 = vunpack.c.l.b16 %v416
      %v762 = vunpack.c.l.b16 %v430
      %v763 = vpack.c.b16 %v756, %v755
      %v764 = vpack.c.b16 %v758, %v757
      %v765 = vpack.c.b16 %v760, %v759
      %v766 = vpack.c.b16 %v762, %v761
      %767 = vrot.lane.b32.xlu0 %v763, 8
      %v768 = vpop.permute.xlu0 %767
      %769 = vrot.lane.b32.xlu0 %v764, 8
      %v770 = vpop.permute.xlu0 %769
      %771 = vrot.lane.b32.xlu0 %v765, 8
      %v772 = vpop.permute.xlu0 %771
      %773 = vrot.lane.b32.xlu0 %v766, 8
      %v774 = vpop.permute.xlu0 %773
      %v783 = vunpack.c.l.b16 %v432
      %v784 = vunpack.c.l.b16 %v433
      %v785 = vunpack.c.l.b16 %v434
      %v786 = vunpack.c.l.b16 %v435
      %v787 = vunpack.c.l.b16 %v436
      %v788 = vunpack.c.l.b16 %v437
      %v789 = vunpack.c.l.b16 %v438
      %v790 = vunpack.c.l.b16 %v439
      %v791 = vpack.c.b16 %v784, %v783
      %v792 = vpack.c.b16 %v786, %v785
      %v793 = vpack.c.b16 %v788, %v787
      %v794 = vpack.c.b16 %v790, %v789
      %795 = vrot.lane.b32.xlu0 %v791, 12
      %v796 = vpop.permute.xlu0 %795
      %797 = vrot.lane.b32.xlu0 %v792, 12
      %v798 = vpop.permute.xlu0 %797
      %799 = vrot.lane.b32.xlu0 %v793, 12
      %v800 = vpop.permute.xlu0 %799
      %801 = vrot.lane.b32.xlu0 %v794, 12
      %v802 = vpop.permute.xlu0 %801
      %v811 = vunpack.c.l.b16 %v441
      %v812 = vunpack.c.l.b16 %v442
      %v813 = vunpack.c.l.b16 %v443
      %v814 = vunpack.c.l.b16 %v444
      %v815 = vunpack.c.l.b16 %v445
      %v816 = vunpack.c.l.b16 %v446
      %v817 = vunpack.c.l.b16 %v447
      %v818 = vunpack.c.l.b16 %v448
      %v819 = vpack.c.b16 %v812, %v811
      %v820 = vpack.c.b16 %v814, %v813
      %v821 = vpack.c.b16 %v816, %v815
      %v822 = vpack.c.b16 %v818, %v817
      %823 = vrot.lane.b32.xlu0 %v819, 16
      %v824 = vpop.permute.xlu0 %823
      %825 = vrot.lane.b32.xlu0 %v820, 16
      %v826 = vpop.permute.xlu0 %825
      %827 = vrot.lane.b32.xlu0 %v821, 16
      %v828 = vpop.permute.xlu0 %827
      %829 = vrot.lane.b32.xlu0 %v822, 16
      %v830 = vpop.permute.xlu0 %829
      %v831 = vunpack.c.l.b16 %v470
      %v832 = vunpack.c.l.b16 %v484
      %v833 = vunpack.c.l.b16 %v498
      %v834 = vunpack.c.l.b16 %v512
      %v835 = vunpack.c.l.b16 %v526
      %v836 = vunpack.c.l.b16 %v540
      %v837 = vunpack.c.l.b16 %v554
      %v838 = vunpack.c.l.b16 %v568
      %v839 = vpack.c.b16 %v832, %v831
      %v840 = vpack.c.b16 %v834, %v833
      %v841 = vpack.c.b16 %v836, %v835
      %v842 = vpack.c.b16 %v838, %v837
      %843 = vrot.lane.b32.xlu0 %v839, 20
      %v844 = vpop.permute.xlu0 %843
      %845 = vrot.lane.b32.xlu0 %v840, 20
      %v846 = vpop.permute.xlu0 %845
      %847 = vrot.lane.b32.xlu0 %v841, 20
      %v848 = vpop.permute.xlu0 %847
      %849 = vrot.lane.b32.xlu0 %v842, 20
      %v850 = vpop.permute.xlu0 %849
      %v859 = vunpack.c.l.b16 %v570
      %v860 = vunpack.c.l.b16 %v571
      %v861 = vunpack.c.l.b16 %v572
      %v862 = vunpack.c.l.b16 %v573
      %v863 = vunpack.c.l.b16 %v574
      %v864 = vunpack.c.l.b16 %v575
      %v865 = vunpack.c.l.b16 %v576
      %v866 = vunpack.c.l.b16 %v577
      %v867 = vpack.c.b16 %v860, %v859
      %v868 = vpack.c.b16 %v862, %v861
      %v869 = vpack.c.b16 %v864, %v863
      %v870 = vpack.c.b16 %v866, %v865
      %871 = vrot.lane.b32.xlu0 %v867, 24
      %v872 = vpop.permute.xlu0 %871
      %873 = vrot.lane.b32.xlu0 %v868, 24
      %v874 = vpop.permute.xlu0 %873
      %875 = vrot.lane.b32.xlu0 %v869, 24
      %v876 = vpop.permute.xlu0 %875
      %877 = vrot.lane.b32.xlu0 %v870, 24
      %v878 = vpop.permute.xlu0 %877
      %v887 = vunpack.c.l.b16 %v579
      %v888 = vunpack.c.l.b16 %v580
      %v889 = vunpack.c.l.b16 %v581
      %v890 = vunpack.c.l.b16 %v582
      %v891 = vunpack.c.l.b16 %v583
      %v892 = vunpack.c.l.b16 %v584
      %v893 = vunpack.c.l.b16 %v585
      %v894 = vunpack.c.l.b16 %v586
      %v895 = vpack.c.b16 %v888, %v887
      %v896 = vpack.c.b16 %v890, %v889
      %v897 = vpack.c.b16 %v892, %v891
      %v898 = vpack.c.b16 %v894, %v893
      %899 = vrot.lane.b32.xlu0 %v895, 28
      %v900 = vpop.permute.xlu0 %899
      %901 = vrot.lane.b32.xlu0 %v896, 28
      %v902 = vpop.permute.xlu0 %901
      %903 = vrot.lane.b32.xlu0 %v897, 28
      %v904 = vpop.permute.xlu0 %903
      %905 = vrot.lane.b32.xlu0 %v898, 28
      %v906 = vpop.permute.xlu0 %905
      %v907 = vunpack.c.l.b16 %v608
      %v908 = vunpack.c.l.b16 %v622
      %v909 = vunpack.c.l.b16 %v636
      %v910 = vunpack.c.l.b16 %v650
      %v911 = vunpack.c.l.b16 %v664
      %v912 = vunpack.c.l.b16 %v678
      %v913 = vunpack.c.l.b16 %v692
      %v914 = vunpack.c.l.b16 %v706
      %v915 = vpack.c.b16 %v908, %v907
      %v916 = vpack.c.b16 %v910, %v909
      %v917 = vpack.c.b16 %v912, %v911
      %v918 = vpack.c.b16 %v914, %v913
      %919 = vrot.lane.b32.xlu0 %v915, 32
      %v920 = vpop.permute.xlu0 %919
      %921 = vrot.lane.b32.xlu0 %v916, 32
      %v922 = vpop.permute.xlu0 %921
      %923 = vrot.lane.b32.xlu0 %v917, 32
      %v924 = vpop.permute.xlu0 %923
      %925 = vrot.lane.b32.xlu0 %v918, 32
      %v926 = vpop.permute.xlu0 %925
      %vm927 = vcmask 31744
      %v930 = vsel %vm927, %v723, %v748
      %v933 = vsel %vm927, %v724, %v750
      %v936 = vsel %vm927, %v725, %v752
      %v939 = vsel %vm927, %v726, %v754
      %vm940 = vcmask 64512
      %v942 = vsel %vm940, %v930, %v768
      %v944 = vsel %vm940, %v933, %v770
      %v946 = vsel %vm940, %v936, %v772
      %v948 = vsel %vm940, %v939, %v774
      %vm949 = vcmask 97280
      %v951 = vsel %vm949, %v942, %v796
      %v953 = vsel %vm949, %v944, %v798
      %v955 = vsel %vm949, %v946, %v800
      %v957 = vsel %vm949, %v948, %v802
      %vm958 = vcmask 130048
      %v960 = vsel %vm958, %v951, %v824
      %v962 = vsel %vm958, %v953, %v826
      %v964 = vsel %vm958, %v955, %v828
      %v966 = vsel %vm958, %v957, %v830
      %vm967 = vcmask 162816
      %v969 = vsel %vm967, %v960, %v844
      %v971 = vsel %vm967, %v962, %v846
      %v973 = vsel %vm967, %v964, %v848
      %v975 = vsel %vm967, %v966, %v850
      %vm976 = vcmask 195584
      %v978 = vsel %vm976, %v969, %v872
      %v980 = vsel %vm976, %v971, %v874
      %v982 = vsel %vm976, %v973, %v876
      %v984 = vsel %vm976, %v975, %v878
      %vm985 = vcmask 228352
      %v987 = vsel %vm985, %v978, %v900
      %v989 = vsel %vm985, %v980, %v902
      %v991 = vsel %vm985, %v982, %v904
      %v993 = vsel %vm985, %v984, %v906
      %vm994 = vcmask 261120
      %v996 = vsel %vm994, %v987, %v920
      %v998 = vsel %vm994, %v989, %v922
      %v1000 = vsel %vm994, %v991, %v924
      %v1002 = vsel %vm994, %v993, %v926
      %v1003 = vld [vmem:[%s1] sm:$0xf]
      %v1004 = vld [vmem:[%s1 + $0x4] sm:$0xf]
      %v1005 = vld [vmem:[%s1 + $0x8] sm:$0xf]
      %v1006 = vld [vmem:[%s1 + $0xc] sm:$0xf]
      %v1007 = vld [vmem:[%s1 + $0x10] sm:$0x3]
      %v1013 = vunpack.c.l.b16 %v1003
      %v1014 = vunpack.c.l.b16 %v1004
      %v1015 = vunpack.c.l.b16 %v1005
      %v1016 = vunpack.c.l.b16 %v1006
      %v1017 = vunpack.c.l.b16 %v1007
      %v1018 = vpack.c.b16 %v1014, %v1013
      %v1019 = vpack.c.b16 %v1016, %v1015
      %v1020 = vpack.c.b16 %v1017, %v1017
      %vm1023 = vcmask 293888
      %v1024 = vsel %vm1023, %v996, 0
      %v1026 = vsel %vm1023, %v998, 0
      %v1028 = vsel %vm1023, %v1000, 0
      %v1030 = vsel %vm1023, %v1002, 0
      %vm1032 = vcmask 1041408
      %v1034 = vsel %vm1032, %v1020, 0
      %1036 = vmatprep.subr.bf16.mxu0 0
      %1037 = vmatpush1.bf16.msra.mxu0 %v1018
      %1038 = vmatprep.subr.bf16.mxu0 0
      %1039 = vmatpush1.bf16.msra.mxu0 %v1019
      %1040 = vmatprep.subr.bf16.mxu0 0
      %1041 = vmatpush1.bf16.msra.mxu0 %v1034
      %1042 = vmatprep.subr.bf16.mxu0 0
      %1043 = vmatpush1.bf16.msra.mxu0 0
      %1044 = vmatprep.subr.bf16.mxu0 0
      %1045 = vmatpush1.bf16.msra.mxu0 0
      %1046 = vmatprep.subr.bf16.mxu0 0
      %1047 = vmatpush1.bf16.msra.mxu0 0
      %1048 = vmatprep.subr.bf16.mxu0 0
      %1049 = vmatpush1.bf16.msra.mxu0 0
      %1050 = vmatprep.subr.bf16.mxu0 0
      %1051 = vmatpush1.bf16.msra.mxu0 0
      %1052 = vmatprep.subr.bf16.mxu0 0
      %1053 = vmatpush1.bf16.msra.mxu0 0
      %1054 = vmatprep.subr.bf16.mxu0 0
      %1055 = vmatpush1.bf16.msra.mxu0 0
      %1056 = vmatprep.subr.bf16.mxu0 0
      %1057 = vmatpush1.bf16.msra.mxu0 0
      %1058 = vmatprep.subr.bf16.mxu0 0
      %1059 = vmatpush1.bf16.msra.mxu0 0
      %1060 = vmatprep.subr.bf16.mxu0 0
      %1061 = vmatpush1.bf16.msra.mxu0 0
      %1062 = vmatprep.subr.bf16.mxu0 0
      %1063 = vmatpush1.bf16.msra.mxu0 0
      %1064 = vmatprep.subr.bf16.mxu0 0
      %1065 = vmatpush1.bf16.msra.mxu0 0
      %1066 = vmatprep.subr.bf16.mxu0 0
      %1067 = vmatpush1.bf16.msra.mxu0 0
      %1068 = vmatprep.mubr.bf16.mxu0 0
      %1069 = vmatmul.mubr.bf16.gmra.mrb[0].mxu0 %v1024
      %v1070 = vpop.f32.mrb[0].mxu0
      %v1071 = vadd.f32 0.0, %v1070
      %v1072 = vpop.f32.mrb[0].mxu0
      %v1073 = vpop.f32.mrb[0].mxu0
      %v1074 = vadd.f32 0.0, %v1073
      %v1075 = vpop.f32.mrb[0].mxu0
      %1076 = vmatprep.mubr.bf16.mxu0 0
      %1077 = vmatmul.mubr.bf16.gmra.mrb[0].mxu0 %v1026
      %v1078 = vpop.f32.mrb[0].mxu0
      %v1079 = vadd.f32 0.0, %v1078
      %v1080 = vpop.f32.mrb[0].mxu0
      %v1081 = vpop.f32.mrb[0].mxu0
      %v1082 = vadd.f32 0.0, %v1081
      %v1083 = vpop.f32.mrb[0].mxu0
      %1084 = vmatprep.mubr.bf16.mxu0 0
      %1085 = vmatmul.mubr.bf16.gmra.mrb[0].mxu0 %v1028
      %v1086 = vpop.f32.mrb[0].mxu0
      %v1087 = vadd.f32 0.0, %v1086
      %v1088 = vpop.f32.mrb[0].mxu0
      %v1089 = vpop.f32.mrb[0].mxu0
      %v1090 = vadd.f32 0.0, %v1089
      %v1091 = vpop.f32.mrb[0].mxu0
      %1092 = vmatprep.mubr.bf16.mxu0 0
      %1093 = vmatmul.mubr.bf16.gmra.mrb[0].mxu0 %v1030
      %v1094 = vpop.f32.mrb[0].mxu0
      %v1095 = vadd.f32 0.0, %v1094
      %v1096 = vpop.f32.mrb[0].mxu0
      %v1097 = vpop.f32.mrb[0].mxu0
      %v1098 = vadd.f32 0.0, %v1097
      %v1099 = vpop.f32.mrb[0].mxu0
      %1100 = vdwg.mxu0
      %v1101 = vsel %vm940, %v1071, 0.0
      %v1102 = vsel %vm940, %v1074, 0.0
      %v1103 = vadd.f32 %v1101, %v1102
      %v1104 = vsel %vm940, %v1079, 0.0
      %v1105 = vadd.f32 %v1103, %v1104
      %v1106 = vsel %vm940, %v1082, 0.0
      %v1107 = vadd.f32 %v1105, %v1106
      %v1108 = vsel %vm940, %v1087, 0.0
      %v1109 = vadd.f32 %v1107, %v1108
      %v1110 = vsel %vm940, %v1090, 0.0
      %v1111 = vadd.f32 %v1109, %v1110
      %v1112 = vsel %vm940, %v1095, 0.0
      %v1113 = vadd.f32 %v1111, %v1112
      %v1114 = vsel %vm940, %v1098, 0.0
      %v1115 = vadd.f32 %v1113, %v1114
      %v1116 = vrot.slane %v1115, 4
      %v1117 = vadd.f32 %v1115, %v1116
      %v1118 = vrot.slane %v1117, 2
      %v1119 = vadd.f32 %v1117, %v1118
      %v1120 = vrot.slane %v1119, 1
      %v1121 = vadd.f32 %v1119, %v1120
      %v1122 = vmul.f32 %v1071, %v1071
      %v1123 = vmul.f32 %v1074, %v1074
      %v1124 = vmul.f32 %v1079, %v1079
      %v1125 = vmul.f32 %v1082, %v1082
      %v1126 = vmul.f32 %v1087, %v1087
      %v1127 = vmul.f32 %v1090, %v1090
      %v1128 = vmul.f32 %v1095, %v1095
      %v1129 = vmul.f32 %v1098, %v1098
      %v1130 = vsel %vm940, %v1122, 0.0
      %v1131 = vsel %vm940, %v1123, 0.0
      %v1132 = vadd.f32 %v1130, %v1131
      %v1133 = vsel %vm940, %v1124, 0.0
      %v1134 = vadd.f32 %v1132, %v1133
      %v1135 = vsel %vm940, %v1125, 0.0
      %v1136 = vadd.f32 %v1134, %v1135
      %v1137 = vsel %vm940, %v1126, 0.0
      %v1138 = vadd.f32 %v1136, %v1137
      %v1139 = vsel %vm940, %v1127, 0.0
      %v1140 = vadd.f32 %v1138, %v1139
      %v1141 = vsel %vm940, %v1128, 0.0
      %v1142 = vadd.f32 %v1140, %v1141
      %v1143 = vsel %vm940, %v1129, 0.0
      %v1144 = vadd.f32 %v1142, %v1143
      %v1145 = vrot.slane %v1144, 4
      %v1146 = vadd.f32 %v1144, %v1145
      %v1147 = vrot.slane %v1146, 2
      %v1148 = vadd.f32 %v1146, %v1147
      %v1149 = vrot.slane %v1148, 1
      %v1150 = vadd.f32 %v1148, %v1149
      %vm1151 = vcmask 1040384
      %v1152 = vsel %vm1151, %v1121, %v1150
      %vm1153 = vcmask 58368
      %1154 = vst.msk [vmem:[%s280] sm:$0x3] %vm1153, %v1152
      %v1155 = vpack.c.bf16 %v1074, %v1071
      %v1156 = vpack.c.bf16 %v1082, %v1079
      %v1157 = vpack.c.bf16 %v1090, %v1087
      %v1158 = vpack.c.bf16 %v1098, %v1095
      %v1163 = vunpack.c.l.b16 %v1155
      %v1164 = vunpack.c.h.b16 %v1155
      %v1165 = vunpack.c.l.b16 %v1156
      %v1166 = vunpack.c.h.b16 %v1156
      %v1167 = vunpack.c.l.b16 %v1157
      %v1168 = vunpack.c.h.b16 %v1157
      %v1169 = vunpack.c.l.b16 %v1158
      %v1170 = vunpack.c.h.b16 %v1158
      %v1171 = vpack.c.b16 %v1163, %v1163
      %v1172 = vpack.c.b16 %v1164, %v1164
      %v1173 = vpack.c.b16 %v1165, %v1165
      %v1174 = vpack.c.b16 %v1166, %v1166
      %v1175 = vpack.c.b16 %v1167, %v1167
      %v1176 = vpack.c.b16 %v1168, %v1168
      %v1177 = vpack.c.b16 %v1169, %v1169
      %v1178 = vpack.c.b16 %v1170, %v1170
      %vm1187 = vcmask 60416
      %1188 = vst.msk [vmem:[%s276] sm:$0xf] %vm1187, %v1171
      %1189 = vst.msk [vmem:[%s276 + $0x4] sm:$0xf] %vm1187, %v1172
      %1190 = vst.msk [vmem:[%s276 + $0x8] sm:$0xf] %vm1187, %v1173
      %1191 = vst.msk [vmem:[%s276 + $0xc] sm:$0xf] %vm1187, %v1174
      %1192 = vst.msk [vmem:[%s276 + $0x10] sm:$0xf] %vm1187, %v1175
      %1193 = vst.msk [vmem:[%s276 + $0x14] sm:$0xf] %vm1187, %v1176
      %1194 = vst.msk [vmem:[%s276 + $0x18] sm:$0xf] %vm1187, %v1177
      %1195 = vst.msk [vmem:[%s276 + $0x1c] sm:$0xf] %vm1187, %v1178
      %v1196 = vld [vmem:[%s2] sm:$0x3]
      %v1198 = vsel %vm927, %v819, 0
      %v1201 = vsel %vm927, %v820, 0
      %v1204 = vsel %vm927, %v821, 0
      %v1207 = vsel %vm927, %v822, 0
      %v1210 = vsel %vm1032, %v1196, 0
      %1212 = vmatprep.subr.bf16.mxu0 0
      %1213 = vmatpush1.bf16.msra.mxu0 %v1210
      %1214 = vmatprep.subr.bf16.mxu0 0
      %1215 = vmatpush1.bf16.msra.mxu0 0
      %1216 = vmatprep.subr.bf16.mxu0 0
      %1217 = vmatpush1.bf16.msra.mxu0 0
      %1218 = vmatprep.subr.bf16.mxu0 0
      %1219 = vmatpush1.bf16.msra.mxu0 0
      %1220 = vmatprep.subr.bf16.mxu0 0
      %1221 = vmatpush1.bf16.msra.mxu0 0
      %1222 = vmatprep.subr.bf16.mxu0 0
      %1223 = vmatpush1.bf16.msra.mxu0 0
      %1224 = vmatprep.subr.bf16.mxu0 0
      %1225 = vmatpush1.bf16.msra.mxu0 0
      %1226 = vmatprep.subr.bf16.mxu0 0
      %1227 = vmatpush1.bf16.msra.mxu0 0
      %1228 = vmatprep.subr.bf16.mxu0 0
      %1229 = vmatpush1.bf16.msra.mxu0 0
      %1230 = vmatprep.subr.bf16.mxu0 0
      %1231 = vmatpush1.bf16.msra.mxu0 0
      %1232 = vmatprep.subr.bf16.mxu0 0
      %1233 = vmatpush1.bf16.msra.mxu0 0
      %1234 = vmatprep.subr.bf16.mxu0 0
      %1235 = vmatpush1.bf16.msra.mxu0 0
      %1236 = vmatprep.subr.bf16.mxu0 0
      %1237 = vmatpush1.bf16.msra.mxu0 0
      %1238 = vmatprep.subr.bf16.mxu0 0
      %1239 = vmatpush1.bf16.msra.mxu0 0
      %1240 = vmatprep.subr.bf16.mxu0 0
      %1241 = vmatpush1.bf16.msra.mxu0 0
      %1242 = vmatprep.subr.bf16.mxu0 0
      %1243 = vmatpush1.bf16.msra.mxu0 0
      %1244 = vmatprep.mubr.bf16.mxu0 0
      %1245 = vmatmul.mubr.bf16.gmra.mrb[0].mxu0 %v1198
      %v1246 = vpop.f32.mrb[0].mxu0
      %v1247 = vadd.f32 0.0, %v1246
      %v1248 = vpop.f32.mrb[0].mxu0
      %v1249 = vpop.f32.mrb[0].mxu0
      %v1250 = vadd.f32 0.0, %v1249
      %v1251 = vpop.f32.mrb[0].mxu0
      %1252 = vmatprep.mubr.bf16.mxu0 0
      %1253 = vmatmul.mubr.bf16.gmra.mrb[0].mxu0 %v1201
      %v1254 = vpop.f32.mrb[0].mxu0
      %v1255 = vadd.f32 0.0, %v1254
      %v1256 = vpop.f32.mrb[0].mxu0
      %v1257 = vpop.f32.mrb[0].mxu0
      %v1258 = vadd.f32 0.0, %v1257
      %v1259 = vpop.f32.mrb[0].mxu0
      %1260 = vmatprep.mubr.bf16.mxu0 0
      %1261 = vmatmul.mubr.bf16.gmra.mrb[0].mxu0 %v1204
      %v1262 = vpop.f32.mrb[0].mxu0
      %v1263 = vadd.f32 0.0, %v1262
      %v1264 = vpop.f32.mrb[0].mxu0
      %v1265 = vpop.f32.mrb[0].mxu0
      %v1266 = vadd.f32 0.0, %v1265
      %v1267 = vpop.f32.mrb[0].mxu0
      %1268 = vmatprep.mubr.bf16.mxu0 0
      %1269 = vmatmul.mubr.bf16.gmra.mrb[0].mxu0 %v1207
      %v1270 = vpop.f32.mrb[0].mxu0
      %v1271 = vadd.f32 0.0, %v1270
      %v1272 = vpop.f32.mrb[0].mxu0
      %v1273 = vpop.f32.mrb[0].mxu0
      %v1274 = vadd.f32 0.0, %v1273
      %v1275 = vpop.f32.mrb[0].mxu0
      %1276 = vdwg.mxu0
      %v1277 = vsel %vm940, %v1247, 0.0
      %v1278 = vsel %vm940, %v1250, 0.0
      %v1279 = vadd.f32 %v1277, %v1278
      %v1280 = vsel %vm940, %v1255, 0.0
      %v1281 = vadd.f32 %v1279, %v1280
      %v1282 = vsel %vm940, %v1258, 0.0
      %v1283 = vadd.f32 %v1281, %v1282
      %v1284 = vsel %vm940, %v1263, 0.0
      %v1285 = vadd.f32 %v1283, %v1284
      %v1286 = vsel %vm940, %v1266, 0.0
      %v1287 = vadd.f32 %v1285, %v1286
      %v1288 = vsel %vm940, %v1271, 0.0
      %v1289 = vadd.f32 %v1287, %v1288
      %v1290 = vsel %vm940, %v1274, 0.0
      %v1291 = vadd.f32 %v1289, %v1290
      %v1292 = vrot.slane %v1291, 4
      %v1293 = vadd.f32 %v1291, %v1292
      %v1294 = vrot.slane %v1293, 2
      %v1295 = vadd.f32 %v1293, %v1294
      %v1296 = vrot.slane %v1295, 1
      %v1297 = vadd.f32 %v1295, %v1296
      %v1298 = vmul.f32 %v1247, %v1247
      %v1299 = vmul.f32 %v1250, %v1250
      %v1300 = vmul.f32 %v1255, %v1255
      %v1301 = vmul.f32 %v1258, %v1258
      %v1302 = vmul.f32 %v1263, %v1263
      %v1303 = vmul.f32 %v1266, %v1266
      %v1304 = vmul.f32 %v1271, %v1271
      %v1305 = vmul.f32 %v1274, %v1274
      %v1306 = vsel %vm940, %v1298, 0.0
      %v1307 = vsel %vm940, %v1299, 0.0
      %v1308 = vadd.f32 %v1306, %v1307
      %v1309 = vsel %vm940, %v1300, 0.0
      %v1310 = vadd.f32 %v1308, %v1309
      %v1311 = vsel %vm940, %v1301, 0.0
      %v1312 = vadd.f32 %v1310, %v1311
      %v1313 = vsel %vm940, %v1302, 0.0
      %v1314 = vadd.f32 %v1312, %v1313
      %v1315 = vsel %vm940, %v1303, 0.0
      %v1316 = vadd.f32 %v1314, %v1315
      %v1317 = vsel %vm940, %v1304, 0.0
      %v1318 = vadd.f32 %v1316, %v1317
      %v1319 = vsel %vm940, %v1305, 0.0
      %v1320 = vadd.f32 %v1318, %v1319
      %v1321 = vrot.slane %v1320, 4
      %v1322 = vadd.f32 %v1320, %v1321
      %v1323 = vrot.slane %v1322, 2
      %v1324 = vadd.f32 %v1322, %v1323
      %v1325 = vrot.slane %v1324, 1
      %v1326 = vadd.f32 %v1324, %v1325
      %v1327 = vsel %vm1151, %v1297, %v1326
      %1328 = vst.msk [vmem:[%s289] sm:$0x3] %vm1153, %v1327
      %v1329 = vpack.c.bf16 %v1250, %v1247
      %v1330 = vpack.c.bf16 %v1258, %v1255
      %v1331 = vpack.c.bf16 %v1266, %v1263
      %v1332 = vpack.c.bf16 %v1274, %v1271
      %v1337 = vunpack.c.l.b16 %v1329
      %v1338 = vunpack.c.h.b16 %v1329
      %v1339 = vunpack.c.l.b16 %v1330
      %v1340 = vunpack.c.h.b16 %v1330
      %v1341 = vunpack.c.l.b16 %v1331
      %v1342 = vunpack.c.h.b16 %v1331
      %v1343 = vunpack.c.l.b16 %v1332
      %v1344 = vunpack.c.h.b16 %v1332
      %v1345 = vpack.c.b16 %v1337, %v1337
      %v1346 = vpack.c.b16 %v1338, %v1338
      %v1347 = vpack.c.b16 %v1339, %v1339
      %v1348 = vpack.c.b16 %v1340, %v1340
      %v1349 = vpack.c.b16 %v1341, %v1341
      %v1350 = vpack.c.b16 %v1342, %v1342
      %v1351 = vpack.c.b16 %v1343, %v1343
      %v1352 = vpack.c.b16 %v1344, %v1344
      %1361 = vst.msk [vmem:[%s285] sm:$0xf] %vm1187, %v1345
      %1362 = vst.msk [vmem:[%s285 + $0x4] sm:$0xf] %vm1187, %v1346
      %1363 = vst.msk [vmem:[%s285 + $0x8] sm:$0xf] %vm1187, %v1347
      %1364 = vst.msk [vmem:[%s285 + $0xc] sm:$0xf] %vm1187, %v1348
      %1365 = vst.msk [vmem:[%s285 + $0x10] sm:$0xf] %vm1187, %v1349
      %1366 = vst.msk [vmem:[%s285 + $0x14] sm:$0xf] %vm1187, %v1350
      %1367 = vst.msk [vmem:[%s285 + $0x18] sm:$0xf] %vm1187, %v1351
      %1368 = vst.msk [vmem:[%s285 + $0x1c] sm:$0xf] %vm1187, %v1352
      %p1369 = scmp.lt.s32.totalorder %s18, 1
      %s1370 = scalar_select %p1369, %s18, 1
      %s1371 = smul.addr %s1370, 8
      %s1372 = smul.addr %s1371, 4
      %s1373 = scalar_lea.vmem %s3, %s1372
      %p1374 = scmp.lt.s32.totalorder %s18, 1
      %s1375 = scalar_select %p1374, %s18, 1
      %s1376 = smul.addr %s1375, 2
      %s1377 = scalar_lea.vmem %s4, %s1376
      %p1378 = scmp.lt.s32.totalorder %s18, 1
      %s1379 = scalar_select %p1378, %s18, 1
      %s1380 = smul.addr %s1379, 8
      %s1381 = smul.addr %s1380, 4
      %s1382 = scalar_lea.vmem %s5, %s1381
      %p1383 = scmp.lt.s32.totalorder %s18, 1
      %s1384 = scalar_select %p1383, %s18, 1
      %s1385 = smul.addr %s1384, 2
      %s1386 = scalar_lea.vmem %s6, %s1385
      // Predicated region
      $region33: #{_basic_block_fwd.3} parent=31 // pred_check
        %p1387 = pneg %p104
      $region34: #{_basic_block_fwd.3} parent=31 // pred_check_branch
        %1389 = sbr.rel (%p1387) target = $region36
      $region35: #{_basic_block_fwd.3} parent=31 // pred_region
        _
      $region36: #{_basic_block_fwd.3} parent=31 // pred_fallthru
        _
      // Predicated region
      $region37: #{_basic_block_fwd.3} parent=31 // pred_check
        %p1390 = pneg %p130
      $region38: #{_basic_block_fwd.3} parent=31 // pred_check_branch
        %1392 = sbr.rel (%p1390) target = $region40
      $region39: #{_basic_block_fwd.3} parent=31 // pred_region
        _
      $region40: #{_basic_block_fwd.3} parent=31 // pred_fallthru
        _
      // Predicated region
      $region41: #{_basic_block_fwd.3} parent=31 // pred_check
        %p1393 = pneg %p156
      $region42: #{_basic_block_fwd.3} parent=31 // pred_check_branch
        %1395 = sbr.rel (%p1393) target = $region44
      $region43: #{_basic_block_fwd.3} parent=31 // pred_region
        _
      $region44: #{_basic_block_fwd.3} parent=31 // pred_fallthru
        _
      // Predicated region
      $region45: #{_basic_block_fwd.3} parent=31 // pred_check
        %p1396 = pneg %p182
      $region46: #{_basic_block_fwd.3} parent=31 // pred_check_branch
        %1398 = sbr.rel (%p1396) target = $region48
      $region47: #{_basic_block_fwd.3} parent=31 // pred_region
        _
      $region48: #{_basic_block_fwd.3} parent=31 // pred_fallthru
        _
    $region32: #{_basic_block_fwd.3} parent=5 // pred_fallthru
      _
    %p1399 = scmp.le.s32.totalorder 2, %s13
    // Predicated region
    $region49: #{_basic_block_fwd.3} parent=5 // pred_check
      %p1400 = pneg %p1399
    $region50: #{_basic_block_fwd.3} parent=5 // pred_check_branch
      %1402 = sbr.rel (%p1400) target = $region52
    $region51: #{_basic_block_fwd.3} parent=5 // pred_region
      %s1403 = ssub.s32 %s13, 2
      // Predicated region
      $region53: #{_basic_block_fwd.3} parent=51 // pred_check
        %p1404 = pneg %p110
      $region54: #{_basic_block_fwd.3} parent=51 // pred_check_branch
        %1406 = sbr.rel (%p1404) target = $region56
      $region55: #{_basic_block_fwd.3} parent=51 // pred_region
        %p1407 = scmp.lt.s32.totalorder %s19, 1
        %s1408 = scalar_select %p1407, %s19, 1
        %s1409 = smul.addr %s1408, 8
        %s1410 = smul.addr %s1409, 4
        %s1411 = scalar_lea.vmem %s3, %s1410
      $region56: #{_basic_block_fwd.3} parent=51 // pred_fallthru
        _
      // Predicated region
      $region57: #{_basic_block_fwd.3} parent=51 // pred_check
        %p1412 = pneg %p136
      $region58: #{_basic_block_fwd.3} parent=51 // pred_check_branch
        %1414 = sbr.rel (%p1412) target = $region60
      $region59: #{_basic_block_fwd.3} parent=51 // pred_region
        %p1415 = scmp.lt.s32.totalorder %s19, 1
        %s1416 = scalar_select %p1415, %s19, 1
        %s1417 = smul.addr %s1416, 2
        %s1418 = scalar_lea.vmem %s4, %s1417
      $region60: #{_basic_block_fwd.3} parent=51 // pred_fallthru
        _
      // Predicated region
      $region61: #{_basic_block_fwd.3} parent=51 // pred_check
        %p1419 = pneg %p162
      $region62: #{_basic_block_fwd.3} parent=51 // pred_check_branch
        %1421 = sbr.rel (%p1419) target = $region64
      $region63: #{_basic_block_fwd.3} parent=51 // pred_region
        %p1422 = scmp.lt.s32.totalorder %s19, 1
        %s1423 = scalar_select %p1422, %s19, 1
        %s1424 = smul.addr %s1423, 8
        %s1425 = smul.addr %s1424, 4
        %s1426 = scalar_lea.vmem %s5, %s1425
      $region64: #{_basic_block_fwd.3} parent=51 // pred_fallthru
        _
      // Predicated region
      $region65: #{_basic_block_fwd.3} parent=51 // pred_check
        %p1427 = pneg %p188
      $region66: #{_basic_block_fwd.3} parent=51 // pred_check_branch
        %1429 = sbr.rel (%p1427) target = $region68
      $region67: #{_basic_block_fwd.3} parent=51 // pred_region
        %p1430 = scmp.lt.s32.totalorder %s19, 1
        %s1431 = scalar_select %p1430, %s19, 1
        %s1432 = smul.addr %s1431, 2
        %s1433 = scalar_lea.vmem %s6, %s1432
      $region68: #{_basic_block_fwd.3} parent=51 // pred_fallthru
        _
    $region52: #{_basic_block_fwd.3} parent=5 // pred_fallthru
      _
  $region6: #{_basic_block_fwd.3} parent=0 // loop_footer
    %s17 = sadd.s32 1, %s13
  $region7: #{_basic_block_fwd.3} parent=0 // loop_footer_branch
    %12 = sbr.rel target = $region3
  $region8: #{_basic_block_fwd.3} parent=0 // loop_exit
    _

</llo_original>
